<compile_context>
chip_gen: v6e
topology: v6e:2x2x1
jax: 0.10.0
libtpu: 0.0.40
codegen_flags: <defaults>
</compile_context>

<pallas_src>
import math
import functools

import jax
import jax.numpy as jnp
from jax import lax
from jax.experimental import pallas as pl
from jax.experimental.pallas import tpu as pltpu


# Scoped-VMEM budget: above the 32 MiB default so it never binds on v5e/v6e
# once tiles grow, but <= ~48 MiB so double-buffering headroom remains on v7x.
_VMEM_LIMIT_BYTES = 48 * 1024 * 1024

# Finite "-inf" for the online-softmax carry (avoids -inf - (-inf) = NaN if a
# fully-masked row ever appears once an attention mask is supported).
_NEG_LARGE = -1.0e30


# ---------------------------------------------------------------------------
# Kernel 1a: fused QKV projection (self case: from_tensor is to_tensor).
#   qkv = x @ [wq*scale | wk | wv] + [bq*scale | bk | bv]
# ---------------------------------------------------------------------------
def _qkv_proj_fused_kernel(x_ref, w_ref, b_ref, qkv_ref):
    x = x_ref[0].astype(jnp.bfloat16)                         # (tile, W)
    y = jnp.dot(x, w_ref[...], preferred_element_type=jnp.float32) + b_ref[...]
    qkv_ref[0] = y.astype(qkv_ref.dtype)                      # lane-dense (tile, 3W)


def _qkv_projection_fused(x, wqkv, bqkv, *, tile):
    B, S, W = x.shape
    return pl.pallas_call(
        _qkv_proj_fused_kernel,
        out_shape=jax.ShapeDtypeStruct((B, S, 3 * W), jnp.bfloat16),
        grid_spec=pltpu.PrefetchScalarGridSpec(
            num_scalar_prefetch=0,
            grid=(B, S // tile),
            in_specs=[
                pl.BlockSpec((1, tile, W), lambda b, i: (b, i, 0)),   # activations
                pl.BlockSpec((W, 3 * W), lambda b, i: (0, 0)),        # fused weight
                pl.BlockSpec((1, 3 * W), lambda b, i: (0, 0)),        # fused bias
            ],
            out_specs=pl.BlockSpec((1, tile, 3 * W), lambda b, i: (b, i, 0)),
        ),
        compiler_params=pltpu.CompilerParams(
            dimension_semantics=("parallel", "parallel"),
            vmem_limit_bytes=_VMEM_LIMIT_BYTES),
    )(x, wqkv, bqkv)


# ---------------------------------------------------------------------------
# Kernel 1b: QKV projection for the cross case (from_tensor != to_tensor).
#   q  = from @ wq_scaled + bq_scaled ; kv = to @ [wk | wv] + [bk | bv]
# ---------------------------------------------------------------------------
def _qkv_proj_cross_kernel(from_ref, to_ref, wq_ref, bq_ref, wkv_ref, bkv_ref,
                           qkv_ref, *, width):
    W = width
    xf = from_ref[0].astype(jnp.bfloat16)                     # (tile, W)
    xt = to_ref[0].astype(jnp.bfloat16)                       # (tile, W)
    q = jnp.dot(xf, wq_ref[...], preferred_element_type=jnp.float32) + bq_ref[...]
    kv = jnp.dot(xt, wkv_ref[...], preferred_element_type=jnp.float32) + bkv_ref[...]
    qkv_ref[0, :, :W] = q.astype(qkv_ref.dtype)
    qkv_ref[0, :, W:] = kv.astype(qkv_ref.dtype)


def _qkv_projection_cross(from_tensor, to_tensor, wq, bq, wkv, bkv, *, tile):
    B, S, W = from_tensor.shape
    kernel = functools.partial(_qkv_proj_cross_kernel, width=W)
    return pl.pallas_call(
        kernel,
        out_shape=jax.ShapeDtypeStruct((B, S, 3 * W), jnp.bfloat16),
        grid_spec=pltpu.PrefetchScalarGridSpec(
            num_scalar_prefetch=0,
            grid=(B, S // tile),
            in_specs=[
                pl.BlockSpec((1, tile, W), lambda b, i: (b, i, 0)),   # from_tensor
                pl.BlockSpec((1, tile, W), lambda b, i: (b, i, 0)),   # to_tensor
                pl.BlockSpec((W, W), lambda b, i: (0, 0)),            # wq (pre-scaled)
                pl.BlockSpec((1, W), lambda b, i: (0, 0)),            # bq (pre-scaled)
                pl.BlockSpec((W, 2 * W), lambda b, i: (0, 0)),        # [wk | wv]
                pl.BlockSpec((1, 2 * W), lambda b, i: (0, 0)),        # [bk | bv]
            ],
            out_specs=pl.BlockSpec((1, tile, 3 * W), lambda b, i: (b, i, 0)),
        ),
        compiler_params=pltpu.CompilerParams(
            dimension_semantics=("parallel", "parallel"),
            vmem_limit_bytes=_VMEM_LIMIT_BYTES),
    )(from_tensor, to_tensor, wq, bq, wkv, bkv)


# ---------------------------------------------------------------------------
# Kernel 2: flash-style attention with online softmax.
# Grid = (batch, q-tiles, kv-tiles); kv is the innermost (reduction) axis.
# ---------------------------------------------------------------------------
def _flash_attn_kernel(q_ref, k_ref, v_ref, o_ref,
                       q_hsc, k_hsc, v_hsc, ml_sc, acc_sc,
                       *, head_num, head_size):
    D = head_size
    ki = pl.program_id(2)

    @pl.when(ki == 0)
    def _():
        # Stage Q once per q-tile into head-major scratch (static lane
        # slices), and reset the packed (m, l) carry and the accumulator.
        for h in range(head_num):
            q_hsc[h] = q_ref[0, :, h * D:(h + 1) * D]
        nq = ml_sc.shape[1]
        m0 = jnp.full((head_num, nq, 1), _NEG_LARGE, dtype=jnp.float32)
        l0 = jnp.zeros((head_num, nq, 1), dtype=jnp.float32)
        ml_sc[...] = jnp.concatenate([m0, l0], axis=-1)
        acc_sc[...] = jnp.zeros_like(acc_sc)

    # Stage this kv tile into head-major scratch (static lane slices; same
    # lane shuffles the per-head slicing would otherwise pay implicitly).
    for h in range(head_num):
        k_hsc[h] = k_ref[0, :, h * D:(h + 1) * D]
        v_hsc[h] = v_ref[0, :, h * D:(h + 1) * D]

    # One head at a time via fori_loop: bounds live ranges so only one
    # (tq, tk) score/prob tile is live, regardless of head_num.
    def head_body(h, carry):
        q_h = q_hsc[h]                                        # (tq, D) bf16, pre-scaled
        k_h = k_hsc[h]                                        # (tk, D) bf16
        v_h = v_hsc[h]                                        # (tk, D) bf16

        # Contract the head dim directly (no transpose / relayout).
        s = lax.dot_general(q_h, k_h, (((1,), (1,)), ((), ())),
                            preferred_element_type=jnp.float32)   # (tq, tk)

        ml_prev = ml_sc[h]                                    # (tq, 2): [m | l]
        m_prev = ml_prev[:, 0:1]
        l_prev = ml_prev[:, 1:2]
        m_new = jnp.maximum(m_prev, jnp.max(s, axis=-1, keepdims=True))
        alpha = jnp.exp(m_prev - m_new)
        # TODO(synk): on v6e/v7x, if profiling shows the EUP slot binding,
        # compute this exp in bf16 (keep f32 on v5e).
        p = jnp.exp(s - m_new)                                # (tq, tk) f32
        l_new = alpha * l_prev + jnp.sum(p, axis=-1, keepdims=True)

        acc_sc[h] = alpha * acc_sc[h] + jnp.dot(
            p.astype(v_h.dtype), v_h, preferred_element_type=jnp.float32)
        ml_sc[h] = jnp.concatenate([m_new, l_new], axis=-1)   # single packed store
        return carry

    lax.fori_loop(0, head_num, head_body, 0)

    @pl.when(ki == pl.num_programs(2) - 1)
    def _():
        # Exact normalization (runs once per q-tile) into one lane-dense
        # (tq, W) output block.
        for h in range(head_num):
            l_h = ml_sc[h, :, 1:2]
            o_ref[0, :, h * D:(h + 1) * D] = (acc_sc[h] / l_h).astype(o_ref.dtype)


def _flash_attention(qkv, *, width, head_num, out_dtype, tq, tk):
    B, S, _ = qkv.shape
    W = width
    D = W // head_num
    kernel = functools.partial(_flash_attn_kernel,
                               head_num=head_num, head_size=D)
    return pl.pallas_call(
        kernel,
        out_shape=jax.ShapeDtypeStruct((B, S, W), out_dtype),
        grid_spec=pltpu.PrefetchScalarGridSpec(
            num_scalar_prefetch=0,
            grid=(B, S // tq, S // tk),
            in_specs=[
                # Three views of the same (B, S, 3W) qkv slab.
                # TODO(synk): add pipeline_mode=pl.Buffered(3) to K/V if
                # profiling shows the K/V DMA exposed.
                pl.BlockSpec((1, tq, W), lambda b, qi, ki: (b, qi, 0)),   # Q
                pl.BlockSpec((1, tk, W), lambda b, qi, ki: (b, ki, 1)),   # K
                pl.BlockSpec((1, tk, W), lambda b, qi, ki: (b, ki, 2)),   # V
            ],
            out_specs=pl.BlockSpec((1, tq, W), lambda b, qi, ki: (b, qi, 0)),
            scratch_shapes=[
                pltpu.VMEM((head_num, tq, D), jnp.bfloat16),   # staged Q (head-major)
                pltpu.VMEM((head_num, tk, D), jnp.bfloat16),   # staged K
                pltpu.VMEM((head_num, tk, D), jnp.bfloat16),   # staged V
                pltpu.VMEM((head_num, tq, 2), jnp.float32),    # packed (m, l) carry
                pltpu.VMEM((head_num, tq, D), jnp.float32),    # running context
            ],
        ),
        compiler_params=pltpu.CompilerParams(
            dimension_semantics=("parallel", "parallel", "arbitrary"),
            vmem_limit_bytes=_VMEM_LIMIT_BYTES),
    )(qkv, qkv, qkv)


# ---------------------------------------------------------------------------
# Public wrapper: matches SelfAttention.forward(from_tensor, to_tensor).
# ---------------------------------------------------------------------------
def self_attention(from_tensor, to_tensor, params, head_num,
                   *, proj_tile=512, tq=256, tk=256, out_dtype=None):
    """params hold PyTorch-style Linear weights (out, in) and biases (out,)."""
    B, S, W = from_tensor.shape
    assert to_tensor.shape == (B, S, W)
    assert W % head_num == 0
    assert W % 128 == 0, "keep the lane (last) dim a multiple of 128"
    D = W // head_num
    scale = 1.0 / math.sqrt(float(D))

    proj_tile = min(proj_tile, S)
    tq = min(tq, S)
    tk = min(tk, S)
    assert S % proj_tile == 0 and S % tq == 0 and S % tk == 0

    # Weight glue (once per call). In production, pre-store weights offline in
    # (in, out) layout / bf16 so this transpose+concat disappears.
    if from_tensor is to_tensor:
        wqkv = jnp.concatenate(
            [params["wq"].T * scale, params["wk"].T, params["wv"].T],
            axis=1).astype(jnp.bfloat16)                              # (W, 3W)
        bqkv = jnp.concatenate(
            [params["bq"] * scale, params["bk"], params["bv"]]
        ).reshape(1, 3 * W).astype(jnp.float32)
        qkv = _qkv_projection_fused(from_tensor, wqkv, bqkv, tile=proj_tile)
    else:
        wq = (params["wq"].T * scale).astype(jnp.bfloat16)            # (W, W)
        bq = (params["bq"] * scale).reshape(1, W).astype(jnp.float32)
        wkv = jnp.concatenate([params["wk"].T, params["wv"].T],
                              axis=1).astype(jnp.bfloat16)            # (W, 2W)
        bkv = jnp.concatenate([params["bk"], params["bv"]]
                              ).reshape(1, 2 * W).astype(jnp.float32)
        qkv = _qkv_projection_cross(from_tensor, to_tensor,
                                    wq, bq, wkv, bkv, tile=proj_tile)

    if out_dtype is None:
        out_dtype = from_tensor.dtype   # pass jnp.bfloat16 if downstream accepts it
    # TODO(synk): optional additive attention mask (module's mask != None
    # branch) is not implemented; forward default (mask=None) semantics only.
    # TODO(synk): on v5e, folding the Q projection into the attention kernel
    # (drop the Q third of the HBM intermediate) is a further possible win.
    return _flash_attention(qkv, width=W, head_num=head_num,
                            out_dtype=out_dtype, tq=tq, tk=tk)


# ---------------------------------------------------------------------------
# Pure-JAX f32 reference (mirrors the PyTorch module).
# ---------------------------------------------------------------------------
def _reference(from_tensor, to_tensor, params, head_num):
    B, S, W = from_tensor.shape
    D = W // head_num
    q = from_tensor @ params["wq"].T + params["bq"]
    k = to_tensor @ params["wk"].T + params["bk"]
    v = to_tensor @ params["wv"].T + params["bv"]

    def split(x):
        return x.reshape(B, S, head_num, D).transpose(0, 2, 1, 3)  # (B,H,S,D)

    q, k, v = split(q), split(k), split(v)
    scores = jnp.einsum('bhqd,bhkd->bhqk', q, k) / math.sqrt(D)
    probs = jax.nn.softmax(scores, axis=-1)
    ctx = jnp.einsum('bhqk,bhkd->bhqd', probs, v)
    return ctx.transpose(0, 2, 1, 3).reshape(B, S, W)


if __name__ == "__main__":
    # Small shapes consistent with the module: head_size = 64 like BERT,
    # multiple q / kv tiles so the online-softmax carry is exercised.
    B, S, W, H = 2, 512, 256, 4

    key = jax.random.PRNGKey(0)
    keys = jax.random.split(key, 7)
    from_tensor = jax.random.uniform(keys[0], (B, S, W), dtype=jnp.float32)

    # PyTorch Linear layout: weight (out, in), bias (out,).
    init = 1.0 / math.sqrt(W)
    params = {
        "wq": jax.random.uniform(keys[1], (W, W), jnp.float32, -init, init),
        "bq": jax.random.uniform(keys[2], (W,),   jnp.float32, -init, init),
        "wk": jax.random.uniform(keys[3], (W, W), jnp.float32, -init, init),
        "bk": jax.random.uniform(keys[4], (W,),   jnp.float32, -init, init),
        "wv": jax.random.uniform(keys[5], (W, W), jnp.float32, -init, init),
        "bv": jax.random.uniform(keys[6], (W,),   jnp.float32, -init, init),
    }

    # Self-attention: passing the same tensor twice takes the fused (W,3W) path.
    out = self_attention(from_tensor, from_tensor, params, head_num=H)
    out = jax.block_until_ready(out)

    ref = _reference(from_tensor, from_tensor, params, head_num=H)
    assert out.shape == (B, S, W)
    max_err = float(jnp.max(jnp.abs(out - ref)))
    # bf16 matmuls (f32 accumulation) -> loosened tolerance vs the f32 reference.
    assert jnp.allclose(out, ref, atol=2e-2, rtol=2e-2), (
        f"mismatch vs JAX reference, max abs diff = {max_err}")

    print("KERNEL_OK")
</pallas_src>

<mosaic_0001>
module attributes {stable_mosaic.version = 11 : i64} {
  func.func @_qkv_proj_fused_kernel(%arg0: i32, %arg1: i32, %arg2: memref<1x512x256xf32, #tpu.memory_space<vmem>>, %arg3: memref<256x768xbf16, #tpu.memory_space<vmem>>, %arg4: memref<1x768xf32, #tpu.memory_space<vmem>>, %arg5: memref<1x512x768xbf16, #tpu.memory_space<vmem>>) attributes {dimension_semantics = [#tpu.dimension_semantics<parallel>, #tpu.dimension_semantics<parallel>], iteration_bounds = array<i64: 2, 1>, scalar_prefetch = 0 : i64, scratch_operands = 0 : i64, tpu.core_type = #tpu.core_type<tc>, window_params = [{transform_indices = @transform_0, window_bounds = array<i64: 1, 512, 256>}, {pipeline_mode = #tpu.pipeline_mode<synchronous>, transform_indices = @transform_1, window_bounds = array<i64: 256, 768>}, {pipeline_mode = #tpu.pipeline_mode<synchronous>, transform_indices = @transform_2, window_bounds = array<i64: 1, 768>}, {transform_indices = @transform_3, window_bounds = array<i64: 1, 512, 768>}]} {
    %c0 = arith.constant 0 : index
    %c0_0 = arith.constant 0 : index
    %c0_1 = arith.constant 0 : index
    %0 = vector.load %arg2[%c0, %c0_0, %c0_1] : memref<1x512x256xf32, #tpu.memory_space<vmem>>, vector<1x512x256xf32>
    %1 = vector.shape_cast %0 : vector<1x512x256xf32> to vector<512x256xf32>
    %2 = arith.truncf %1 : vector<512x256xf32> to vector<512x256xbf16>
    %c0_2 = arith.constant 0 : index
    %c0_3 = arith.constant 0 : index
    %3 = vector.load %arg3[%c0_2, %c0_3] : memref<256x768xbf16, #tpu.memory_space<vmem>>, vector<256x768xbf16>
    %cst = arith.constant dense<0.000000e+00> : vector<512x768xf32>
    %4 = tpu.matmul %2, %3, %cst {dimension_numbers = #tpu.dot_dimension_numbers<[1], [0], [0], [1], [0, 0, 1, 1], [], []>} : vector<512x256xbf16>, vector<256x768xbf16>, vector<512x768xf32> -> vector<512x768xf32>
    %c0_4 = arith.constant 0 : index
    %c0_5 = arith.constant 0 : index
    %5 = vector.load %arg4[%c0_4, %c0_5] : memref<1x768xf32, #tpu.memory_space<vmem>>, vector<1x768xf32>
    %6 = vector.broadcast %5 : vector<1x768xf32> to vector<512x768xf32>
    %7 = arith.addf %4, %6 : vector<512x768xf32>
    %8 = arith.truncf %7 : vector<512x768xf32> to vector<512x768xbf16>
    %c0_6 = arith.constant 0 : index
    %c0_7 = arith.constant 0 : index
    %c0_8 = arith.constant 0 : index
    %9 = vector.load %arg5[%c0_6, %c0_7, %c0_8] : memref<1x512x768xbf16, #tpu.memory_space<vmem>>, vector<1x512x768xbf16>
    %10 = vector.shape_cast %9 : vector<1x512x768xbf16> to vector<512x768xbf16>
    %11 = vector.shape_cast %8 : vector<512x768xbf16> to vector<1x512x768xbf16>
    tpu.vector_store %arg5[%c0_6, %c0_7, %c0_8], %11 {strides = array<i32>} : memref<1x512x768xbf16, #tpu.memory_space<vmem>>, vector<1x512x768xbf16>,
    return
  }
  func.func @transform_0(%arg0: i32, %arg1: i32) -> (i32, i32, i32) {
    %c0_i32 = arith.constant 0 : i32
    %c0_i32_0 = arith.constant 0 : i32
    return %arg0, %arg1, %c0_i32 : i32, i32, i32
  }
  func.func @transform_1(%arg0: i32, %arg1: i32) -> (i32, i32) {
    %c0_i32 = arith.constant 0 : i32
    %c0_i32_0 = arith.constant 0 : i32
    %c0_i32_1 = arith.constant 0 : i32
    return %c0_i32, %c0_i32_0 : i32, i32
  }
  func.func @transform_2(%arg0: i32, %arg1: i32) -> (i32, i32) {
    %c0_i32 = arith.constant 0 : i32
    %c0_i32_0 = arith.constant 0 : i32
    %c0_i32_1 = arith.constant 0 : i32
    return %c0_i32, %c0_i32_0 : i32, i32
  }
  func.func @transform_3(%arg0: i32, %arg1: i32) -> (i32, i32, i32) {
    %c0_i32 = arith.constant 0 : i32
    %c0_i32_0 = arith.constant 0 : i32
    return %arg0, %arg1, %c0_i32 : i32, i32, i32
  }
}

</mosaic_0001>

<llo_original>
// kernel: tpu_custom_call.1
$region0: #{tpu_custom_call.1}
  #allocation0 [shape = 'u32[]', space=smem, size = 0x4, offset = 0x4, fixed_abs, tag = 'smem constant byte address 0x4 - core index']
  #allocation1 [shape = 'u32[144,128]{1,0:T(1,128)}', space=vmem, size = 0x12000, scoped, tag = 'internal scratch']
  %s0 = inlined_call_operand.hbm [shape: f32[2,512,256], index: 0, kind: input, shape index: {}]
  %s1 = inlined_call_operand.hbm [shape: bf16[256,768], index: 1, kind: input, shape index: {}]
  %s2 = inlined_call_operand.hbm [shape: f32[1,768], index: 2, kind: input, shape index: {}]
  %s3 = inlined_call_operand.hbm [shape: bf16[2,512,768], index: 3, kind: output, shape index: {}]
  %s4 = sld [smem:[#allocation0]]
  $region57: #{tpu_custom_call.1} parent=0
    _
  %s6 = ssub.s32 1, %s4
  %s7 = scalar_select 0, %s6, %s4
  $region1: #{tpu_custom_call.1} parent=0
    #allocation2 [shape = 'u8[1048576]{0}', space=vmem, size = 0x100000, scoped, tag = 'input window, operand 0']
    #allocation3 [shape = 's32[2]{0}', space=sflag, size = 0x8, scoped, tag = 'scoped memory for tpu_custom_call.1']
    #allocation4 [shape = 's32[2]{0}', space=sflag, size = 0x8, scoped, tag = 'scoped memory for tpu_custom_call.1']
    #allocation5 [shape = 'u8[393216]{0}', space=vmem, size = 0x60000, scoped, tag = 'input window, operand 1, single buffered']
    #allocation6 [shape = 's32[1]{0}', space=sflag, size = 0x4, scoped, tag = 'scoped memory for tpu_custom_call.1']
    #allocation7 [shape = 'u8[3072]{0}', space=vmem, size = 0xc00, scoped, tag = 'input window, operand 2, single buffered']
    #allocation8 [shape = 'u8[1572864]{0}', space=vmem, size = 0x180000, scoped, tag = 'output window, operand 0']
    %8 = vsyncpa [#allocation3], 0
    %s9 = scalar_lea.sflag [#allocation3], 1
    %10 = vsyncpa %s9, 0
    %11 = vsyncpa [#allocation6], 0
    %12 = vsyncpa [#allocation4], 0
    %s13 = scalar_lea.sflag [#allocation4], 1
    %14 = vsyncpa %s13, 0
    loop: start=0, step=1, limit=4
    $region2: #{tpu_custom_call.1} parent=1 // loop_pre_header
      _
    $region3: #{tpu_custom_call.1} parent=1 // loop_header
      %s16 = sphi 0, %s20
      %p17 = scmp.ge.s32.totalorder %s16, 4
      %s23 = sphi 0, %s35
      %s24 = sphi 0, %s31
      %s25 = sphi 0, %s23
      %s26 = sphi 0, %s24
      %s27 = sphi 0, %s25
      %s28 = sphi 0, %s26
      %s40 = sphi 0, %s42
      %s43 = sphi 0, %s40
      %s44 = sphi 0, %s43
      %s60 = sphi 0, %s44
      %s64 = sphi 0, %s64
      %s66 = sphi 0, %s64
      %s67 = sphi 0, %s66
      %s81 = sphi 0, %s67
      %s85 = sphi 0, %s85
      %s87 = sphi 0, %s85
      %s88 = sphi 0, %s87
      %s102 = sphi 0, %s88
      %s110 = sphi 0, %s112
      %s113 = sphi 0, %s110
      %s114 = sphi 0, %s113
      %s130 = sphi 0, %s114
    $region4: #{tpu_custom_call.1} parent=1 // loop_header_branch
      %19 = sbr.rel (%p17) target = $region8
    $region5: #{tpu_custom_call.1} parent=1 // loop_body
      %s21 = ssub.s32 %s16, 1
      %s22 = ssub.s32 %s16, 2
      %s29 = sadd.s32 1, %s24
      %p30 = scmp.ge.s32.totalorder %s29, 1
      %s31 = scalar_select %p30, 0, %s29
      %s32 = sadd.s32 1, %s23
      %s33 = scalar_select %p30, %s32, %s23
      %p34 = scmp.ge.s32.totalorder %s33, 2
      %s35 = scalar_select %p34, 0, %s33
      %s36 = ssub.s32 %s23, %s35
      %s37 = ssub.s32 %s24, %s31
      %s38 = sor.u32 %s36, %s37
      %p39 = scmp.eq.s32.totalorder %s38, 0
      %s41 = sadd.s32 %s40, 1
      %s42 = scalar_select %p39, %s40, %s41
      %p45 = pneg %p39
      %p46 = scmp.eq.s32.totalorder %s16, 1
      %p47 = por %p45, %p46
      %p48 = scmp.ne.s32.totalorder %s40, %s43
      %p49 = scmp.eq.s32.totalorder %s16, 0
      %p50 = por %p48, %p49
      %p51 = scmp.ne.s32.totalorder %s40, %s43
      %p52 = scmp.eq.s32.totalorder %s21, 1
      %p53 = por %p51, %p52
      %p54 = scmp.ne.s32.totalorder %s43, %s44
      %p55 = scmp.eq.s32.totalorder %s21, 0
      %p56 = por %p54, %p55
      %p57 = scmp.ne.s32.totalorder %s43, %s44
      %p58 = scmp.eq.s32.totalorder %s22, 1
      %p59 = por %p57, %p58
      %p61 = scmp.ne.s32.totalorder %s44, %s60
      %p62 = scmp.eq.s32.totalorder %s22, 0
      %p63 = por %p61, %p62
      %s65 = sadd.s32 %s64, 1
      %p68 = scmp.eq.s32.totalorder %s16, 1
      %p69 = scmp.ne.s32.totalorder %s64, %s66
      %p70 = scmp.eq.s32.totalorder %s16, 0
      %p71 = por %p69, %p70
      %p72 = scmp.ne.s32.totalorder %s64, %s66
      %p73 = scmp.eq.s32.totalorder %s21, 1
      %p74 = por %p72, %p73
      %p75 = scmp.ne.s32.totalorder %s66, %s67
      %p76 = scmp.eq.s32.totalorder %s21, 0
      %p77 = por %p75, %p76
      %p78 = scmp.ne.s32.totalorder %s66, %s67
      %p79 = scmp.eq.s32.totalorder %s22, 1
      %p80 = por %p78, %p79
      %p82 = scmp.ne.s32.totalorder %s67, %s81
      %p83 = scmp.eq.s32.totalorder %s22, 0
      %p84 = por %p82, %p83
      %s86 = sadd.s32 %s85, 1
      %p89 = scmp.eq.s32.totalorder %s16, 1
      %p90 = scmp.ne.s32.totalorder %s85, %s87
      %p91 = scmp.eq.s32.totalorder %s16, 0
      %p92 = por %p90, %p91
      %p93 = scmp.ne.s32.totalorder %s85, %s87
      %p94 = scmp.eq.s32.totalorder %s21, 1
      %p95 = por %p93, %p94
      %p96 = scmp.ne.s32.totalorder %s87, %s88
      %p97 = scmp.eq.s32.totalorder %s21, 0
      %p98 = por %p96, %p97
      %p99 = scmp.ne.s32.totalorder %s87, %s88
      %p100 = scmp.eq.s32.totalorder %s22, 1
      %p101 = por %p99, %p100
      %p103 = scmp.ne.s32.totalorder %s88, %s102
      %p104 = scmp.eq.s32.totalorder %s22, 0
      %p105 = por %p103, %p104
      %s106 = ssub.s32 %s23, %s35
      %s107 = ssub.s32 %s24, %s31
      %s108 = sor.u32 %s106, %s107
      %p109 = scmp.eq.s32.totalorder %s108, 0
      %s111 = sadd.s32 %s110, 1
      %s112 = scalar_select %p109, %s110, %s111
      %p115 = pneg %p109
      %p116 = scmp.eq.s32.totalorder %s16, 1
      %p117 = por %p115, %p116
      %p118 = scmp.ne.s32.totalorder %s110, %s113
      %p119 = scmp.eq.s32.totalorder %s16, 0
      %p120 = por %p118, %p119
      %p121 = scmp.ne.s32.totalorder %s110, %s113
      %p122 = scmp.eq.s32.totalorder %s21, 1
      %p123 = por %p121, %p122
      %p124 = scmp.ne.s32.totalorder %s113, %s114
      %p125 = scmp.eq.s32.totalorder %s21, 0
      %p126 = por %p124, %p125
      %p127 = scmp.ne.s32.totalorder %s113, %s114
      %p128 = scmp.eq.s32.totalorder %s22, 1
      %p129 = por %p127, %p128
      %p131 = scmp.ne.s32.totalorder %s114, %s130
      %p132 = scmp.eq.s32.totalorder %s22, 0
      %p133 = por %p131, %p132
      %p134 = scmp.le.s32.totalorder 1, %s16
      %p135 = scmp.lt.s32.totalorder %s16, 3
      %p136 = pnand %p134, %p135
      %p137 = pneg %p136
      // Predicated region
      $region9: #{tpu_custom_call.1} parent=5 // pred_check
        _
      $region10: #{tpu_custom_call.1} parent=5 // pred_check_branch
        %139 = sbr.rel (%p136) target = $region12
      $region11: #{tpu_custom_call.1} parent=5 // pred_region
        %s140 = ssub.s32 %s16, 1
        // Predicated region
        $region13: #{tpu_custom_call.1} parent=11 // pred_check
          %p141 = pneg %p77
        $region14: #{tpu_custom_call.1} parent=11 // pred_check_branch
          %143 = sbr.rel (%p141) target = $region16
        $region15: #{tpu_custom_call.1} parent=11 // pred_region
          %s145 = ssub.s32 12288, 12288
          %146 = vsyncadd [#allocation6], %s145
          %s147 = sshll.u32 [#allocation5], 4
          %s148 = int_to_ptr.vmem [resolvable:$true] %s147
          %153 = dma.hbm_to_vmem [thread:$0]  %s1, 12288, %s148, [#allocation6], 384, 384, 24
        $region16: #{tpu_custom_call.1} parent=11 // pred_fallthru
          _
        // Predicated region
        $region17: #{tpu_custom_call.1} parent=11 // pred_check
          %p154 = pneg %p98
        $region18: #{tpu_custom_call.1} parent=11 // pred_check_branch
          %156 = sbr.rel (%p154) target = $region20
        $region19: #{tpu_custom_call.1} parent=11 // pred_region
          %s158 = ssub.s32 96, 96
          %159 = vsyncadd [#allocation6], %s158
          %s161 = sshll.u32 [#allocation7], 4
          %s162 = int_to_ptr.vmem [resolvable:$true] %s161
          %164 = dma.hbm_to_vmem [thread:$0]  %s2, 96, %s162, [#allocation6]
        $region20: #{tpu_custom_call.1} parent=11 // pred_fallthru
          _
      $region12: #{tpu_custom_call.1} parent=5 // pred_fallthru
        _
      %p165 = scmp.lt.s32.totalorder %s16, 2
      // Predicated region
      $region21: #{tpu_custom_call.1} parent=5 // pred_check
        %p166 = pneg %p165
      $region22: #{tpu_custom_call.1} parent=5 // pred_check_branch
        %168 = sbr.rel (%p166) target = $region24
      $region23: #{tpu_custom_call.1} parent=5 // pred_region
        // Predicated region
        $region25: #{tpu_custom_call.1} parent=23 // pred_check
          %p169 = pneg %p50
        $region26: #{tpu_custom_call.1} parent=23 // pred_check_branch
          %171 = sbr.rel (%p169) target = $region28
        $region27: #{tpu_custom_call.1} parent=23 // pred_region
          %s172 = sand.u32 %s40, 1
          %s173 = scalar_lea.sflag [#allocation3], %s172
          %s174 = sand.u32 %s40, 1
          %s175 = smul.addr %s174, 1024
          %s176 = scalar_lea.vmem [#allocation2], %s175
          %s177 = smul.u32 64, %s24
          %s179 = ssub.s32 16384, 16384
          %180 = vsyncadd %s173, %s179
          %s181 = smul.addr %s177, 2
          %s182 = smul.addr %s23, 128
          %s183 = sadd.s32 %s181, %s182
          %s184 = smul.addr %s183, 128
          %s185 = scalar_lea.hbm %s0, %s184
          %s186 = sshll.u32 %s176, 4
          %s187 = int_to_ptr.vmem [resolvable:$true] %s186
          %192 = dma.hbm_to_vmem [thread:$0]  %s185, 16384, %s187, %s173, 256, 256, 16
        $region28: #{tpu_custom_call.1} parent=23 // pred_fallthru
          _
      $region24: #{tpu_custom_call.1} parent=5 // pred_fallthru
        _
      %p193 = scmp.le.s32.totalorder 1, %s16
      %p194 = scmp.lt.s32.totalorder %s16, 3
      %p195 = pnand %p193, %p194
      %p196 = pneg %p195
      // Predicated region
      $region29: #{tpu_custom_call.1} parent=5 // pred_check
        _
      $region30: #{tpu_custom_call.1} parent=5 // pred_check_branch
        %198 = sbr.rel (%p195) target = $region32
      $region31: #{tpu_custom_call.1} parent=5 // pred_region
        %s199 = ssub.s32 %s16, 1
        %s200 = sand.u32 %s43, 1
        %s201 = scalar_lea.sflag [#allocation3], %s200
        %s202 = sand.u32 %s43, 1
        %s203 = smul.addr %s202, 1024
        %s204 = scalar_lea.vmem [#allocation2], %s203
        // Predicated region
        $region33: #{tpu_custom_call.1} parent=31 // pred_check
          %p205 = pneg %p56
        $region34: #{tpu_custom_call.1} parent=31 // pred_check_branch
          %207 = sbr.rel (%p205) target = $region36
        $region35: #{tpu_custom_call.1} parent=31 // pred_region
          %208 = dma.done %s201, 16384
        $region36: #{tpu_custom_call.1} parent=31 // pred_fallthru
          _
        // Predicated region
        $region37: #{tpu_custom_call.1} parent=31 // pred_check
          %p209 = pneg %p77
        $region38: #{tpu_custom_call.1} parent=31 // pred_check_branch
          %211 = sbr.rel (%p209) target = $region40
        $region39: #{tpu_custom_call.1} parent=31 // pred_region
          %212 = dma.done [#allocation6], 12288
        $region40: #{tpu_custom_call.1} parent=31 // pred_fallthru
          _
        // Predicated region
        $region41: #{tpu_custom_call.1} parent=31 // pred_check
          %p213 = pneg %p98
        $region42: #{tpu_custom_call.1} parent=31 // pred_check_branch
          %215 = sbr.rel (%p213) target = $region44
        $region43: #{tpu_custom_call.1} parent=31 // pred_region
          %216 = dma.done [#allocation6], 96
        $region44: #{tpu_custom_call.1} parent=31 // pred_fallthru
          _
        %s217 = sand.u32 %s43, 1
        %s218 = scalar_lea.sflag [#allocation3], %s217
        %s219 = sand.u32 %s43, 1
        %s220 = smul.addr %s219, 1024
        %s221 = scalar_lea.vmem [#allocation2], %s220
        %p222 = pneg %p56
        %p223 = pneg %p53
        %p224 = pneg %p77
        %p225 = pneg %p74
        %p226 = pneg %p98
        %p227 = pneg %p95
        %p228 = pneg %p126
        %p229 = pneg %p123
        %s230 = sand.u32 %s113, 1
        %s231 = scalar_lea.sflag [#allocation4], %s230
        %s232 = sand.u32 %s113, 1
        %s233 = smul.addr %s232, 1536
        %s234 = scalar_lea.vmem [#allocation8], %s233
        %s235 = smul.u32 64, %s26
        %s236 = smul.u32 64, %s26
        %v237 = vld [vmem:[%s204] sm:$0xff]
        %v238 = vld [vmem:[%s204 + $0x8] sm:$0xff]
        %v239 = vld [vmem:[%s204 + $0x10] sm:$0xff]
        %v240 = vld [vmem:[%s204 + $0x18] sm:$0xff]
        %v241 = vld [vmem:[%s204 + $0x20] sm:$0xff]
        %v242 = vld [vmem:[%s204 + $0x28] sm:$0xff]
        %v243 = vld [vmem:[%s204 + $0x30] sm:$0xff]
        %v244 = vld [vmem:[%s204 + $0x38] sm:$0xff]
        %v245 = vld [vmem:[%s204 + $0x40] sm:$0xff]
        %v246 = vld [vmem:[%s204 + $0x48] sm:$0xff]
        %v247 = vld [vmem:[%s204 + $0x50] sm:$0xff]
        %v248 = vld [vmem:[%s204 + $0x58] sm:$0xff]
        %v249 = vld [vmem:[%s204 + $0x60] sm:$0xff]
        %v250 = vld [vmem:[%s204 + $0x68] sm:$0xff]
        %v251 = vld [vmem:[%s204 + $0x70] sm:$0xff]
        %v252 = vld [vmem:[%s204 + $0x78] sm:$0xff]
        %v253 = vld [vmem:[%s204 + $0x80] sm:$0xff]
        %v254 = vld [vmem:[%s204 + $0x88] sm:$0xff]
        %v255 = vld [vmem:[%s204 + $0x90] sm:$0xff]
        %v256 = vld [vmem:[%s204 + $0x98] sm:$0xff]
        %v257 = vld [vmem:[%s204 + $0xa0] sm:$0xff]
        %v258 = vld [vmem:[%s204 + $0xa8] sm:$0xff]
        %v259 = vld [vmem:[%s204 + $0xb0] sm:$0xff]
        %v260 = vld [vmem:[%s204 + $0xb8] sm:$0xff]
        %v261 = vld [vmem:[%s204 + $0xc0] sm:$0xff]
        %v262 = vld [vmem:[%s204 + $0xc8] sm:$0xff]
        %v263 = vld [vmem:[%s204 + $0xd0] sm:$0xff]
        %v264 = vld [vmem:[%s204 + $0xd8] sm:$0xff]
        %v265 = vld [vmem:[%s204 + $0xe0] sm:$0xff]
        %v266 = vld [vmem:[%s204 + $0xe8] sm:$0xff]
        %v267 = vld [vmem:[%s204 + $0xf0] sm:$0xff]
        %v268 = vld [vmem:[%s204 + $0xf8] sm:$0xff]
        %v269 = vld [vmem:[%s204 + $0x100] sm:$0xff]
        %v270 = vld [vmem:[%s204 + $0x108] sm:$0xff]
        %v271 = vld [vmem:[%s204 + $0x110] sm:$0xff]
        %v272 = vld [vmem:[%s204 + $0x118] sm:$0xff]
        %v273 = vld [vmem:[%s204 + $0x120] sm:$0xff]
        %v274 = vld [vmem:[%s204 + $0x128] sm:$0xff]
        %v275 = vld [vmem:[%s204 + $0x130] sm:$0xff]
        %v276 = vld [vmem:[%s204 + $0x138] sm:$0xff]
        %v277 = vld [vmem:[%s204 + $0x140] sm:$0xff]
        %v278 = vld [vmem:[%s204 + $0x148] sm:$0xff]
        %v279 = vld [vmem:[%s204 + $0x150] sm:$0xff]
        %v280 = vld [vmem:[%s204 + $0x158] sm:$0xff]
        %v281 = vld [vmem:[%s204 + $0x160] sm:$0xff]
        %v282 = vld [vmem:[%s204 + $0x168] sm:$0xff]
        %v283 = vld [vmem:[%s204 + $0x170] sm:$0xff]
        %v284 = vld [vmem:[%s204 + $0x178] sm:$0xff]
        %v285 = vld [vmem:[%s204 + $0x180] sm:$0xff]
        %v286 = vld [vmem:[%s204 + $0x188] sm:$0xff]
        %v287 = vld [vmem:[%s204 + $0x190] sm:$0xff]
        %v288 = vld [vmem:[%s204 + $0x198] sm:$0xff]
        %v289 = vld [vmem:[%s204 + $0x1a0] sm:$0xff]
        %v290 = vld [vmem:[%s204 + $0x1a8] sm:$0xff]
        %v291 = vld [vmem:[%s204 + $0x1b0] sm:$0xff]
        %v292 = vld [vmem:[%s204 + $0x1b8] sm:$0xff]
        %v293 = vld [vmem:[%s204 + $0x1c0] sm:$0xff]
        %v294 = vld [vmem:[%s204 + $0x1c8] sm:$0xff]
        %v295 = vld [vmem:[%s204 + $0x1d0] sm:$0xff]
        %v296 = vld [vmem:[%s204 + $0x1d8] sm:$0xff]
        %v297 = vld [vmem:[%s204 + $0x1e0] sm:$0xff]
        %v298 = vld [vmem:[%s204 + $0x1e8] sm:$0xff]
        %v299 = vld [vmem:[%s204 + $0x1f0] sm:$0xff]
        %v300 = vld [vmem:[%s204 + $0x1f8] sm:$0xff]
        %v301 = vld [vmem:[%s204 + $0x200] sm:$0xff]
        %v302 = vld [vmem:[%s204 + $0x208] sm:$0xff]
        %v303 = vld [vmem:[%s204 + $0x210] sm:$0xff]
        %v304 = vld [vmem:[%s204 + $0x218] sm:$0xff]
        %v305 = vld [vmem:[%s204 + $0x220] sm:$0xff]
        %v306 = vld [vmem:[%s204 + $0x228] sm:$0xff]
        %v307 = vld [vmem:[%s204 + $0x230] sm:$0xff]
        %v308 = vld [vmem:[%s204 + $0x238] sm:$0xff]
        %v309 = vld [vmem:[%s204 + $0x240] sm:$0xff]
        %v310 = vld [vmem:[%s204 + $0x248] sm:$0xff]
        %v311 = vld [vmem:[%s204 + $0x250] sm:$0xff]
        %v312 = vld [vmem:[%s204 + $0x258] sm:$0xff]
        %v313 = vld [vmem:[%s204 + $0x260] sm:$0xff]
        %v314 = vld [vmem:[%s204 + $0x268] sm:$0xff]
        %v315 = vld [vmem:[%s204 + $0x270] sm:$0xff]
        %v316 = vld [vmem:[%s204 + $0x278] sm:$0xff]
        %v317 = vld [vmem:[%s204 + $0x280] sm:$0xff]
        %v318 = vld [vmem:[%s204 + $0x288] sm:$0xff]
        %v319 = vld [vmem:[%s204 + $0x290] sm:$0xff]
        %v320 = vld [vmem:[%s204 + $0x298] sm:$0xff]
        %v321 = vld [vmem:[%s204 + $0x2a0] sm:$0xff]
        %v322 = vld [vmem:[%s204 + $0x2a8] sm:$0xff]
        %v323 = vld [vmem:[%s204 + $0x2b0] sm:$0xff]
        %v324 = vld [vmem:[%s204 + $0x2b8] sm:$0xff]
        %v325 = vld [vmem:[%s204 + $0x2c0] sm:$0xff]
        %v326 = vld [vmem:[%s204 + $0x2c8] sm:$0xff]
        %v327 = vld [vmem:[%s204 + $0x2d0] sm:$0xff]
        %v328 = vld [vmem:[%s204 + $0x2d8] sm:$0xff]
        %v329 = vld [vmem:[%s204 + $0x2e0] sm:$0xff]
        %v330 = vld [vmem:[%s204 + $0x2e8] sm:$0xff]
        %v331 = vld [vmem:[%s204 + $0x2f0] sm:$0xff]
        %v332 = vld [vmem:[%s204 + $0x2f8] sm:$0xff]
        %v333 = vld [vmem:[%s204 + $0x300] sm:$0xff]
        %v334 = vld [vmem:[%s204 + $0x308] sm:$0xff]
        %v335 = vld [vmem:[%s204 + $0x310] sm:$0xff]
        %v336 = vld [vmem:[%s204 + $0x318] sm:$0xff]
        %v337 = vld [vmem:[%s204 + $0x320] sm:$0xff]
        %v338 = vld [vmem:[%s204 + $0x328] sm:$0xff]
        %v339 = vld [vmem:[%s204 + $0x330] sm:$0xff]
        %v340 = vld [vmem:[%s204 + $0x338] sm:$0xff]
        %v341 = vld [vmem:[%s204 + $0x340] sm:$0xff]
        %v342 = vld [vmem:[%s204 + $0x348] sm:$0xff]
        %v343 = vld [vmem:[%s204 + $0x350] sm:$0xff]
        %v344 = vld [vmem:[%s204 + $0x358] sm:$0xff]
        %v345 = vld [vmem:[%s204 + $0x360] sm:$0xff]
        %v346 = vld [vmem:[%s204 + $0x368] sm:$0xff]
        %v347 = vld [vmem:[%s204 + $0x370] sm:$0xff]
        %v348 = vld [vmem:[%s204 + $0x378] sm:$0xff]
        %v349 = vld [vmem:[%s204 + $0x380] sm:$0xff]
        %v350 = vld [vmem:[%s204 + $0x388] sm:$0xff]
        %v351 = vld [vmem:[%s204 + $0x390] sm:$0xff]
        %v352 = vld [vmem:[%s204 + $0x398] sm:$0xff]
        %v353 = vld [vmem:[%s204 + $0x3a0] sm:$0xff]
        %v354 = vld [vmem:[%s204 + $0x3a8] sm:$0xff]
        %v355 = vld [vmem:[%s204 + $0x3b0] sm:$0xff]
        %v356 = vld [vmem:[%s204 + $0x3b8] sm:$0xff]
        %v357 = vld [vmem:[%s204 + $0x3c0] sm:$0xff]
        %v358 = vld [vmem:[%s204 + $0x3c8] sm:$0xff]
        %v359 = vld [vmem:[%s204 + $0x3d0] sm:$0xff]
        %v360 = vld [vmem:[%s204 + $0x3d8] sm:$0xff]
        %v361 = vld [vmem:[%s204 + $0x3e0] sm:$0xff]
        %v362 = vld [vmem:[%s204 + $0x3e8] sm:$0xff]
        %v363 = vld [vmem:[%s204 + $0x3f0] sm:$0xff]
        %v364 = vld [vmem:[%s204 + $0x3f8] sm:$0xff]
        %v365 = vpack.c.bf16 %v239, %v237
        %v366 = vpack.c.bf16 %v240, %v238
        %v367 = vpack.c.bf16 %v243, %v241
        %v368 = vpack.c.bf16 %v244, %v242
        %v369 = vpack.c.bf16 %v247, %v245
        %v370 = vpack.c.bf16 %v248, %v246
        %v371 = vpack.c.bf16 %v251, %v249
        %v372 = vpack.c.bf16 %v252, %v250
        %v373 = vpack.c.bf16 %v255, %v253
        %v374 = vpack.c.bf16 %v256, %v254
        %v375 = vpack.c.bf16 %v259, %v257
        %v376 = vpack.c.bf16 %v260, %v258
        %v377 = vpack.c.bf16 %v263, %v261
        %v378 = vpack.c.bf16 %v264, %v262
        %v379 = vpack.c.bf16 %v267, %v265
        %v380 = vpack.c.bf16 %v268, %v266
        %v381 = vpack.c.bf16 %v271, %v269
        %v382 = vpack.c.bf16 %v272, %v270
        %v383 = vpack.c.bf16 %v275, %v273
        %v384 = vpack.c.bf16 %v276, %v274
        %v385 = vpack.c.bf16 %v279, %v277
        %v386 = vpack.c.bf16 %v280, %v278
        %v387 = vpack.c.bf16 %v283, %v281
        %v388 = vpack.c.bf16 %v284, %v282
        %v389 = vpack.c.bf16 %v287, %v285
        %v390 = vpack.c.bf16 %v288, %v286
        %v391 = vpack.c.bf16 %v291, %v289
        %v392 = vpack.c.bf16 %v292, %v290
        %v393 = vpack.c.bf16 %v295, %v293
        %v394 = vpack.c.bf16 %v296, %v294
        %v395 = vpack.c.bf16 %v299, %v297
        %v396 = vpack.c.bf16 %v300, %v298
        %v397 = vpack.c.bf16 %v303, %v301
        %v398 = vpack.c.bf16 %v304, %v302
        %v399 = vpack.c.bf16 %v307, %v305
        %v400 = vpack.c.bf16 %v308, %v306
        %v401 = vpack.c.bf16 %v311, %v309
        %v402 = vpack.c.bf16 %v312, %v310
        %v403 = vpack.c.bf16 %v315, %v313
        %v404 = vpack.c.bf16 %v316, %v314
        %v405 = vpack.c.bf16 %v319, %v317
        %v406 = vpack.c.bf16 %v320, %v318
        %v407 = vpack.c.bf16 %v323, %v321
        %v408 = vpack.c.bf16 %v324, %v322
        %v409 = vpack.c.bf16 %v327, %v325
        %v410 = vpack.c.bf16 %v328, %v326
        %v411 = vpack.c.bf16 %v331, %v329
        %v412 = vpack.c.bf16 %v332, %v330
        %v413 = vpack.c.bf16 %v335, %v333
        %v414 = vpack.c.bf16 %v336, %v334
        %v415 = vpack.c.bf16 %v339, %v337
        %v416 = vpack.c.bf16 %v340, %v338
        %v417 = vpack.c.bf16 %v343, %v341
        %v418 = vpack.c.bf16 %v344, %v342
        %v419 = vpack.c.bf16 %v347, %v345
        %v420 = vpack.c.bf16 %v348, %v346
        %v421 = vpack.c.bf16 %v351, %v349
        %v422 = vpack.c.bf16 %v352, %v350
        %v423 = vpack.c.bf16 %v355, %v353
        %v424 = vpack.c.bf16 %v356, %v354
        %v425 = vpack.c.bf16 %v359, %v357
        %v426 = vpack.c.bf16 %v360, %v358
        %v427 = vpack.c.bf16 %v363, %v361
        %v428 = vpack.c.bf16 %v364, %v362
        %v429 = vld [vmem:[#allocation5] sm:$0xff]
        %v430 = vld [vmem:[#allocation5 + $0x8] sm:$0xff]
        %v431 = vld [vmem:[#allocation5 + $0x10] sm:$0xff]
        %v432 = vld [vmem:[#allocation5 + $0x18] sm:$0xff]
        %v433 = vld [vmem:[#allocation5 + $0x20] sm:$0xff]
        %v434 = vld [vmem:[#allocation5 + $0x28] sm:$0xff]
        %v435 = vld [vmem:[#allocation5 + $0x30] sm:$0xff]
        %v436 = vld [vmem:[#allocation5 + $0x38] sm:$0xff]
        %v437 = vld [vmem:[#allocation5 + $0x40] sm:$0xff]
        %v438 = vld [vmem:[#allocation5 + $0x48] sm:$0xff]
        %v439 = vld [vmem:[#allocation5 + $0x50] sm:$0xff]
        %v440 = vld [vmem:[#allocation5 + $0x58] sm:$0xff]
        %v441 = vld [vmem:[#allocation5 + $0x60] sm:$0xff]
        %v442 = vld [vmem:[#allocation5 + $0x68] sm:$0xff]
        %v443 = vld [vmem:[#allocation5 + $0x70] sm:$0xff]
        %v444 = vld [vmem:[#allocation5 + $0x78] sm:$0xff]
        %v445 = vld [vmem:[#allocation5 + $0x80] sm:$0xff]
        %v446 = vld [vmem:[#allocation5 + $0x88] sm:$0xff]
        %v447 = vld [vmem:[#allocation5 + $0x90] sm:$0xff]
        %v448 = vld [vmem:[#allocation5 + $0x98] sm:$0xff]
        %v449 = vld [vmem:[#allocation5 + $0xa0] sm:$0xff]
        %v450 = vld [vmem:[#allocation5 + $0xa8] sm:$0xff]
        %v451 = vld [vmem:[#allocation5 + $0xb0] sm:$0xff]
        %v452 = vld [vmem:[#allocation5 + $0xb8] sm:$0xff]
        %v453 = vld [vmem:[#allocation5 + $0xc0] sm:$0xff]
        %v454 = vld [vmem:[#allocation5 + $0xc8] sm:$0xff]
        %v455 = vld [vmem:[#allocation5 + $0xd0] sm:$0xff]
        %v456 = vld [vmem:[#allocation5 + $0xd8] sm:$0xff]
        %v457 = vld [vmem:[#allocation5 + $0xe0] sm:$0xff]
        %v458 = vld [vmem:[#allocation5 + $0xe8] sm:$0xff]
        %v459 = vld [vmem:[#allocation5 + $0xf0] sm:$0xff]
        %v460 = vld [vmem:[#allocation5 + $0xf8] sm:$0xff]
        %v461 = vld [vmem:[#allocation5 + $0x100] sm:$0xff]
        %v462 = vld [vmem:[#allocation5 + $0x108] sm:$0xff]
        %v463 = vld [vmem:[#allocation5 + $0x110] sm:$0xff]
        %v464 = vld [vmem:[#allocation5 + $0x118] sm:$0xff]
        %v465 = vld [vmem:[#allocation5 + $0x120] sm:$0xff]
        %v466 = vld [vmem:[#allocation5 + $0x128] sm:$0xff]
        %v467 = vld [vmem:[#allocation5 + $0x130] sm:$0xff]
        %v468 = vld [vmem:[#allocation5 + $0x138] sm:$0xff]
        %v469 = vld [vmem:[#allocation5 + $0x140] sm:$0xff]
        %v470 = vld [vmem:[#allocation5 + $0x148] sm:$0xff]
        %v471 = vld [vmem:[#allocation5 + $0x150] sm:$0xff]
        %v472 = vld [vmem:[#allocation5 + $0x158] sm:$0xff]
        %v473 = vld [vmem:[#allocation5 + $0x160] sm:$0xff]
        %v474 = vld [vmem:[#allocation5 + $0x168] sm:$0xff]
        %v475 = vld [vmem:[#allocation5 + $0x170] sm:$0xff]
        %v476 = vld [vmem:[#allocation5 + $0x178] sm:$0xff]
        %v477 = vld [vmem:[#allocation5 + $0x180] sm:$0xff]
        %v478 = vld [vmem:[#allocation5 + $0x188] sm:$0xff]
        %v479 = vld [vmem:[#allocation5 + $0x190] sm:$0xff]
        %v480 = vld [vmem:[#allocation5 + $0x198] sm:$0xff]
        %v481 = vld [vmem:[#allocation5 + $0x1a0] sm:$0xff]
        %v482 = vld [vmem:[#allocation5 + $0x1a8] sm:$0xff]
        %v483 = vld [vmem:[#allocation5 + $0x1b0] sm:$0xff]
        %v484 = vld [vmem:[#allocation5 + $0x1b8] sm:$0xff]
        %v485 = vld [vmem:[#allocation5 + $0x1c0] sm:$0xff]
        %v486 = vld [vmem:[#allocation5 + $0x1c8] sm:$0xff]
        %v487 = vld [vmem:[#allocation5 + $0x1d0] sm:$0xff]
        %v488 = vld [vmem:[#allocation5 + $0x1d8] sm:$0xff]
        %v489 = vld [vmem:[#allocation5 + $0x1e0] sm:$0xff]
        %v490 = vld [vmem:[#allocation5 + $0x1e8] sm:$0xff]
        %v491 = vld [vmem:[#allocation5 + $0x1f0] sm:$0xff]
        %v492 = vld [vmem:[#allocation5 + $0x1f8] sm:$0xff]
        %v493 = vld [vmem:[#allocation5 + $0x200] sm:$0xff]
        %v494 = vld [vmem:[#allocation5 + $0x208] sm:$0xff]
        %v495 = vld [vmem:[#allocation5 + $0x210] sm:$0xff]
        %v496 = vld [vmem:[#allocation5 + $0x218] sm:$0xff]
        %v497 = vld [vmem:[#allocation5 + $0x220] sm:$0xff]
        %v498 = vld [vmem:[#allocation5 + $0x228] sm:$0xff]
        %v499 = vld [vmem:[#allocation5 + $0x230] sm:$0xff]
        %v500 = vld [vmem:[#allocation5 + $0x238] sm:$0xff]
        %v501 = vld [vmem:[#allocation5 + $0x240] sm:$0xff]
        %v502 = vld [vmem:[#allocation5 + $0x248] sm:$0xff]
        %v503 = vld [vmem:[#allocation5 + $0x250] sm:$0xff]
        %v504 = vld [vmem:[#allocation5 + $0x258] sm:$0xff]
        %v505 = vld [vmem:[#allocation5 + $0x260] sm:$0xff]
        %v506 = vld [vmem:[#allocation5 + $0x268] sm:$0xff]
        %v507 = vld [vmem:[#allocation5 + $0x270] sm:$0xff]
        %v508 = vld [vmem:[#allocation5 + $0x278] sm:$0xff]
        %v509 = vld [vmem:[#allocation5 + $0x280] sm:$0xff]
        %v510 = vld [vmem:[#allocation5 + $0x288] sm:$0xff]
        %v511 = vld [vmem:[#allocation5 + $0x290] sm:$0xff]
        %v512 = vld [vmem:[#allocation5 + $0x298] sm:$0xff]
        %v513 = vld [vmem:[#allocation5 + $0x2a0] sm:$0xff]
        %v514 = vld [vmem:[#allocation5 + $0x2a8] sm:$0xff]
        %v515 = vld [vmem:[#allocation5 + $0x2b0] sm:$0xff]
        %v516 = vld [vmem:[#allocation5 + $0x2b8] sm:$0xff]
        %v517 = vld [vmem:[#allocation5 + $0x2c0] sm:$0xff]
        %v518 = vld [vmem:[#allocation5 + $0x2c8] sm:$0xff]
        %v519 = vld [vmem:[#allocation5 + $0x2d0] sm:$0xff]
        %v520 = vld [vmem:[#allocation5 + $0x2d8] sm:$0xff]
        %v521 = vld [vmem:[#allocation5 + $0x2e0] sm:$0xff]
        %v522 = vld [vmem:[#allocation5 + $0x2e8] sm:$0xff]
        %v523 = vld [vmem:[#allocation5 + $0x2f0] sm:$0xff]
        %v524 = vld [vmem:[#allocation5 + $0x2f8] sm:$0xff]
        %v525 = vld [vmem:[#allocation7] sm:$0x3f]
        %v527 = vlaneseq
        %v528 = vshrl.u32 %v527, 7
        %v529 = vsub.s32 0, %v528
        %v530 = vrot.slane %v525, %v529
        %v531 = vlaneseq
        %v532 = vshrl.u32 %v531, 7
        %v533 = vsub.s32 1, %v532
        %v534 = vrot.slane %v525, %v533
        %v535 = vlaneseq
        %v536 = vshrl.u32 %v535, 7
        %v537 = vsub.s32 2, %v536
        %v538 = vrot.slane %v525, %v537
        %v539 = vlaneseq
        %v540 = vshrl.u32 %v539, 7
        %v541 = vsub.s32 3, %v540
        %v542 = vrot.slane %v525, %v541
        %v543 = vlaneseq
        %v544 = vshrl.u32 %v543, 7
        %v545 = vsub.s32 4, %v544
        %v546 = vrot.slane %v525, %v545
        %v547 = vlaneseq
        %v548 = vshrl.u32 %v547, 7
        %v549 = vsub.s32 5, %v548
        %v550 = vrot.slane %v525, %v549
        %v653 = vunpack.c.l.b16 %v429
        %v654 = vunpack.c.h.b16 %v429
        %v655 = vunpack.c.l.b16 %v430
        %v656 = vunpack.c.h.b16 %v430
        %v657 = vunpack.c.l.b16 %v431
        %v658 = vunpack.c.h.b16 %v431
        %v659 = vunpack.c.l.b16 %v432
        %v660 = vunpack.c.h.b16 %v432
        %v661 = vunpack.c.l.b16 %v433
        %v662 = vunpack.c.h.b16 %v433
        %v663 = vunpack.c.l.b16 %v434
        %v664 = vunpack.c.h.b16 %v434
        %v665 = vunpack.c.l.b16 %v435
        %v666 = vunpack.c.h.b16 %v435
        %v667 = vunpack.c.l.b16 %v436
        %v668 = vunpack.c.h.b16 %v436
        %v669 = vunpack.c.l.b16 %v437
        %v670 = vunpack.c.h.b16 %v437
        %v671 = vunpack.c.l.b16 %v438
        %v672 = vunpack.c.h.b16 %v438
        %v673 = vunpack.c.l.b16 %v439
        %v674 = vunpack.c.h.b16 %v439
        %v675 = vunpack.c.l.b16 %v440
        %v676 = vunpack.c.h.b16 %v440
        %v677 = vunpack.c.l.b16 %v441
        %v678 = vunpack.c.h.b16 %v441
        %v679 = vunpack.c.l.b16 %v442
        %v680 = vunpack.c.h.b16 %v442
        %v681 = vunpack.c.l.b16 %v443
        %v682 = vunpack.c.h.b16 %v443
        %v683 = vunpack.c.l.b16 %v444
        %v684 = vunpack.c.h.b16 %v444
        %v685 = vunpack.c.l.b16 %v445
        %v686 = vunpack.c.h.b16 %v445
        %v687 = vunpack.c.l.b16 %v446
        %v688 = vunpack.c.h.b16 %v446
        %v689 = vunpack.c.l.b16 %v447
        %v690 = vunpack.c.h.b16 %v447
        %v691 = vunpack.c.l.b16 %v448
        %v692 = vunpack.c.h.b16 %v448
        %v693 = vunpack.c.l.b16 %v449
        %v694 = vunpack.c.h.b16 %v449
        %v695 = vunpack.c.l.b16 %v450
        %v696 = vunpack.c.h.b16 %v450
        %v697 = vunpack.c.l.b16 %v451
        %v698 = vunpack.c.h.b16 %v451
        %v699 = vunpack.c.l.b16 %v452
        %v700 = vunpack.c.h.b16 %v452
        %v701 = vunpack.c.l.b16 %v453
        %v702 = vunpack.c.h.b16 %v453
        %v703 = vunpack.c.l.b16 %v454
        %v704 = vunpack.c.h.b16 %v454
        %v705 = vunpack.c.l.b16 %v455
        %v706 = vunpack.c.h.b16 %v455
        %v707 = vunpack.c.l.b16 %v456
        %v708 = vunpack.c.h.b16 %v456
        %v709 = vunpack.c.l.b16 %v457
        %v710 = vunpack.c.h.b16 %v457
        %v711 = vunpack.c.l.b16 %v458
        %v712 = vunpack.c.h.b16 %v458
        %v713 = vunpack.c.l.b16 %v459
        %v714 = vunpack.c.h.b16 %v459
        %v715 = vunpack.c.l.b16 %v460
        %v716 = vunpack.c.h.b16 %v460
        %v717 = vunpack.c.l.b16 %v461
        %v718 = vunpack.c.h.b16 %v461
        %v719 = vunpack.c.l.b16 %v462
        %v720 = vunpack.c.h.b16 %v462
        %v721 = vunpack.c.l.b16 %v463
        %v722 = vunpack.c.h.b16 %v463
        %v723 = vunpack.c.l.b16 %v464
        %v724 = vunpack.c.h.b16 %v464
        %v725 = vunpack.c.l.b16 %v465
        %v726 = vunpack.c.h.b16 %v465
        %v727 = vunpack.c.l.b16 %v466
        %v728 = vunpack.c.h.b16 %v466
        %v729 = vunpack.c.l.b16 %v467
        %v730 = vunpack.c.h.b16 %v467
        %v731 = vunpack.c.l.b16 %v468
        %v732 = vunpack.c.h.b16 %v468
        %v733 = vunpack.c.l.b16 %v469
        %v734 = vunpack.c.h.b16 %v469
        %v735 = vunpack.c.l.b16 %v470
        %v736 = vunpack.c.h.b16 %v470
        %v737 = vunpack.c.l.b16 %v471
        %v738 = vunpack.c.h.b16 %v471
        %v739 = vunpack.c.l.b16 %v472
        %v740 = vunpack.c.h.b16 %v472
        %v741 = vunpack.c.l.b16 %v473
        %v742 = vunpack.c.h.b16 %v473
        %v743 = vunpack.c.l.b16 %v474
        %v744 = vunpack.c.h.b16 %v474
        %v745 = vunpack.c.l.b16 %v475
        %v746 = vunpack.c.h.b16 %v475
        %v747 = vunpack.c.l.b16 %v476
        %v748 = vunpack.c.h.b16 %v476
        %v749 = vunpack.c.l.b16 %v477
        %v750 = vunpack.c.h.b16 %v477
        %v751 = vunpack.c.l.b16 %v478
        %v752 = vunpack.c.h.b16 %v478
        %v753 = vunpack.c.l.b16 %v479
        %v754 = vunpack.c.h.b16 %v479
        %v755 = vunpack.c.l.b16 %v480
        %v756 = vunpack.c.h.b16 %v480
        %v757 = vunpack.c.l.b16 %v481
        %v758 = vunpack.c.h.b16 %v481
        %v759 = vunpack.c.l.b16 %v482
        %v760 = vunpack.c.h.b16 %v482
        %v761 = vunpack.c.l.b16 %v483
        %v762 = vunpack.c.h.b16 %v483
        %v763 = vunpack.c.l.b16 %v484
        %v764 = vunpack.c.h.b16 %v484
        %v765 = vunpack.c.l.b16 %v485
        %v766 = vunpack.c.h.b16 %v485
        %v767 = vunpack.c.l.b16 %v486
        %v768 = vunpack.c.h.b16 %v486
        %v769 = vunpack.c.l.b16 %v487
        %v770 = vunpack.c.h.b16 %v487
        %v771 = vunpack.c.l.b16 %v488
        %v772 = vunpack.c.h.b16 %v488
        %v773 = vunpack.c.l.b16 %v489
        %v774 = vunpack.c.h.b16 %v489
        %v775 = vunpack.c.l.b16 %v490
        %v776 = vunpack.c.h.b16 %v490
        %v777 = vunpack.c.l.b16 %v491
        %v778 = vunpack.c.h.b16 %v491
        %v779 = vunpack.c.l.b16 %v492
        %v780 = vunpack.c.h.b16 %v492
        %v781 = vunpack.c.l.b16 %v493
        %v782 = vunpack.c.h.b16 %v493
        %v783 = vunpack.c.l.b16 %v494
        %v784 = vunpack.c.h.b16 %v494
        %v785 = vunpack.c.l.b16 %v495
        %v786 = vunpack.c.h.b16 %v495
        %v787 = vunpack.c.l.b16 %v496
        %v788 = vunpack.c.h.b16 %v496
        %v789 = vunpack.c.l.b16 %v497
        %v790 = vunpack.c.h.b16 %v497
        %v791 = vunpack.c.l.b16 %v498
        %v792 = vunpack.c.h.b16 %v498
        %v793 = vunpack.c.l.b16 %v499
        %v794 = vunpack.c.h.b16 %v499
        %v795 = vunpack.c.l.b16 %v500
        %v796 = vunpack.c.h.b16 %v500
        %v797 = vunpack.c.l.b16 %v501
        %v798 = vunpack.c.h.b16 %v501
        %v799 = vunpack.c.l.b16 %v502
        %v800 = vunpack.c.h.b16 %v502
        %v801 = vunpack.c.l.b16 %v503
        %v802 = vunpack.c.h.b16 %v503
        %v803 = vunpack.c.l.b16 %v504
        %v804 = vunpack.c.h.b16 %v504
        %v805 = vunpack.c.l.b16 %v505
        %v806 = vunpack.c.h.b16 %v505
        %v807 = vunpack.c.l.b16 %v506
        %v808 = vunpack.c.h.b16 %v506
        %v809 = vunpack.c.l.b16 %v507
        %v810 = vunpack.c.h.b16 %v507
        %v811 = vunpack.c.l.b16 %v508
        %v812 = vunpack.c.h.b16 %v508
        %v813 = vunpack.c.l.b16 %v509
        %v814 = vunpack.c.h.b16 %v509
        %v815 = vunpack.c.l.b16 %v510
        %v816 = vunpack.c.h.b16 %v510
        %v817 = vunpack.c.l.b16 %v511
        %v818 = vunpack.c.h.b16 %v511
        %v819 = vunpack.c.l.b16 %v512
        %v820 = vunpack.c.h.b16 %v512
        %v821 = vunpack.c.l.b16 %v513
        %v822 = vunpack.c.h.b16 %v513
        %v823 = vunpack.c.l.b16 %v514
        %v824 = vunpack.c.h.b16 %v514
        %v825 = vunpack.c.l.b16 %v515
        %v826 = vunpack.c.h.b16 %v515
        %v827 = vunpack.c.l.b16 %v516
        %v828 = vunpack.c.h.b16 %v516
        %v829 = vunpack.c.l.b16 %v517
        %v830 = vunpack.c.h.b16 %v517
        %v831 = vunpack.c.l.b16 %v518
        %v832 = vunpack.c.h.b16 %v518
        %v833 = vunpack.c.l.b16 %v519
        %v834 = vunpack.c.h.b16 %v519
        %v835 = vunpack.c.l.b16 %v520
        %v836 = vunpack.c.h.b16 %v520
        %v837 = vunpack.c.l.b16 %v521
        %v838 = vunpack.c.h.b16 %v521
        %v839 = vunpack.c.l.b16 %v522
        %v840 = vunpack.c.h.b16 %v522
        %v841 = vunpack.c.l.b16 %v523
        %v842 = vunpack.c.h.b16 %v523
        %v843 = vunpack.c.l.b16 %v524
        %v844 = vunpack.c.h.b16 %v524
        %v845 = vpack.c.b16 %v659, %v653
        %v846 = vpack.c.b16 %v660, %v654
        %v847 = vpack.c.b16 %v661, %v655
        %v848 = vpack.c.b16 %v662, %v656
        %v849 = vpack.c.b16 %v663, %v657
        %v850 = vpack.c.b16 %v664, %v658
        %v851 = vpack.c.b16 %v671, %v665
        %v852 = vpack.c.b16 %v672, %v666
        %v853 = vpack.c.b16 %v673, %v667
        %v854 = vpack.c.b16 %v674, %v668
        %v855 = vpack.c.b16 %v675, %v669
        %v856 = vpack.c.b16 %v676, %v670
        %v857 = vpack.c.b16 %v683, %v677
        %v858 = vpack.c.b16 %v684, %v678
        %v859 = vpack.c.b16 %v685, %v679
        %v860 = vpack.c.b16 %v686, %v680
        %v861 = vpack.c.b16 %v687, %v681
        %v862 = vpack.c.b16 %v688, %v682
        %v863 = vpack.c.b16 %v695, %v689
        %v864 = vpack.c.b16 %v696, %v690
        %v865 = vpack.c.b16 %v697, %v691
        %v866 = vpack.c.b16 %v698, %v692
        %v867 = vpack.c.b16 %v699, %v693
        %v868 = vpack.c.b16 %v700, %v694
        %v869 = vpack.c.b16 %v707, %v701
        %v870 = vpack.c.b16 %v708, %v702
        %v871 = vpack.c.b16 %v709, %v703
        %v872 = vpack.c.b16 %v710, %v704
        %v873 = vpack.c.b16 %v711, %v705
        %v874 = vpack.c.b16 %v712, %v706
        %v875 = vpack.c.b16 %v719, %v713
        %v876 = vpack.c.b16 %v720, %v714
        %v877 = vpack.c.b16 %v721, %v715
        %v878 = vpack.c.b16 %v722, %v716
        %v879 = vpack.c.b16 %v723, %v717
        %v880 = vpack.c.b16 %v724, %v718
        %v881 = vpack.c.b16 %v731, %v725
        %v882 = vpack.c.b16 %v732, %v726
        %v883 = vpack.c.b16 %v733, %v727
        %v884 = vpack.c.b16 %v734, %v728
        %v885 = vpack.c.b16 %v735, %v729
        %v886 = vpack.c.b16 %v736, %v730
        %v887 = vpack.c.b16 %v743, %v737
        %v888 = vpack.c.b16 %v744, %v738
        %v889 = vpack.c.b16 %v745, %v739
        %v890 = vpack.c.b16 %v746, %v740
        %v891 = vpack.c.b16 %v747, %v741
        %v892 = vpack.c.b16 %v748, %v742
        %v893 = vpack.c.b16 %v755, %v749
        %v894 = vpack.c.b16 %v756, %v750
        %v895 = vpack.c.b16 %v757, %v751
        %v896 = vpack.c.b16 %v758, %v752
        %v897 = vpack.c.b16 %v759, %v753
        %v898 = vpack.c.b16 %v760, %v754
        %v899 = vpack.c.b16 %v767, %v761
        %v900 = vpack.c.b16 %v768, %v762
        %v901 = vpack.c.b16 %v769, %v763
        %v902 = vpack.c.b16 %v770, %v764
        %v903 = vpack.c.b16 %v771, %v765
        %v904 = vpack.c.b16 %v772, %v766
        %v905 = vpack.c.b16 %v779, %v773
        %v906 = vpack.c.b16 %v780, %v774
        %v907 = vpack.c.b16 %v781, %v775
        %v908 = vpack.c.b16 %v782, %v776
        %v909 = vpack.c.b16 %v783, %v777
        %v910 = vpack.c.b16 %v784, %v778
        %v911 = vpack.c.b16 %v791, %v785
        %v912 = vpack.c.b16 %v792, %v786
        %v913 = vpack.c.b16 %v793, %v787
        %v914 = vpack.c.b16 %v794, %v788
        %v915 = vpack.c.b16 %v795, %v789
        %v916 = vpack.c.b16 %v796, %v790
        %v917 = vpack.c.b16 %v803, %v797
        %v918 = vpack.c.b16 %v804, %v798
        %v919 = vpack.c.b16 %v805, %v799
        %v920 = vpack.c.b16 %v806, %v800
        %v921 = vpack.c.b16 %v807, %v801
        %v922 = vpack.c.b16 %v808, %v802
        %v923 = vpack.c.b16 %v815, %v809
        %v924 = vpack.c.b16 %v816, %v810
        %v925 = vpack.c.b16 %v817, %v811
        %v926 = vpack.c.b16 %v818, %v812
        %v927 = vpack.c.b16 %v819, %v813
        %v928 = vpack.c.b16 %v820, %v814
        %v929 = vpack.c.b16 %v827, %v821
        %v930 = vpack.c.b16 %v828, %v822
        %v931 = vpack.c.b16 %v829, %v823
        %v932 = vpack.c.b16 %v830, %v824
        %v933 = vpack.c.b16 %v831, %v825
        %v934 = vpack.c.b16 %v832, %v826
        %v935 = vpack.c.b16 %v839, %v833
        %v936 = vpack.c.b16 %v840, %v834
        %v937 = vpack.c.b16 %v841, %v835
        %v938 = vpack.c.b16 %v842, %v836
        %v939 = vpack.c.b16 %v843, %v837
        %v940 = vpack.c.b16 %v844, %v838
        %1037 = vmatprep.subr.bf16.mxu0 %v888
        %1038 = vmatpush1.bf16.msra.mxu0 %v887
        %1039 = vmatprep.subr.bf16.mxu0 %v882
        %1040 = vmatpush1.bf16.msra.mxu0 %v881
        %1041 = vmatprep.subr.bf16.mxu0 %v876
        %1042 = vmatpush1.bf16.msra.mxu0 %v875
        %1043 = vmatprep.subr.bf16.mxu0 %v870
        %1044 = vmatpush1.bf16.msra.mxu0 %v869
        %1045 = vmatprep.subr.bf16.mxu0 %v864
        %1046 = vmatpush1.bf16.msra.mxu0 %v863
        %1047 = vmatprep.subr.bf16.mxu0 %v858
        %1048 = vmatpush1.bf16.msra.mxu0 %v857
        %1049 = vmatprep.subr.bf16.mxu0 %v852
        %1050 = vmatpush1.bf16.msra.mxu0 %v851
        %1051 = vmatprep.subr.bf16.mxu0 %v846
        %1052 = vmatpush1.bf16.msra.mxu0 %v845
        %1053 = vmatprep.subr.bf16.mxu0 %v936
        %1054 = vmatpush2.bf16.msra.mxu0 %v935
        %1055 = vmatprep.subr.bf16.mxu0 %v930
        %1056 = vmatpush2.bf16.msra.mxu0 %v929
        %1057 = vmatprep.subr.bf16.mxu0 %v924
        %1058 = vmatpush2.bf16.msra.mxu0 %v923
        %1059 = vmatprep.subr.bf16.mxu0 %v918
        %1060 = vmatpush2.bf16.msra.mxu0 %v917
        %1061 = vmatprep.subr.bf16.mxu0 %v912
        %1062 = vmatpush2.bf16.msra.mxu0 %v911
        %1063 = vmatprep.subr.bf16.mxu0 %v906
        %1064 = vmatpush2.bf16.msra.mxu0 %v905
        %1065 = vmatprep.subr.bf16.mxu0 %v900
        %1066 = vmatpush2.bf16.msra.mxu0 %v899
        %1067 = vmatprep.subr.bf16.mxu0 %v894
        %1068 = vmatpush2.bf16.msra.mxu0 %v893
        %1069 = vmatprep.mubr.bf16.mxu0 %v366
        %1070 = vmatmul.mubr.bf16.gmra.mxu0 %v365
        %v1071 = vpop.f32.mrf.mxu0
        %v1072 = vadd.f32 %v530, %v1071
        %v1073 = vpop.f32.mrf.mxu0
        %v1074 = vadd.f32 %v534, %v1073
        %v1075 = vpop.f32.mrf.mxu0
        %v1076 = vadd.f32 %v530, %v1075
        %v1077 = vpop.f32.mrf.mxu0
        %v1078 = vadd.f32 %v534, %v1077
        %1079 = vmatprep.mubr.bf16.mxu0 %v368
        %1080 = vmatmul.mubr.bf16.gmra.mxu0 %v367
        %v1081 = vpop.f32.mrf.mxu0
        %v1082 = vadd.f32 %v530, %v1081
        %v1083 = vpop.f32.mrf.mxu0
        %v1084 = vadd.f32 %v534, %v1083
        %v1085 = vpop.f32.mrf.mxu0
        %v1086 = vadd.f32 %v530, %v1085
        %v1087 = vpop.f32.mrf.mxu0
        %v1088 = vadd.f32 %v534, %v1087
        %1089 = vmatprep.mubr.bf16.mxu0 %v370
        %1090 = vmatmul.mubr.bf16.gmra.mxu0 %v369
        %v1091 = vpop.f32.mrf.mxu0
        %v1092 = vadd.f32 %v530, %v1091
        %v1093 = vpop.f32.mrf.mxu0
        %v1094 = vadd.f32 %v534, %v1093
        %v1095 = vpop.f32.mrf.mxu0
        %v1096 = vadd.f32 %v530, %v1095
        %v1097 = vpop.f32.mrf.mxu0
        %v1098 = vadd.f32 %v534, %v1097
        %1099 = vmatprep.mubr.bf16.mxu0 %v372
        %1100 = vmatmul.mubr.bf16.gmra.mxu0 %v371
        %v1101 = vpop.f32.mrf.mxu0
        %v1102 = vadd.f32 %v530, %v1101
        %v1103 = vpop.f32.mrf.mxu0
        %v1104 = vadd.f32 %v534, %v1103
        %v1105 = vpop.f32.mrf.mxu0
        %v1106 = vadd.f32 %v530, %v1105
        %v1107 = vpop.f32.mrf.mxu0
        %v1108 = vadd.f32 %v534, %v1107
        %1109 = vmatprep.mubr.bf16.mxu0 %v374
        %1110 = vmatmul.mubr.bf16.gmra.mxu0 %v373
        %v1111 = vpop.f32.mrf.mxu0
        %v1112 = vadd.f32 %v530, %v1111
        %v1113 = vpop.f32.mrf.mxu0
        %v1114 = vadd.f32 %v534, %v1113
        %v1115 = vpop.f32.mrf.mxu0
        %v1116 = vadd.f32 %v530, %v1115
        %v1117 = vpop.f32.mrf.mxu0
        %v1118 = vadd.f32 %v534, %v1117
        %1119 = vmatprep.mubr.bf16.mxu0 %v376
        %1120 = vmatmul.mubr.bf16.gmra.mxu0 %v375
        %v1121 = vpop.f32.mrf.mxu0
        %v1122 = vadd.f32 %v530, %v1121
        %v1123 = vpop.f32.mrf.mxu0
        %v1124 = vadd.f32 %v534, %v1123
        %v1125 = vpop.f32.mrf.mxu0
        %v1126 = vadd.f32 %v530, %v1125
        %v1127 = vpop.f32.mrf.mxu0
        %v1128 = vadd.f32 %v534, %v1127
        %1129 = vmatprep.mubr.bf16.mxu0 %v378
        %1130 = vmatmul.mubr.bf16.gmra.mxu0 %v377
        %v1131 = vpop.f32.mrf.mxu0
        %v1132 = vadd.f32 %v530, %v1131
        %v1133 = vpop.f32.mrf.mxu0
        %v1134 = vadd.f32 %v534, %v1133
        %v1135 = vpop.f32.mrf.mxu0
        %v1136 = vadd.f32 %v530, %v1135
        %v1137 = vpop.f32.mrf.mxu0
        %v1138 = vadd.f32 %v534, %v1137
        %1139 = vmatprep.mubr.bf16.mxu0 %v380
        %1140 = vmatmul.mubr.bf16.gmra.mxu0 %v379
        %v1141 = vpop.f32.mrf.mxu0
        %v1142 = vadd.f32 %v530, %v1141
        %v1143 = vpop.f32.mrf.mxu0
        %v1144 = vadd.f32 %v534, %v1143
        %v1145 = vpop.f32.mrf.mxu0
        %v1146 = vadd.f32 %v530, %v1145
        %v1147 = vpop.f32.mrf.mxu0
        %v1148 = vadd.f32 %v534, %v1147
        %1149 = vmatprep.mubr.bf16.mxu0 %v382
        %1150 = vmatmul.mubr.bf16.gmra.mxu0 %v381
        %v1151 = vpop.f32.mrf.mxu0
        %v1152 = vadd.f32 %v530, %v1151
        %v1153 = vpop.f32.mrf.mxu0
        %v1154 = vadd.f32 %v534, %v1153
        %v1155 = vpop.f32.mrf.mxu0
        %v1156 = vadd.f32 %v530, %v1155
        %v1157 = vpop.f32.mrf.mxu0
        %v1158 = vadd.f32 %v534, %v1157
        %1159 = vmatprep.mubr.bf16.mxu0 %v384
        %1160 = vmatmul.mubr.bf16.gmra.mxu0 %v383
        %v1161 = vpop.f32.mrf.mxu0
        %v1162 = vadd.f32 %v530, %v1161
        %v1163 = vpop.f32.mrf.mxu0
        %v1164 = vadd.f32 %v534, %v1163
        %v1165 = vpop.f32.mrf.mxu0
        %v1166 = vadd.f32 %v530, %v1165
        %v1167 = vpop.f32.mrf.mxu0
        %v1168 = vadd.f32 %v534, %v1167
        %1169 = vmatprep.mubr.bf16.mxu0 %v386
        %1170 = vmatmul.mubr.bf16.gmra.mxu0 %v385
        %v1171 = vpop.f32.mrf.mxu0
        %v1172 = vadd.f32 %v530, %v1171
        %v1173 = vpop.f32.mrf.mxu0
        %v1174 = vadd.f32 %v534, %v1173
        %v1175 = vpop.f32.mrf.mxu0
        %v1176 = vadd.f32 %v530, %v1175
        %v1177 = vpop.f32.mrf.mxu0
        %v1178 = vadd.f32 %v534, %v1177
        %1179 = vmatprep.mubr.bf16.mxu0 %v388
        %1180 = vmatmul.mubr.bf16.gmra.mxu0 %v387
        %v1181 = vpop.f32.mrf.mxu0
        %v1182 = vadd.f32 %v530, %v1181
        %v1183 = vpop.f32.mrf.mxu0
        %v1184 = vadd.f32 %v534, %v1183
        %v1185 = vpop.f32.mrf.mxu0
        %v1186 = vadd.f32 %v530, %v1185
        %v1187 = vpop.f32.mrf.mxu0
        %v1188 = vadd.f32 %v534, %v1187
        %1189 = vmatprep.mubr.bf16.mxu0 %v390
        %1190 = vmatmul.mubr.bf16.gmra.mxu0 %v389
        %v1191 = vpop.f32.mrf.mxu0
        %v1192 = vadd.f32 %v530, %v1191
        %v1193 = vpop.f32.mrf.mxu0
        %v1194 = vadd.f32 %v534, %v1193
        %v1195 = vpop.f32.mrf.mxu0
        %v1196 = vadd.f32 %v530, %v1195
        %v1197 = vpop.f32.mrf.mxu0
        %v1198 = vadd.f32 %v534, %v1197
        %1199 = vmatprep.mubr.bf16.mxu0 %v392
        %1200 = vmatmul.mubr.bf16.gmra.mxu0 %v391
        %v1201 = vpop.f32.mrf.mxu0
        %v1202 = vadd.f32 %v530, %v1201
        %v1203 = vpop.f32.mrf.mxu0
        %v1204 = vadd.f32 %v534, %v1203
        %v1205 = vpop.f32.mrf.mxu0
        %v1206 = vadd.f32 %v530, %v1205
        %v1207 = vpop.f32.mrf.mxu0
        %v1208 = vadd.f32 %v534, %v1207
        %1209 = vmatprep.mubr.bf16.mxu0 %v394
        %1210 = vmatmul.mubr.bf16.gmra.mxu0 %v393
        %v1211 = vpop.f32.mrf.mxu0
        %v1212 = vadd.f32 %v530, %v1211
        %v1213 = vpop.f32.mrf.mxu0
        %v1214 = vadd.f32 %v534, %v1213
        %v1215 = vpop.f32.mrf.mxu0
        %v1216 = vadd.f32 %v530, %v1215
        %v1217 = vpop.f32.mrf.mxu0
        %v1218 = vadd.f32 %v534, %v1217
        %1219 = vmatprep.mubr.bf16.mxu0 %v396
        %1220 = vmatmul.mubr.bf16.gmra.mxu0 %v395
        %v1221 = vpop.f32.mrf.mxu0
        %v1222 = vadd.f32 %v530, %v1221
        %v1223 = vpop.f32.mrf.mxu0
        %v1224 = vadd.f32 %v534, %v1223
        %v1225 = vpop.f32.mrf.mxu0
        %v1226 = vadd.f32 %v530, %v1225
        %v1227 = vpop.f32.mrf.mxu0
        %v1228 = vadd.f32 %v534, %v1227
        %1229 = vmatprep.mubr.bf16.mxu0 %v398
        %1230 = vmatmul.mubr.bf16.gmra.mxu0 %v397
        %v1231 = vpop.f32.mrf.mxu0
        %v1232 = vadd.f32 %v530, %v1231
        %v1233 = vpop.f32.mrf.mxu0
        %v1234 = vadd.f32 %v534, %v1233
        %v1235 = vpop.f32.mrf.mxu0
        %v1236 = vadd.f32 %v530, %v1235
        %v1237 = vpop.f32.mrf.mxu0
        %v1238 = vadd.f32 %v534, %v1237
        %1239 = vmatprep.mubr.bf16.mxu0 %v400
        %1240 = vmatmul.mubr.bf16.gmra.mxu0 %v399
        %v1241 = vpop.f32.mrf.mxu0
        %v1242 = vadd.f32 %v530, %v1241
        %v1243 = vpop.f32.mrf.mxu0
        %v1244 = vadd.f32 %v534, %v1243
        %v1245 = vpop.f32.mrf.mxu0
        %v1246 = vadd.f32 %v530, %v1245
        %v1247 = vpop.f32.mrf.mxu0
        %v1248 = vadd.f32 %v534, %v1247
        %1249 = vmatprep.mubr.bf16.mxu0 %v402
        %1250 = vmatmul.mubr.bf16.gmra.mxu0 %v401
        %v1251 = vpop.f32.mrf.mxu0
        %v1252 = vadd.f32 %v530, %v1251
        %v1253 = vpop.f32.mrf.mxu0
        %v1254 = vadd.f32 %v534, %v1253
        %v1255 = vpop.f32.mrf.mxu0
        %v1256 = vadd.f32 %v530, %v1255
        %v1257 = vpop.f32.mrf.mxu0
        %v1258 = vadd.f32 %v534, %v1257
        %1259 = vmatprep.mubr.bf16.mxu0 %v404
        %1260 = vmatmul.mubr.bf16.gmra.mxu0 %v403
        %v1261 = vpop.f32.mrf.mxu0
        %v1262 = vadd.f32 %v530, %v1261
        %v1263 = vpop.f32.mrf.mxu0
        %v1264 = vadd.f32 %v534, %v1263
        %v1265 = vpop.f32.mrf.mxu0
        %v1266 = vadd.f32 %v530, %v1265
        %v1267 = vpop.f32.mrf.mxu0
        %v1268 = vadd.f32 %v534, %v1267
        %1269 = vmatprep.mubr.bf16.mxu0 %v406
        %1270 = vmatmul.mubr.bf16.gmra.mxu0 %v405
        %v1271 = vpop.f32.mrf.mxu0
        %v1272 = vadd.f32 %v530, %v1271
        %v1273 = vpop.f32.mrf.mxu0
        %v1274 = vadd.f32 %v534, %v1273
        %v1275 = vpop.f32.mrf.mxu0
        %v1276 = vadd.f32 %v530, %v1275
        %v1277 = vpop.f32.mrf.mxu0
        %v1278 = vadd.f32 %v534, %v1277
        %1279 = vmatprep.mubr.bf16.mxu0 %v408
        %1280 = vmatmul.mubr.bf16.gmra.mxu0 %v407
        %v1281 = vpop.f32.mrf.mxu0
        %v1282 = vadd.f32 %v530, %v1281
        %v1283 = vpop.f32.mrf.mxu0
        %v1284 = vadd.f32 %v534, %v1283
        %v1285 = vpop.f32.mrf.mxu0
        %v1286 = vadd.f32 %v530, %v1285
        %v1287 = vpop.f32.mrf.mxu0
        %v1288 = vadd.f32 %v534, %v1287
        %1289 = vmatprep.mubr.bf16.mxu0 %v410
        %1290 = vmatmul.mubr.bf16.gmra.mxu0 %v409
        %v1291 = vpop.f32.mrf.mxu0
        %v1292 = vadd.f32 %v530, %v1291
        %v1293 = vpop.f32.mrf.mxu0
        %v1294 = vadd.f32 %v534, %v1293
        %v1295 = vpop.f32.mrf.mxu0
        %v1296 = vadd.f32 %v530, %v1295
        %v1297 = vpop.f32.mrf.mxu0
        %v1298 = vadd.f32 %v534, %v1297
        %1299 = vmatprep.mubr.bf16.mxu0 %v412
        %1300 = vmatmul.mubr.bf16.gmra.mxu0 %v411
        %v1301 = vpop.f32.mrf.mxu0
        %v1302 = vadd.f32 %v530, %v1301
        %v1303 = vpop.f32.mrf.mxu0
        %v1304 = vadd.f32 %v534, %v1303
        %v1305 = vpop.f32.mrf.mxu0
        %v1306 = vadd.f32 %v530, %v1305
        %v1307 = vpop.f32.mrf.mxu0
        %v1308 = vadd.f32 %v534, %v1307
        %1309 = vmatprep.mubr.bf16.mxu0 %v414
        %1310 = vmatmul.mubr.bf16.gmra.mxu0 %v413
        %v1311 = vpop.f32.mrf.mxu0
        %v1312 = vadd.f32 %v530, %v1311
        %v1313 = vpop.f32.mrf.mxu0
        %v1314 = vadd.f32 %v534, %v1313
        %v1315 = vpop.f32.mrf.mxu0
        %v1316 = vadd.f32 %v530, %v1315
        %v1317 = vpop.f32.mrf.mxu0
        %v1318 = vadd.f32 %v534, %v1317
        %1319 = vmatprep.mubr.bf16.mxu0 %v416
        %1320 = vmatmul.mubr.bf16.gmra.mxu0 %v415
        %v1321 = vpop.f32.mrf.mxu0
        %v1322 = vadd.f32 %v530, %v1321
        %v1323 = vpop.f32.mrf.mxu0
        %v1324 = vadd.f32 %v534, %v1323
        %v1325 = vpop.f32.mrf.mxu0
        %v1326 = vadd.f32 %v530, %v1325
        %v1327 = vpop.f32.mrf.mxu0
        %v1328 = vadd.f32 %v534, %v1327
        %1329 = vmatprep.mubr.bf16.mxu0 %v418
        %1330 = vmatmul.mubr.bf16.gmra.mxu0 %v417
        %v1331 = vpop.f32.mrf.mxu0
        %v1332 = vadd.f32 %v530, %v1331
        %v1333 = vpop.f32.mrf.mxu0
        %v1334 = vadd.f32 %v534, %v1333
        %v1335 = vpop.f32.mrf.mxu0
        %v1336 = vadd.f32 %v530, %v1335
        %v1337 = vpop.f32.mrf.mxu0
        %v1338 = vadd.f32 %v534, %v1337
        %1339 = vmatprep.mubr.bf16.mxu0 %v420
        %1340 = vmatmul.mubr.bf16.gmra.mxu0 %v419
        %v1341 = vpop.f32.mrf.mxu0
        %v1342 = vadd.f32 %v530, %v1341
        %v1343 = vpop.f32.mrf.mxu0
        %v1344 = vadd.f32 %v534, %v1343
        %v1345 = vpop.f32.mrf.mxu0
        %v1346 = vadd.f32 %v530, %v1345
        %v1347 = vpop.f32.mrf.mxu0
        %v1348 = vadd.f32 %v534, %v1347
        %1349 = vmatprep.mubr.bf16.mxu0 %v422
        %1350 = vmatmul.mubr.bf16.gmra.mxu0 %v421
        %v1351 = vpop.f32.mrf.mxu0
        %v1352 = vadd.f32 %v530, %v1351
        %v1353 = vpop.f32.mrf.mxu0
        %v1354 = vadd.f32 %v534, %v1353
        %v1355 = vpop.f32.mrf.mxu0
        %v1356 = vadd.f32 %v530, %v1355
        %v1357 = vpop.f32.mrf.mxu0
        %v1358 = vadd.f32 %v534, %v1357
        %1359 = vmatprep.mubr.bf16.mxu0 %v424
        %1360 = vmatmul.mubr.bf16.gmra.mxu0 %v423
        %v1361 = vpop.f32.mrf.mxu0
        %v1362 = vadd.f32 %v530, %v1361
        %v1363 = vpop.f32.mrf.mxu0
        %v1364 = vadd.f32 %v534, %v1363
        %v1365 = vpop.f32.mrf.mxu0
        %v1366 = vadd.f32 %v530, %v1365
        %v1367 = vpop.f32.mrf.mxu0
        %v1368 = vadd.f32 %v534, %v1367
        %1369 = vmatprep.mubr.bf16.mxu0 %v426
        %1370 = vmatmul.mubr.bf16.gmra.mxu0 %v425
        %v1371 = vpop.f32.mrf.mxu0
        %v1372 = vadd.f32 %v530, %v1371
        %v1373 = vpop.f32.mrf.mxu0
        %v1374 = vadd.f32 %v534, %v1373
        %v1375 = vpop.f32.mrf.mxu0
        %v1376 = vadd.f32 %v530, %v1375
        %v1377 = vpop.f32.mrf.mxu0
        %v1378 = vadd.f32 %v534, %v1377
        %1379 = vmatprep.mubr.bf16.mxu0 %v428
        %1380 = vmatmul.mubr.bf16.gmra.mxu0 %v427
        %v1381 = vpop.f32.mrf.mxu0
        %v1382 = vadd.f32 %v530, %v1381
        %v1383 = vpop.f32.mrf.mxu0
        %v1384 = vadd.f32 %v534, %v1383
        %v1385 = vpop.f32.mrf.mxu0
        %v1386 = vadd.f32 %v530, %v1385
        %v1387 = vpop.f32.mrf.mxu0
        %v1388 = vadd.f32 %v534, %v1387
        %1389 = vdwg.mxu0
        %1390 = vmatprep.subr.bf16.mxu0 %v890
        %1391 = vmatpush1.bf16.msra.mxu0 %v889
        %1392 = vmatprep.subr.bf16.mxu0 %v884
        %1393 = vmatpush1.bf16.msra.mxu0 %v883
        %1394 = vmatprep.subr.bf16.mxu0 %v878
        %1395 = vmatpush1.bf16.msra.mxu0 %v877
        %1396 = vmatprep.subr.bf16.mxu0 %v872
        %1397 = vmatpush1.bf16.msra.mxu0 %v871
        %1398 = vmatprep.subr.bf16.mxu0 %v866
        %1399 = vmatpush1.bf16.msra.mxu0 %v865
        %1400 = vmatprep.subr.bf16.mxu0 %v860
        %1401 = vmatpush1.bf16.msra.mxu0 %v859
        %1402 = vmatprep.subr.bf16.mxu0 %v854
        %1403 = vmatpush1.bf16.msra.mxu0 %v853
        %1404 = vmatprep.subr.bf16.mxu0 %v848
        %1405 = vmatpush1.bf16.msra.mxu0 %v847
        %1406 = vmatprep.subr.bf16.mxu0 %v938
        %1407 = vmatpush2.bf16.msra.mxu0 %v937
        %1408 = vmatprep.subr.bf16.mxu0 %v932
        %1409 = vmatpush2.bf16.msra.mxu0 %v931
        %1410 = vmatprep.subr.bf16.mxu0 %v926
        %1411 = vmatpush2.bf16.msra.mxu0 %v925
        %1412 = vmatprep.subr.bf16.mxu0 %v920
        %1413 = vmatpush2.bf16.msra.mxu0 %v919
        %1414 = vmatprep.subr.bf16.mxu0 %v914
        %1415 = vmatpush2.bf16.msra.mxu0 %v913
        %1416 = vmatprep.subr.bf16.mxu0 %v908
        %1417 = vmatpush2.bf16.msra.mxu0 %v907
        %1418 = vmatprep.subr.bf16.mxu0 %v902
        %1419 = vmatpush2.bf16.msra.mxu0 %v901
        %1420 = vmatprep.subr.bf16.mxu0 %v896
        %1421 = vmatpush2.bf16.msra.mxu0 %v895
        %1422 = vmatprep.mubr.bf16.mxu0 %v366
        %1423 = vmatmul.mubr.bf16.gmra.mxu0 %v365
        %v1424 = vpop.f32.mrf.mxu0
        %v1425 = vadd.f32 %v538, %v1424
        %v1426 = vpop.f32.mrf.mxu0
        %v1427 = vadd.f32 %v542, %v1426
        %v1428 = vpop.f32.mrf.mxu0
        %v1429 = vadd.f32 %v538, %v1428
        %v1430 = vpop.f32.mrf.mxu0
        %v1431 = vadd.f32 %v542, %v1430
        %1432 = vmatprep.mubr.bf16.mxu0 %v368
        %1433 = vmatmul.mubr.bf16.gmra.mxu0 %v367
        %v1434 = vpop.f32.mrf.mxu0
        %v1435 = vadd.f32 %v538, %v1434
        %v1436 = vpop.f32.mrf.mxu0
        %v1437 = vadd.f32 %v542, %v1436
        %v1438 = vpop.f32.mrf.mxu0
        %v1439 = vadd.f32 %v538, %v1438
        %v1440 = vpop.f32.mrf.mxu0
        %v1441 = vadd.f32 %v542, %v1440
        %1442 = vmatprep.mubr.bf16.mxu0 %v370
        %1443 = vmatmul.mubr.bf16.gmra.mxu0 %v369
        %v1444 = vpop.f32.mrf.mxu0
        %v1445 = vadd.f32 %v538, %v1444
        %v1446 = vpop.f32.mrf.mxu0
        %v1447 = vadd.f32 %v542, %v1446
        %v1448 = vpop.f32.mrf.mxu0
        %v1449 = vadd.f32 %v538, %v1448
        %v1450 = vpop.f32.mrf.mxu0
        %v1451 = vadd.f32 %v542, %v1450
        %1452 = vmatprep.mubr.bf16.mxu0 %v372
        %1453 = vmatmul.mubr.bf16.gmra.mxu0 %v371
        %v1454 = vpop.f32.mrf.mxu0
        %v1455 = vadd.f32 %v538, %v1454
        %v1456 = vpop.f32.mrf.mxu0
        %v1457 = vadd.f32 %v542, %v1456
        %v1458 = vpop.f32.mrf.mxu0
        %v1459 = vadd.f32 %v538, %v1458
        %v1460 = vpop.f32.mrf.mxu0
        %v1461 = vadd.f32 %v542, %v1460
        %1462 = vmatprep.mubr.bf16.mxu0 %v374
        %1463 = vmatmul.mubr.bf16.gmra.mxu0 %v373
        %v1464 = vpop.f32.mrf.mxu0
        %v1465 = vadd.f32 %v538, %v1464
        %v1466 = vpop.f32.mrf.mxu0
        %v1467 = vadd.f32 %v542, %v1466
        %v1468 = vpop.f32.mrf.mxu0
        %v1469 = vadd.f32 %v538, %v1468
        %v1470 = vpop.f32.mrf.mxu0
        %v1471 = vadd.f32 %v542, %v1470
        %1472 = vmatprep.mubr.bf16.mxu0 %v376
        %1473 = vmatmul.mubr.bf16.gmra.mxu0 %v375
        %v1474 = vpop.f32.mrf.mxu0
        %v1475 = vadd.f32 %v538, %v1474
        %v1476 = vpop.f32.mrf.mxu0
        %v1477 = vadd.f32 %v542, %v1476
        %v1478 = vpop.f32.mrf.mxu0
        %v1479 = vadd.f32 %v538, %v1478
        %v1480 = vpop.f32.mrf.mxu0
        %v1481 = vadd.f32 %v542, %v1480
        %1482 = vmatprep.mubr.bf16.mxu0 %v378
        %1483 = vmatmul.mubr.bf16.gmra.mxu0 %v377
        %v1484 = vpop.f32.mrf.mxu0
        %v1485 = vadd.f32 %v538, %v1484
        %v1486 = vpop.f32.mrf.mxu0
        %v1487 = vadd.f32 %v542, %v1486
        %v1488 = vpop.f32.mrf.mxu0
        %v1489 = vadd.f32 %v538, %v1488
        %v1490 = vpop.f32.mrf.mxu0
        %v1491 = vadd.f32 %v542, %v1490
        %1492 = vmatprep.mubr.bf16.mxu0 %v380
        %1493 = vmatmul.mubr.bf16.gmra.mxu0 %v379
        %v1494 = vpop.f32.mrf.mxu0
        %v1495 = vadd.f32 %v538, %v1494
        %v1496 = vpop.f32.mrf.mxu0
        %v1497 = vadd.f32 %v542, %v1496
        %v1498 = vpop.f32.mrf.mxu0
        %v1499 = vadd.f32 %v538, %v1498
        %v1500 = vpop.f32.mrf.mxu0
        %v1501 = vadd.f32 %v542, %v1500
        %1502 = vmatprep.mubr.bf16.mxu0 %v382
        %1503 = vmatmul.mubr.bf16.gmra.mxu0 %v381
        %v1504 = vpop.f32.mrf.mxu0
        %v1505 = vadd.f32 %v538, %v1504
        %v1506 = vpop.f32.mrf.mxu0
        %v1507 = vadd.f32 %v542, %v1506
        %v1508 = vpop.f32.mrf.mxu0
        %v1509 = vadd.f32 %v538, %v1508
        %v1510 = vpop.f32.mrf.mxu0
        %v1511 = vadd.f32 %v542, %v1510
        %1512 = vmatprep.mubr.bf16.mxu0 %v384
        %1513 = vmatmul.mubr.bf16.gmra.mxu0 %v383
        %v1514 = vpop.f32.mrf.mxu0
        %v1515 = vadd.f32 %v538, %v1514
        %v1516 = vpop.f32.mrf.mxu0
        %v1517 = vadd.f32 %v542, %v1516
        %v1518 = vpop.f32.mrf.mxu0
        %v1519 = vadd.f32 %v538, %v1518
        %v1520 = vpop.f32.mrf.mxu0
        %v1521 = vadd.f32 %v542, %v1520
        %1522 = vmatprep.mubr.bf16.mxu0 %v386
        %1523 = vmatmul.mubr.bf16.gmra.mxu0 %v385
        %v1524 = vpop.f32.mrf.mxu0
        %v1525 = vadd.f32 %v538, %v1524
        %v1526 = vpop.f32.mrf.mxu0
        %v1527 = vadd.f32 %v542, %v1526
        %v1528 = vpop.f32.mrf.mxu0
        %v1529 = vadd.f32 %v538, %v1528
        %v1530 = vpop.f32.mrf.mxu0
        %v1531 = vadd.f32 %v542, %v1530
        %1532 = vmatprep.mubr.bf16.mxu0 %v388
        %1533 = vmatmul.mubr.bf16.gmra.mxu0 %v387
        %v1534 = vpop.f32.mrf.mxu0
        %v1535 = vadd.f32 %v538, %v1534
        %v1536 = vpop.f32.mrf.mxu0
        %v1537 = vadd.f32 %v542, %v1536
        %v1538 = vpop.f32.mrf.mxu0
        %v1539 = vadd.f32 %v538, %v1538
        %v1540 = vpop.f32.mrf.mxu0
        %v1541 = vadd.f32 %v542, %v1540
        %1542 = vmatprep.mubr.bf16.mxu0 %v390
        %1543 = vmatmul.mubr.bf16.gmra.mxu0 %v389
        %v1544 = vpop.f32.mrf.mxu0
        %v1545 = vadd.f32 %v538, %v1544
        %v1546 = vpop.f32.mrf.mxu0
        %v1547 = vadd.f32 %v542, %v1546
        %v1548 = vpop.f32.mrf.mxu0
        %v1549 = vadd.f32 %v538, %v1548
        %v1550 = vpop.f32.mrf.mxu0
        %v1551 = vadd.f32 %v542, %v1550
        %1552 = vmatprep.mubr.bf16.mxu0 %v392
        %1553 = vmatmul.mubr.bf16.gmra.mxu0 %v391
        %v1554 = vpop.f32.mrf.mxu0
        %v1555 = vadd.f32 %v538, %v1554
        %v1556 = vpop.f32.mrf.mxu0
        %v1557 = vadd.f32 %v542, %v1556
        %v1558 = vpop.f32.mrf.mxu0
        %v1559 = vadd.f32 %v538, %v1558
        %v1560 = vpop.f32.mrf.mxu0
        %v1561 = vadd.f32 %v542, %v1560
        %1562 = vmatprep.mubr.bf16.mxu0 %v394
        %1563 = vmatmul.mubr.bf16.gmra.mxu0 %v393
        %v1564 = vpop.f32.mrf.mxu0
        %v1565 = vadd.f32 %v538, %v1564
        %v1566 = vpop.f32.mrf.mxu0
        %v1567 = vadd.f32 %v542, %v1566
        %v1568 = vpop.f32.mrf.mxu0
        %v1569 = vadd.f32 %v538, %v1568
        %v1570 = vpop.f32.mrf.mxu0
        %v1571 = vadd.f32 %v542, %v1570
        %1572 = vmatprep.mubr.bf16.mxu0 %v396
        %1573 = vmatmul.mubr.bf16.gmra.mxu0 %v395
        %v1574 = vpop.f32.mrf.mxu0
        %v1575 = vadd.f32 %v538, %v1574
        %v1576 = vpop.f32.mrf.mxu0
        %v1577 = vadd.f32 %v542, %v1576
        %v1578 = vpop.f32.mrf.mxu0
        %v1579 = vadd.f32 %v538, %v1578
        %v1580 = vpop.f32.mrf.mxu0
        %v1581 = vadd.f32 %v542, %v1580
        %1582 = vmatprep.mubr.bf16.mxu0 %v398
        %1583 = vmatmul.mubr.bf16.gmra.mxu0 %v397
        %v1584 = vpop.f32.mrf.mxu0
        %v1585 = vadd.f32 %v538, %v1584
        %v1586 = vpop.f32.mrf.mxu0
        %v1587 = vadd.f32 %v542, %v1586
        %v1588 = vpop.f32.mrf.mxu0
        %v1589 = vadd.f32 %v538, %v1588
        %v1590 = vpop.f32.mrf.mxu0
        %v1591 = vadd.f32 %v542, %v1590
        %1592 = vmatprep.mubr.bf16.mxu0 %v400
        %1593 = vmatmul.mubr.bf16.gmra.mxu0 %v399
        %v1594 = vpop.f32.mrf.mxu0
        %v1595 = vadd.f32 %v538, %v1594
        %v1596 = vpop.f32.mrf.mxu0
        %v1597 = vadd.f32 %v542, %v1596
        %v1598 = vpop.f32.mrf.mxu0
        %v1599 = vadd.f32 %v538, %v1598
        %v1600 = vpop.f32.mrf.mxu0
        %v1601 = vadd.f32 %v542, %v1600
        %1602 = vmatprep.mubr.bf16.mxu0 %v402
        %1603 = vmatmul.mubr.bf16.gmra.mxu0 %v401
        %v1604 = vpop.f32.mrf.mxu0
        %v1605 = vadd.f32 %v538, %v1604
        %v1606 = vpop.f32.mrf.mxu0
        %v1607 = vadd.f32 %v542, %v1606
        %v1608 = vpop.f32.mrf.mxu0
        %v1609 = vadd.f32 %v538, %v1608
        %v1610 = vpop.f32.mrf.mxu0
        %v1611 = vadd.f32 %v542, %v1610
        %1612 = vmatprep.mubr.bf16.mxu0 %v404
        %1613 = vmatmul.mubr.bf16.gmra.mxu0 %v403
        %v1614 = vpop.f32.mrf.mxu0
        %v1615 = vadd.f32 %v538, %v1614
        %v1616 = vpop.f32.mrf.mxu0
        %v1617 = vadd.f32 %v542, %v1616
        %v1618 = vpop.f32.mrf.mxu0
        %v1619 = vadd.f32 %v538, %v1618
        %v1620 = vpop.f32.mrf.mxu0
        %v1621 = vadd.f32 %v542, %v1620
        %1622 = vmatprep.mubr.bf16.mxu0 %v406
        %1623 = vmatmul.mubr.bf16.gmra.mxu0 %v405
        %v1624 = vpop.f32.mrf.mxu0
        %v1625 = vadd.f32 %v538, %v1624
        %v1626 = vpop.f32.mrf.mxu0
        %v1627 = vadd.f32 %v542, %v1626
        %v1628 = vpop.f32.mrf.mxu0
        %v1629 = vadd.f32 %v538, %v1628
        %v1630 = vpop.f32.mrf.mxu0
        %v1631 = vadd.f32 %v542, %v1630
        %1632 = vmatprep.mubr.bf16.mxu0 %v408
        %1633 = vmatmul.mubr.bf16.gmra.mxu0 %v407
        %v1634 = vpop.f32.mrf.mxu0
        %v1635 = vadd.f32 %v538, %v1634
        %v1636 = vpop.f32.mrf.mxu0
        %v1637 = vadd.f32 %v542, %v1636
        %v1638 = vpop.f32.mrf.mxu0
        %v1639 = vadd.f32 %v538, %v1638
        %v1640 = vpop.f32.mrf.mxu0
        %v1641 = vadd.f32 %v542, %v1640
        %1642 = vmatprep.mubr.bf16.mxu0 %v410
        %1643 = vmatmul.mubr.bf16.gmra.mxu0 %v409
        %v1644 = vpop.f32.mrf.mxu0
        %v1645 = vadd.f32 %v538, %v1644
        %v1646 = vpop.f32.mrf.mxu0
        %v1647 = vadd.f32 %v542, %v1646
        %v1648 = vpop.f32.mrf.mxu0
        %v1649 = vadd.f32 %v538, %v1648
        %v1650 = vpop.f32.mrf.mxu0
        %v1651 = vadd.f32 %v542, %v1650
        %1652 = vmatprep.mubr.bf16.mxu0 %v412
        %1653 = vmatmul.mubr.bf16.gmra.mxu0 %v411
        %v1654 = vpop.f32.mrf.mxu0
        %v1655 = vadd.f32 %v538, %v1654
        %v1656 = vpop.f32.mrf.mxu0
        %v1657 = vadd.f32 %v542, %v1656
        %v1658 = vpop.f32.mrf.mxu0
        %v1659 = vadd.f32 %v538, %v1658
        %v1660 = vpop.f32.mrf.mxu0
        %v1661 = vadd.f32 %v542, %v1660
        %1662 = vmatprep.mubr.bf16.mxu0 %v414
        %1663 = vmatmul.mubr.bf16.gmra.mxu0 %v413
        %v1664 = vpop.f32.mrf.mxu0
        %v1665 = vadd.f32 %v538, %v1664
        %v1666 = vpop.f32.mrf.mxu0
        %v1667 = vadd.f32 %v542, %v1666
        %v1668 = vpop.f32.mrf.mxu0
        %v1669 = vadd.f32 %v538, %v1668
        %v1670 = vpop.f32.mrf.mxu0
        %v1671 = vadd.f32 %v542, %v1670
        %1672 = vmatprep.mubr.bf16.mxu0 %v416
        %1673 = vmatmul.mubr.bf16.gmra.mxu0 %v415
        %v1674 = vpop.f32.mrf.mxu0
        %v1675 = vadd.f32 %v538, %v1674
        %v1676 = vpop.f32.mrf.mxu0
        %v1677 = vadd.f32 %v542, %v1676
        %v1678 = vpop.f32.mrf.mxu0
        %v1679 = vadd.f32 %v538, %v1678
        %v1680 = vpop.f32.mrf.mxu0
        %v1681 = vadd.f32 %v542, %v1680
        %1682 = vmatprep.mubr.bf16.mxu0 %v418
        %1683 = vmatmul.mubr.bf16.gmra.mxu0 %v417
        %v1684 = vpop.f32.mrf.mxu0
        %v1685 = vadd.f32 %v538, %v1684
        %v1686 = vpop.f32.mrf.mxu0
        %v1687 = vadd.f32 %v542, %v1686
        %v1688 = vpop.f32.mrf.mxu0
        %v1689 = vadd.f32 %v538, %v1688
        %v1690 = vpop.f32.mrf.mxu0
        %v1691 = vadd.f32 %v542, %v1690
        %1692 = vmatprep.mubr.bf16.mxu0 %v420
        %1693 = vmatmul.mubr.bf16.gmra.mxu0 %v419
        %v1694 = vpop.f32.mrf.mxu0
        %v1695 = vadd.f32 %v538, %v1694
        %v1696 = vpop.f32.mrf.mxu0
        %v1697 = vadd.f32 %v542, %v1696
        %v1698 = vpop.f32.mrf.mxu0
        %v1699 = vadd.f32 %v538, %v1698
        %v1700 = vpop.f32.mrf.mxu0
        %v1701 = vadd.f32 %v542, %v1700
        %1702 = vmatprep.mubr.bf16.mxu0 %v422
        %1703 = vmatmul.mubr.bf16.gmra.mxu0 %v421
        %v1704 = vpop.f32.mrf.mxu0
        %v1705 = vadd.f32 %v538, %v1704
        %v1706 = vpop.f32.mrf.mxu0
        %v1707 = vadd.f32 %v542, %v1706
        %v1708 = vpop.f32.mrf.mxu0
        %v1709 = vadd.f32 %v538, %v1708
        %v1710 = vpop.f32.mrf.mxu0
        %v1711 = vadd.f32 %v542, %v1710
        %1712 = vmatprep.mubr.bf16.mxu0 %v424
        %1713 = vmatmul.mubr.bf16.gmra.mxu0 %v423
        %v1714 = vpop.f32.mrf.mxu0
        %v1715 = vadd.f32 %v538, %v1714
        %v1716 = vpop.f32.mrf.mxu0
        %v1717 = vadd.f32 %v542, %v1716
        %v1718 = vpop.f32.mrf.mxu0
        %v1719 = vadd.f32 %v538, %v1718
        %v1720 = vpop.f32.mrf.mxu0
        %v1721 = vadd.f32 %v542, %v1720
        %1722 = vmatprep.mubr.bf16.mxu0 %v426
        %1723 = vmatmul.mubr.bf16.gmra.mxu0 %v425
        %v1724 = vpop.f32.mrf.mxu0
        %v1725 = vadd.f32 %v538, %v1724
        %v1726 = vpop.f32.mrf.mxu0
        %v1727 = vadd.f32 %v542, %v1726
        %v1728 = vpop.f32.mrf.mxu0
        %v1729 = vadd.f32 %v538, %v1728
        %v1730 = vpop.f32.mrf.mxu0
        %v1731 = vadd.f32 %v542, %v1730
        %1732 = vmatprep.mubr.bf16.mxu0 %v428
        %1733 = vmatmul.mubr.bf16.gmra.mxu0 %v427
        %v1734 = vpop.f32.mrf.mxu0
        %v1735 = vadd.f32 %v538, %v1734
        %v1736 = vpop.f32.mrf.mxu0
        %v1737 = vadd.f32 %v542, %v1736
        %v1738 = vpop.f32.mrf.mxu0
        %v1739 = vadd.f32 %v538, %v1738
        %v1740 = vpop.f32.mrf.mxu0
        %v1741 = vadd.f32 %v542, %v1740
        %1742 = vdwg.mxu0
        %1743 = vmatprep.subr.bf16.mxu0 %v892
        %1744 = vmatpush1.bf16.msra.mxu0 %v891
        %1745 = vmatprep.subr.bf16.mxu0 %v886
        %1746 = vmatpush1.bf16.msra.mxu0 %v885
        %1747 = vmatprep.subr.bf16.mxu0 %v880
        %1748 = vmatpush1.bf16.msra.mxu0 %v879
        %1749 = vmatprep.subr.bf16.mxu0 %v874
        %1750 = vmatpush1.bf16.msra.mxu0 %v873
        %1751 = vmatprep.subr.bf16.mxu0 %v868
        %1752 = vmatpush1.bf16.msra.mxu0 %v867
        %1753 = vmatprep.subr.bf16.mxu0 %v862
        %1754 = vmatpush1.bf16.msra.mxu0 %v861
        %1755 = vmatprep.subr.bf16.mxu0 %v856
        %1756 = vmatpush1.bf16.msra.mxu0 %v855
        %1757 = vmatprep.subr.bf16.mxu0 %v850
        %1758 = vmatpush1.bf16.msra.mxu0 %v849
        %1759 = vmatprep.subr.bf16.mxu0 %v940
        %1760 = vmatpush2.bf16.msra.mxu0 %v939
        %1761 = vmatprep.subr.bf16.mxu0 %v934
        %1762 = vmatpush2.bf16.msra.mxu0 %v933
        %1763 = vmatprep.subr.bf16.mxu0 %v928
        %1764 = vmatpush2.bf16.msra.mxu0 %v927
        %1765 = vmatprep.subr.bf16.mxu0 %v922
        %1766 = vmatpush2.bf16.msra.mxu0 %v921
        %1767 = vmatprep.subr.bf16.mxu0 %v916
        %1768 = vmatpush2.bf16.msra.mxu0 %v915
        %1769 = vmatprep.subr.bf16.mxu0 %v910
        %1770 = vmatpush2.bf16.msra.mxu0 %v909
        %1771 = vmatprep.subr.bf16.mxu0 %v904
        %1772 = vmatpush2.bf16.msra.mxu0 %v903
        %1773 = vmatprep.subr.bf16.mxu0 %v898
        %1774 = vmatpush2.bf16.msra.mxu0 %v897
        %1775 = vmatprep.mubr.bf16.mxu0 %v366
        %1776 = vmatmul.mubr.bf16.gmra.mxu0 %v365
        %v1777 = vpop.f32.mrf.mxu0
        %v1778 = vadd.f32 %v546, %v1777
        %v1779 = vpop.f32.mrf.mxu0
        %v1780 = vadd.f32 %v550, %v1779
        %v1781 = vpop.f32.mrf.mxu0
        %v1782 = vadd.f32 %v546, %v1781
        %v1783 = vpop.f32.mrf.mxu0
        %v1784 = vadd.f32 %v550, %v1783
        %1785 = vmatprep.mubr.bf16.mxu0 %v368
        %1786 = vmatmul.mubr.bf16.gmra.mxu0 %v367
        %v1787 = vpop.f32.mrf.mxu0
        %v1788 = vadd.f32 %v546, %v1787
        %v1789 = vpop.f32.mrf.mxu0
        %v1790 = vadd.f32 %v550, %v1789
        %v1791 = vpop.f32.mrf.mxu0
        %v1792 = vadd.f32 %v546, %v1791
        %v1793 = vpop.f32.mrf.mxu0
        %v1794 = vadd.f32 %v550, %v1793
        %1795 = vmatprep.mubr.bf16.mxu0 %v370
        %1796 = vmatmul.mubr.bf16.gmra.mxu0 %v369
        %v1797 = vpop.f32.mrf.mxu0
        %v1798 = vadd.f32 %v546, %v1797
        %v1799 = vpop.f32.mrf.mxu0
        %v1800 = vadd.f32 %v550, %v1799
        %v1801 = vpop.f32.mrf.mxu0
        %v1802 = vadd.f32 %v546, %v1801
        %v1803 = vpop.f32.mrf.mxu0
        %v1804 = vadd.f32 %v550, %v1803
        %1805 = vmatprep.mubr.bf16.mxu0 %v372
        %1806 = vmatmul.mubr.bf16.gmra.mxu0 %v371
        %v1807 = vpop.f32.mrf.mxu0
        %v1808 = vadd.f32 %v546, %v1807
        %v1809 = vpop.f32.mrf.mxu0
        %v1810 = vadd.f32 %v550, %v1809
        %v1811 = vpop.f32.mrf.mxu0
        %v1812 = vadd.f32 %v546, %v1811
        %v1813 = vpop.f32.mrf.mxu0
        %v1814 = vadd.f32 %v550, %v1813
        %1815 = vmatprep.mubr.bf16.mxu0 %v374
        %1816 = vmatmul.mubr.bf16.gmra.mxu0 %v373
        %v1817 = vpop.f32.mrf.mxu0
        %v1818 = vadd.f32 %v546, %v1817
        %v1819 = vpop.f32.mrf.mxu0
        %v1820 = vadd.f32 %v550, %v1819
        %v1821 = vpop.f32.mrf.mxu0
        %v1822 = vadd.f32 %v546, %v1821
        %v1823 = vpop.f32.mrf.mxu0
        %v1824 = vadd.f32 %v550, %v1823
        %1825 = vmatprep.mubr.bf16.mxu0 %v376
        %1826 = vmatmul.mubr.bf16.gmra.mxu0 %v375
        %v1827 = vpop.f32.mrf.mxu0
        %v1828 = vadd.f32 %v546, %v1827
        %v1829 = vpop.f32.mrf.mxu0
        %v1830 = vadd.f32 %v550, %v1829
        %v1831 = vpop.f32.mrf.mxu0
        %v1832 = vadd.f32 %v546, %v1831
        %v1833 = vpop.f32.mrf.mxu0
        %v1834 = vadd.f32 %v550, %v1833
        %1835 = vmatprep.mubr.bf16.mxu0 %v378
        %1836 = vmatmul.mubr.bf16.gmra.mxu0 %v377
        %v1837 = vpop.f32.mrf.mxu0
        %v1838 = vadd.f32 %v546, %v1837
        %v1839 = vpop.f32.mrf.mxu0
        %v1840 = vadd.f32 %v550, %v1839
        %v1841 = vpop.f32.mrf.mxu0
        %v1842 = vadd.f32 %v546, %v1841
        %v1843 = vpop.f32.mrf.mxu0
        %v1844 = vadd.f32 %v550, %v1843
        %1845 = vmatprep.mubr.bf16.mxu0 %v380
        %1846 = vmatmul.mubr.bf16.gmra.mxu0 %v379
        %v1847 = vpop.f32.mrf.mxu0
        %v1848 = vadd.f32 %v546, %v1847
        %v1849 = vpop.f32.mrf.mxu0
        %v1850 = vadd.f32 %v550, %v1849
        %v1851 = vpop.f32.mrf.mxu0
        %v1852 = vadd.f32 %v546, %v1851
        %v1853 = vpop.f32.mrf.mxu0
        %v1854 = vadd.f32 %v550, %v1853
        %1855 = vmatprep.mubr.bf16.mxu0 %v382
        %1856 = vmatmul.mubr.bf16.gmra.mxu0 %v381
        %v1857 = vpop.f32.mrf.mxu0
        %v1858 = vadd.f32 %v546, %v1857
        %v1859 = vpop.f32.mrf.mxu0
        %v1860 = vadd.f32 %v550, %v1859
        %v1861 = vpop.f32.mrf.mxu0
        %v1862 = vadd.f32 %v546, %v1861
        %v1863 = vpop.f32.mrf.mxu0
        %v1864 = vadd.f32 %v550, %v1863
        %1865 = vmatprep.mubr.bf16.mxu0 %v384
        %1866 = vmatmul.mubr.bf16.gmra.mxu0 %v383
        %v1867 = vpop.f32.mrf.mxu0
        %v1868 = vadd.f32 %v546, %v1867
        %v1869 = vpop.f32.mrf.mxu0
        %v1870 = vadd.f32 %v550, %v1869
        %v1871 = vpop.f32.mrf.mxu0
        %v1872 = vadd.f32 %v546, %v1871
        %v1873 = vpop.f32.mrf.mxu0
        %v1874 = vadd.f32 %v550, %v1873
        %1875 = vmatprep.mubr.bf16.mxu0 %v386
        %1876 = vmatmul.mubr.bf16.gmra.mxu0 %v385
        %v1877 = vpop.f32.mrf.mxu0
        %v1878 = vadd.f32 %v546, %v1877
        %v1879 = vpop.f32.mrf.mxu0
        %v1880 = vadd.f32 %v550, %v1879
        %v1881 = vpop.f32.mrf.mxu0
        %v1882 = vadd.f32 %v546, %v1881
        %v1883 = vpop.f32.mrf.mxu0
        %v1884 = vadd.f32 %v550, %v1883
        %1885 = vmatprep.mubr.bf16.mxu0 %v388
        %1886 = vmatmul.mubr.bf16.gmra.mxu0 %v387
        %v1887 = vpop.f32.mrf.mxu0
        %v1888 = vadd.f32 %v546, %v1887
        %v1889 = vpop.f32.mrf.mxu0
        %v1890 = vadd.f32 %v550, %v1889
        %v1891 = vpop.f32.mrf.mxu0
        %v1892 = vadd.f32 %v546, %v1891
        %v1893 = vpop.f32.mrf.mxu0
        %v1894 = vadd.f32 %v550, %v1893
        %1895 = vmatprep.mubr.bf16.mxu0 %v390
        %1896 = vmatmul.mubr.bf16.gmra.mxu0 %v389
        %v1897 = vpop.f32.mrf.mxu0
        %v1898 = vadd.f32 %v546, %v1897
        %v1899 = vpop.f32.mrf.mxu0
        %v1900 = vadd.f32 %v550, %v1899
        %v1901 = vpop.f32.mrf.mxu0
        %v1902 = vadd.f32 %v546, %v1901
        %v1903 = vpop.f32.mrf.mxu0
        %v1904 = vadd.f32 %v550, %v1903
        %1905 = vmatprep.mubr.bf16.mxu0 %v392
        %1906 = vmatmul.mubr.bf16.gmra.mxu0 %v391
        %v1907 = vpop.f32.mrf.mxu0
        %v1908 = vadd.f32 %v546, %v1907
        %v1909 = vpop.f32.mrf.mxu0
        %v1910 = vadd.f32 %v550, %v1909
        %v1911 = vpop.f32.mrf.mxu0
        %v1912 = vadd.f32 %v546, %v1911
        %v1913 = vpop.f32.mrf.mxu0
        %v1914 = vadd.f32 %v550, %v1913
        %1915 = vmatprep.mubr.bf16.mxu0 %v394
        %1916 = vmatmul.mubr.bf16.gmra.mxu0 %v393
        %v1917 = vpop.f32.mrf.mxu0
        %v1918 = vadd.f32 %v546, %v1917
        %v1919 = vpop.f32.mrf.mxu0
        %v1920 = vadd.f32 %v550, %v1919
        %v1921 = vpop.f32.mrf.mxu0
        %v1922 = vadd.f32 %v546, %v1921
        %v1923 = vpop.f32.mrf.mxu0
        %v1924 = vadd.f32 %v550, %v1923
        %1925 = vmatprep.mubr.bf16.mxu0 %v396
        %1926 = vmatmul.mubr.bf16.gmra.mxu0 %v395
        %v1927 = vpop.f32.mrf.mxu0
        %v1928 = vadd.f32 %v546, %v1927
        %v1929 = vpop.f32.mrf.mxu0
        %v1930 = vadd.f32 %v550, %v1929
        %v1931 = vpop.f32.mrf.mxu0
        %v1932 = vadd.f32 %v546, %v1931
        %v1933 = vpop.f32.mrf.mxu0
        %v1934 = vadd.f32 %v550, %v1933
        %1935 = vmatprep.mubr.bf16.mxu0 %v398
        %1936 = vmatmul.mubr.bf16.gmra.mxu0 %v397
        %v1937 = vpop.f32.mrf.mxu0
        %v1938 = vadd.f32 %v546, %v1937
        %v1939 = vpop.f32.mrf.mxu0
        %v1940 = vadd.f32 %v550, %v1939
        %v1941 = vpop.f32.mrf.mxu0
        %v1942 = vadd.f32 %v546, %v1941
        %v1943 = vpop.f32.mrf.mxu0
        %v1944 = vadd.f32 %v550, %v1943
        %1945 = vmatprep.mubr.bf16.mxu0 %v400
        %1946 = vmatmul.mubr.bf16.gmra.mxu0 %v399
        %v1947 = vpop.f32.mrf.mxu0
        %v1948 = vadd.f32 %v546, %v1947
        %v1949 = vpop.f32.mrf.mxu0
        %v1950 = vadd.f32 %v550, %v1949
        %v1951 = vpop.f32.mrf.mxu0
        %v1952 = vadd.f32 %v546, %v1951
        %v1953 = vpop.f32.mrf.mxu0
        %v1954 = vadd.f32 %v550, %v1953
        %1955 = vmatprep.mubr.bf16.mxu0 %v402
        %1956 = vmatmul.mubr.bf16.gmra.mxu0 %v401
        %v1957 = vpop.f32.mrf.mxu0
        %v1958 = vadd.f32 %v546, %v1957
        %v1959 = vpop.f32.mrf.mxu0
        %v1960 = vadd.f32 %v550, %v1959
        %v1961 = vpop.f32.mrf.mxu0
        %v1962 = vadd.f32 %v546, %v1961
        %v1963 = vpop.f32.mrf.mxu0
        %v1964 = vadd.f32 %v550, %v1963
        %1965 = vmatprep.mubr.bf16.mxu0 %v404
        %1966 = vmatmul.mubr.bf16.gmra.mxu0 %v403
        %v1967 = vpop.f32.mrf.mxu0
        %v1968 = vadd.f32 %v546, %v1967
        %v1969 = vpop.f32.mrf.mxu0
        %v1970 = vadd.f32 %v550, %v1969
        %v1971 = vpop.f32.mrf.mxu0
        %v1972 = vadd.f32 %v546, %v1971
        %v1973 = vpop.f32.mrf.mxu0
        %v1974 = vadd.f32 %v550, %v1973
        %1975 = vmatprep.mubr.bf16.mxu0 %v406
        %1976 = vmatmul.mubr.bf16.gmra.mxu0 %v405
        %v1977 = vpop.f32.mrf.mxu0
        %v1978 = vadd.f32 %v546, %v1977
        %v1979 = vpop.f32.mrf.mxu0
        %v1980 = vadd.f32 %v550, %v1979
        %v1981 = vpop.f32.mrf.mxu0
        %v1982 = vadd.f32 %v546, %v1981
        %v1983 = vpop.f32.mrf.mxu0
        %v1984 = vadd.f32 %v550, %v1983
        %1985 = vmatprep.mubr.bf16.mxu0 %v408
        %1986 = vmatmul.mubr.bf16.gmra.mxu0 %v407
        %v1987 = vpop.f32.mrf.mxu0
        %v1988 = vadd.f32 %v546, %v1987
        %v1989 = vpop.f32.mrf.mxu0
        %v1990 = vadd.f32 %v550, %v1989
        %v1991 = vpop.f32.mrf.mxu0
        %v1992 = vadd.f32 %v546, %v1991
        %v1993 = vpop.f32.mrf.mxu0
        %v1994 = vadd.f32 %v550, %v1993
        %1995 = vmatprep.mubr.bf16.mxu0 %v410
        %1996 = vmatmul.mubr.bf16.gmra.mxu0 %v409
        %v1997 = vpop.f32.mrf.mxu0
        %v1998 = vadd.f32 %v546, %v1997
        %v1999 = vpop.f32.mrf.mxu0
        %v2000 = vadd.f32 %v550, %v1999
        %v2001 = vpop.f32.mrf.mxu0
        %v2002 = vadd.f32 %v546, %v2001
        %v2003 = vpop.f32.mrf.mxu0
        %v2004 = vadd.f32 %v550, %v2003
        %2005 = vmatprep.mubr.bf16.mxu0 %v412
        %2006 = vmatmul.mubr.bf16.gmra.mxu0 %v411
        %v2007 = vpop.f32.mrf.mxu0
        %v2008 = vadd.f32 %v546, %v2007
        %v2009 = vpop.f32.mrf.mxu0
        %v2010 = vadd.f32 %v550, %v2009
        %v2011 = vpop.f32.mrf.mxu0
        %v2012 = vadd.f32 %v546, %v2011
        %v2013 = vpop.f32.mrf.mxu0
        %v2014 = vadd.f32 %v550, %v2013
        %2015 = vmatprep.mubr.bf16.mxu0 %v414
        %2016 = vmatmul.mubr.bf16.gmra.mxu0 %v413
        %v2017 = vpop.f32.mrf.mxu0
        %v2018 = vadd.f32 %v546, %v2017
        %v2019 = vpop.f32.mrf.mxu0
        %v2020 = vadd.f32 %v550, %v2019
        %v2021 = vpop.f32.mrf.mxu0
        %v2022 = vadd.f32 %v546, %v2021
        %v2023 = vpop.f32.mrf.mxu0
        %v2024 = vadd.f32 %v550, %v2023
        %2025 = vmatprep.mubr.bf16.mxu0 %v416
        %2026 = vmatmul.mubr.bf16.gmra.mxu0 %v415
        %v2027 = vpop.f32.mrf.mxu0
        %v2028 = vadd.f32 %v546, %v2027
        %v2029 = vpop.f32.mrf.mxu0
        %v2030 = vadd.f32 %v550, %v2029
        %v2031 = vpop.f32.mrf.mxu0
        %v2032 = vadd.f32 %v546, %v2031
        %v2033 = vpop.f32.mrf.mxu0
        %v2034 = vadd.f32 %v550, %v2033
        %2035 = vmatprep.mubr.bf16.mxu0 %v418
        %2036 = vmatmul.mubr.bf16.gmra.mxu0 %v417
        %v2037 = vpop.f32.mrf.mxu0
        %v2038 = vadd.f32 %v546, %v2037
        %v2039 = vpop.f32.mrf.mxu0
        %v2040 = vadd.f32 %v550, %v2039
        %v2041 = vpop.f32.mrf.mxu0
        %v2042 = vadd.f32 %v546, %v2041
        %v2043 = vpop.f32.mrf.mxu0
        %v2044 = vadd.f32 %v550, %v2043
        %2045 = vmatprep.mubr.bf16.mxu0 %v420
        %2046 = vmatmul.mubr.bf16.gmra.mxu0 %v419
        %v2047 = vpop.f32.mrf.mxu0
        %v2048 = vadd.f32 %v546, %v2047
        %v2049 = vpop.f32.mrf.mxu0
        %v2050 = vadd.f32 %v550, %v2049
        %v2051 = vpop.f32.mrf.mxu0
        %v2052 = vadd.f32 %v546, %v2051
        %v2053 = vpop.f32.mrf.mxu0
        %v2054 = vadd.f32 %v550, %v2053
        %2055 = vmatprep.mubr.bf16.mxu0 %v422
        %2056 = vmatmul.mubr.bf16.gmra.mxu0 %v421
        %v2057 = vpop.f32.mrf.mxu0
        %v2058 = vadd.f32 %v546, %v2057
        %v2059 = vpop.f32.mrf.mxu0
        %v2060 = vadd.f32 %v550, %v2059
        %v2061 = vpop.f32.mrf.mxu0
        %v2062 = vadd.f32 %v546, %v2061
        %v2063 = vpop.f32.mrf.mxu0
        %v2064 = vadd.f32 %v550, %v2063
        %2065 = vmatprep.mubr.bf16.mxu0 %v424
        %2066 = vmatmul.mubr.bf16.gmra.mxu0 %v423
        %v2067 = vpop.f32.mrf.mxu0
        %v2068 = vadd.f32 %v546, %v2067
        %v2069 = vpop.f32.mrf.mxu0
        %v2070 = vadd.f32 %v550, %v2069
        %v2071 = vpop.f32.mrf.mxu0
        %v2072 = vadd.f32 %v546, %v2071
        %v2073 = vpop.f32.mrf.mxu0
        %v2074 = vadd.f32 %v550, %v2073
        %2075 = vmatprep.mubr.bf16.mxu0 %v426
        %2076 = vmatmul.mubr.bf16.gmra.mxu0 %v425
        %v2077 = vpop.f32.mrf.mxu0
        %v2078 = vadd.f32 %v546, %v2077
        %v2079 = vpop.f32.mrf.mxu0
        %v2080 = vadd.f32 %v550, %v2079
        %v2081 = vpop.f32.mrf.mxu0
        %v2082 = vadd.f32 %v546, %v2081
        %v2083 = vpop.f32.mrf.mxu0
        %v2084 = vadd.f32 %v550, %v2083
        %2085 = vmatprep.mubr.bf16.mxu0 %v428
        %2086 = vmatmul.mubr.bf16.gmra.mxu0 %v427
        %v2087 = vpop.f32.mrf.mxu0
        %v2088 = vadd.f32 %v546, %v2087
        %v2089 = vpop.f32.mrf.mxu0
        %v2090 = vadd.f32 %v550, %v2089
        %v2091 = vpop.f32.mrf.mxu0
        %v2092 = vadd.f32 %v546, %v2091
        %v2093 = vpop.f32.mrf.mxu0
        %v2094 = vadd.f32 %v550, %v2093
        %2095 = vdwg.mxu0
        %v2096 = vpack.c.bf16 %v1076, %v1072
        %v2097 = vpack.c.bf16 %v1078, %v1074
        %v2098 = vpack.c.bf16 %v1429, %v1425
        %v2099 = vpack.c.bf16 %v1431, %v1427
        %v2100 = vpack.c.bf16 %v1782, %v1778
        %v2101 = vpack.c.bf16 %v1784, %v1780
        %v2102 = vpack.c.bf16 %v1086, %v1082
        %v2103 = vpack.c.bf16 %v1088, %v1084
        %v2104 = vpack.c.bf16 %v1439, %v1435
        %v2105 = vpack.c.bf16 %v1441, %v1437
        %v2106 = vpack.c.bf16 %v1792, %v1788
        %v2107 = vpack.c.bf16 %v1794, %v1790
        %v2108 = vpack.c.bf16 %v1096, %v1092
        %v2109 = vpack.c.bf16 %v1098, %v1094
        %v2110 = vpack.c.bf16 %v1449, %v1445
        %v2111 = vpack.c.bf16 %v1451, %v1447
        %v2112 = vpack.c.bf16 %v1802, %v1798
        %v2113 = vpack.c.bf16 %v1804, %v1800
        %v2114 = vpack.c.bf16 %v1106, %v1102
        %v2115 = vpack.c.bf16 %v1108, %v1104
        %v2116 = vpack.c.bf16 %v1459, %v1455
        %v2117 = vpack.c.bf16 %v1461, %v1457
        %v2118 = vpack.c.bf16 %v1812, %v1808
        %v2119 = vpack.c.bf16 %v1814, %v1810
        %v2120 = vpack.c.bf16 %v1116, %v1112
        %v2121 = vpack.c.bf16 %v1118, %v1114
        %v2122 = vpack.c.bf16 %v1469, %v1465
        %v2123 = vpack.c.bf16 %v1471, %v1467
        %v2124 = vpack.c.bf16 %v1822, %v1818
        %v2125 = vpack.c.bf16 %v1824, %v1820
        %v2126 = vpack.c.bf16 %v1126, %v1122
        %v2127 = vpack.c.bf16 %v1128, %v1124
        %v2128 = vpack.c.bf16 %v1479, %v1475
        %v2129 = vpack.c.bf16 %v1481, %v1477
        %v2130 = vpack.c.bf16 %v1832, %v1828
        %v2131 = vpack.c.bf16 %v1834, %v1830
        %v2132 = vpack.c.bf16 %v1136, %v1132
        %v2133 = vpack.c.bf16 %v1138, %v1134
        %v2134 = vpack.c.bf16 %v1489, %v1485
        %v2135 = vpack.c.bf16 %v1491, %v1487
        %v2136 = vpack.c.bf16 %v1842, %v1838
        %v2137 = vpack.c.bf16 %v1844, %v1840
        %v2138 = vpack.c.bf16 %v1146, %v1142
        %v2139 = vpack.c.bf16 %v1148, %v1144
        %v2140 = vpack.c.bf16 %v1499, %v1495
        %v2141 = vpack.c.bf16 %v1501, %v1497
        %v2142 = vpack.c.bf16 %v1852, %v1848
        %v2143 = vpack.c.bf16 %v1854, %v1850
        %v2144 = vpack.c.bf16 %v1156, %v1152
        %v2145 = vpack.c.bf16 %v1158, %v1154
        %v2146 = vpack.c.bf16 %v1509, %v1505
        %v2147 = vpack.c.bf16 %v1511, %v1507
        %v2148 = vpack.c.bf16 %v1862, %v1858
        %v2149 = vpack.c.bf16 %v1864, %v1860
        %v2150 = vpack.c.bf16 %v1166, %v1162
        %v2151 = vpack.c.bf16 %v1168, %v1164
        %v2152 = vpack.c.bf16 %v1519, %v1515
        %v2153 = vpack.c.bf16 %v1521, %v1517
        %v2154 = vpack.c.bf16 %v1872, %v1868
        %v2155 = vpack.c.bf16 %v1874, %v1870
        %v2156 = vpack.c.bf16 %v1176, %v1172
        %v2157 = vpack.c.bf16 %v1178, %v1174
        %v2158 = vpack.c.bf16 %v1529, %v1525
        %v2159 = vpack.c.bf16 %v1531, %v1527
        %v2160 = vpack.c.bf16 %v1882, %v1878
        %v2161 = vpack.c.bf16 %v1884, %v1880
        %v2162 = vpack.c.bf16 %v1186, %v1182
        %v2163 = vpack.c.bf16 %v1188, %v1184
        %v2164 = vpack.c.bf16 %v1539, %v1535
        %v2165 = vpack.c.bf16 %v1541, %v1537
        %v2166 = vpack.c.bf16 %v1892, %v1888
        %v2167 = vpack.c.bf16 %v1894, %v1890
        %v2168 = vpack.c.bf16 %v1196, %v1192
        %v2169 = vpack.c.bf16 %v1198, %v1194
        %v2170 = vpack.c.bf16 %v1549, %v1545
        %v2171 = vpack.c.bf16 %v1551, %v1547
        %v2172 = vpack.c.bf16 %v1902, %v1898
        %v2173 = vpack.c.bf16 %v1904, %v1900
        %v2174 = vpack.c.bf16 %v1206, %v1202
        %v2175 = vpack.c.bf16 %v1208, %v1204
        %v2176 = vpack.c.bf16 %v1559, %v1555
        %v2177 = vpack.c.bf16 %v1561, %v1557
        %v2178 = vpack.c.bf16 %v1912, %v1908
        %v2179 = vpack.c.bf16 %v1914, %v1910
        %v2180 = vpack.c.bf16 %v1216, %v1212
        %v2181 = vpack.c.bf16 %v1218, %v1214
        %v2182 = vpack.c.bf16 %v1569, %v1565
        %v2183 = vpack.c.bf16 %v1571, %v1567
        %v2184 = vpack.c.bf16 %v1922, %v1918
        %v2185 = vpack.c.bf16 %v1924, %v1920
        %v2186 = vpack.c.bf16 %v1226, %v1222
        %v2187 = vpack.c.bf16 %v1228, %v1224
        %v2188 = vpack.c.bf16 %v1579, %v1575
        %v2189 = vpack.c.bf16 %v1581, %v1577
        %v2190 = vpack.c.bf16 %v1932, %v1928
        %v2191 = vpack.c.bf16 %v1934, %v1930
        %v2192 = vpack.c.bf16 %v1236, %v1232
        %v2193 = vpack.c.bf16 %v1238, %v1234
        %v2194 = vpack.c.bf16 %v1589, %v1585
        %v2195 = vpack.c.bf16 %v1591, %v1587
        %v2196 = vpack.c.bf16 %v1942, %v1938
        %v2197 = vpack.c.bf16 %v1944, %v1940
        %v2198 = vpack.c.bf16 %v1246, %v1242
        %v2199 = vpack.c.bf16 %v1248, %v1244
        %v2200 = vpack.c.bf16 %v1599, %v1595
        %v2201 = vpack.c.bf16 %v1601, %v1597
        %v2202 = vpack.c.bf16 %v1952, %v1948
        %v2203 = vpack.c.bf16 %v1954, %v1950
        %v2204 = vpack.c.bf16 %v1256, %v1252
        %v2205 = vpack.c.bf16 %v1258, %v1254
        %v2206 = vpack.c.bf16 %v1609, %v1605
        %v2207 = vpack.c.bf16 %v1611, %v1607
        %v2208 = vpack.c.bf16 %v1962, %v1958
        %v2209 = vpack.c.bf16 %v1964, %v1960
        %v2210 = vpack.c.bf16 %v1266, %v1262
        %v2211 = vpack.c.bf16 %v1268, %v1264
        %v2212 = vpack.c.bf16 %v1619, %v1615
        %v2213 = vpack.c.bf16 %v1621, %v1617
        %v2214 = vpack.c.bf16 %v1972, %v1968
        %v2215 = vpack.c.bf16 %v1974, %v1970
        %v2216 = vpack.c.bf16 %v1276, %v1272
        %v2217 = vpack.c.bf16 %v1278, %v1274
        %v2218 = vpack.c.bf16 %v1629, %v1625
        %v2219 = vpack.c.bf16 %v1631, %v1627
        %v2220 = vpack.c.bf16 %v1982, %v1978
        %v2221 = vpack.c.bf16 %v1984, %v1980
        %v2222 = vpack.c.bf16 %v1286, %v1282
        %v2223 = vpack.c.bf16 %v1288, %v1284
        %v2224 = vpack.c.bf16 %v1639, %v1635
        %v2225 = vpack.c.bf16 %v1641, %v1637
        %v2226 = vpack.c.bf16 %v1992, %v1988
        %v2227 = vpack.c.bf16 %v1994, %v1990
        %v2228 = vpack.c.bf16 %v1296, %v1292
        %v2229 = vpack.c.bf16 %v1298, %v1294
        %v2230 = vpack.c.bf16 %v1649, %v1645
        %v2231 = vpack.c.bf16 %v1651, %v1647
        %v2232 = vpack.c.bf16 %v2002, %v1998
        %v2233 = vpack.c.bf16 %v2004, %v2000
        %v2234 = vpack.c.bf16 %v1306, %v1302
        %v2235 = vpack.c.bf16 %v1308, %v1304
        %v2236 = vpack.c.bf16 %v1659, %v1655
        %v2237 = vpack.c.bf16 %v1661, %v1657
        %v2238 = vpack.c.bf16 %v2012, %v2008
        %v2239 = vpack.c.bf16 %v2014, %v2010
        %v2240 = vpack.c.bf16 %v1316, %v1312
        %v2241 = vpack.c.bf16 %v1318, %v1314
        %v2242 = vpack.c.bf16 %v1669, %v1665
        %v2243 = vpack.c.bf16 %v1671, %v1667
        %v2244 = vpack.c.bf16 %v2022, %v2018
        %v2245 = vpack.c.bf16 %v2024, %v2020
        %v2246 = vpack.c.bf16 %v1326, %v1322
        %v2247 = vpack.c.bf16 %v1328, %v1324
        %v2248 = vpack.c.bf16 %v1679, %v1675
        %v2249 = vpack.c.bf16 %v1681, %v1677
        %v2250 = vpack.c.bf16 %v2032, %v2028
        %v2251 = vpack.c.bf16 %v2034, %v2030
        %v2252 = vpack.c.bf16 %v1336, %v1332
        %v2253 = vpack.c.bf16 %v1338, %v1334
        %v2254 = vpack.c.bf16 %v1689, %v1685
        %v2255 = vpack.c.bf16 %v1691, %v1687
        %v2256 = vpack.c.bf16 %v2042, %v2038
        %v2257 = vpack.c.bf16 %v2044, %v2040
        %v2258 = vpack.c.bf16 %v1346, %v1342
        %v2259 = vpack.c.bf16 %v1348, %v1344
        %v2260 = vpack.c.bf16 %v1699, %v1695
        %v2261 = vpack.c.bf16 %v1701, %v1697
        %v2262 = vpack.c.bf16 %v2052, %v2048
        %v2263 = vpack.c.bf16 %v2054, %v2050
        %v2264 = vpack.c.bf16 %v1356, %v1352
        %v2265 = vpack.c.bf16 %v1358, %v1354
        %v2266 = vpack.c.bf16 %v1709, %v1705
        %v2267 = vpack.c.bf16 %v1711, %v1707
        %v2268 = vpack.c.bf16 %v2062, %v2058
        %v2269 = vpack.c.bf16 %v2064, %v2060
        %v2270 = vpack.c.bf16 %v1366, %v1362
        %v2271 = vpack.c.bf16 %v1368, %v1364
        %v2272 = vpack.c.bf16 %v1719, %v1715
        %v2273 = vpack.c.bf16 %v1721, %v1717
        %v2274 = vpack.c.bf16 %v2072, %v2068
        %v2275 = vpack.c.bf16 %v2074, %v2070
        %v2276 = vpack.c.bf16 %v1376, %v1372
        %v2277 = vpack.c.bf16 %v1378, %v1374
        %v2278 = vpack.c.bf16 %v1729, %v1725
        %v2279 = vpack.c.bf16 %v1731, %v1727
        %v2280 = vpack.c.bf16 %v2082, %v2078
        %v2281 = vpack.c.bf16 %v2084, %v2080
        %v2282 = vpack.c.bf16 %v1386, %v1382
        %v2283 = vpack.c.bf16 %v1388, %v1384
        %v2284 = vpack.c.bf16 %v1739, %v1735
        %v2285 = vpack.c.bf16 %v1741, %v1737
        %v2286 = vpack.c.bf16 %v2092, %v2088
        %v2287 = vpack.c.bf16 %v2094, %v2090
        %v2480 = vunpack.c.l.b16 %v2096
        %v2481 = vunpack.c.l.b16 %v2097
        %v2482 = vunpack.c.l.b16 %v2098
        %v2483 = vunpack.c.l.b16 %v2099
        %v2484 = vunpack.c.l.b16 %v2100
        %v2485 = vunpack.c.l.b16 %v2101
        %v2486 = vunpack.c.h.b16 %v2096
        %v2487 = vunpack.c.h.b16 %v2097
        %v2488 = vunpack.c.h.b16 %v2098
        %v2489 = vunpack.c.h.b16 %v2099
        %v2490 = vunpack.c.h.b16 %v2100
        %v2491 = vunpack.c.h.b16 %v2101
        %v2492 = vunpack.c.l.b16 %v2102
        %v2493 = vunpack.c.l.b16 %v2103
        %v2494 = vunpack.c.l.b16 %v2104
        %v2495 = vunpack.c.l.b16 %v2105
        %v2496 = vunpack.c.l.b16 %v2106
        %v2497 = vunpack.c.l.b16 %v2107
        %v2498 = vunpack.c.h.b16 %v2102
        %v2499 = vunpack.c.h.b16 %v2103
        %v2500 = vunpack.c.h.b16 %v2104
        %v2501 = vunpack.c.h.b16 %v2105
        %v2502 = vunpack.c.h.b16 %v2106
        %v2503 = vunpack.c.h.b16 %v2107
        %v2504 = vunpack.c.l.b16 %v2108
        %v2505 = vunpack.c.l.b16 %v2109
        %v2506 = vunpack.c.l.b16 %v2110
        %v2507 = vunpack.c.l.b16 %v2111
        %v2508 = vunpack.c.l.b16 %v2112
        %v2509 = vunpack.c.l.b16 %v2113
        %v2510 = vunpack.c.h.b16 %v2108
        %v2511 = vunpack.c.h.b16 %v2109
        %v2512 = vunpack.c.h.b16 %v2110
        %v2513 = vunpack.c.h.b16 %v2111
        %v2514 = vunpack.c.h.b16 %v2112
        %v2515 = vunpack.c.h.b16 %v2113
        %v2516 = vunpack.c.l.b16 %v2114
        %v2517 = vunpack.c.l.b16 %v2115
        %v2518 = vunpack.c.l.b16 %v2116
        %v2519 = vunpack.c.l.b16 %v2117
        %v2520 = vunpack.c.l.b16 %v2118
        %v2521 = vunpack.c.l.b16 %v2119
        %v2522 = vunpack.c.h.b16 %v2114
        %v2523 = vunpack.c.h.b16 %v2115
        %v2524 = vunpack.c.h.b16 %v2116
        %v2525 = vunpack.c.h.b16 %v2117
        %v2526 = vunpack.c.h.b16 %v2118
        %v2527 = vunpack.c.h.b16 %v2119
        %v2528 = vunpack.c.l.b16 %v2120
        %v2529 = vunpack.c.l.b16 %v2121
        %v2530 = vunpack.c.l.b16 %v2122
        %v2531 = vunpack.c.l.b16 %v2123
        %v2532 = vunpack.c.l.b16 %v2124
        %v2533 = vunpack.c.l.b16 %v2125
        %v2534 = vunpack.c.h.b16 %v2120
        %v2535 = vunpack.c.h.b16 %v2121
        %v2536 = vunpack.c.h.b16 %v2122
        %v2537 = vunpack.c.h.b16 %v2123
        %v2538 = vunpack.c.h.b16 %v2124
        %v2539 = vunpack.c.h.b16 %v2125
        %v2540 = vunpack.c.l.b16 %v2126
        %v2541 = vunpack.c.l.b16 %v2127
        %v2542 = vunpack.c.l.b16 %v2128
        %v2543 = vunpack.c.l.b16 %v2129
        %v2544 = vunpack.c.l.b16 %v2130
        %v2545 = vunpack.c.l.b16 %v2131
        %v2546 = vunpack.c.h.b16 %v2126
        %v2547 = vunpack.c.h.b16 %v2127
        %v2548 = vunpack.c.h.b16 %v2128
        %v2549 = vunpack.c.h.b16 %v2129
        %v2550 = vunpack.c.h.b16 %v2130
        %v2551 = vunpack.c.h.b16 %v2131
        %v2552 = vunpack.c.l.b16 %v2132
        %v2553 = vunpack.c.l.b16 %v2133
        %v2554 = vunpack.c.l.b16 %v2134
        %v2555 = vunpack.c.l.b16 %v2135
        %v2556 = vunpack.c.l.b16 %v2136
        %v2557 = vunpack.c.l.b16 %v2137
        %v2558 = vunpack.c.h.b16 %v2132
        %v2559 = vunpack.c.h.b16 %v2133
        %v2560 = vunpack.c.h.b16 %v2134
        %v2561 = vunpack.c.h.b16 %v2135
        %v2562 = vunpack.c.h.b16 %v2136
        %v2563 = vunpack.c.h.b16 %v2137
        %v2564 = vunpack.c.l.b16 %v2138
        %v2565 = vunpack.c.l.b16 %v2139
        %v2566 = vunpack.c.l.b16 %v2140
        %v2567 = vunpack.c.l.b16 %v2141
        %v2568 = vunpack.c.l.b16 %v2142
        %v2569 = vunpack.c.l.b16 %v2143
        %v2570 = vunpack.c.h.b16 %v2138
        %v2571 = vunpack.c.h.b16 %v2139
        %v2572 = vunpack.c.h.b16 %v2140
        %v2573 = vunpack.c.h.b16 %v2141
        %v2574 = vunpack.c.h.b16 %v2142
        %v2575 = vunpack.c.h.b16 %v2143
        %v2576 = vunpack.c.l.b16 %v2144
        %v2577 = vunpack.c.l.b16 %v2145
        %v2578 = vunpack.c.l.b16 %v2146
        %v2579 = vunpack.c.l.b16 %v2147
        %v2580 = vunpack.c.l.b16 %v2148
        %v2581 = vunpack.c.l.b16 %v2149
        %v2582 = vunpack.c.h.b16 %v2144
        %v2583 = vunpack.c.h.b16 %v2145
        %v2584 = vunpack.c.h.b16 %v2146
        %v2585 = vunpack.c.h.b16 %v2147
        %v2586 = vunpack.c.h.b16 %v2148
        %v2587 = vunpack.c.h.b16 %v2149
        %v2588 = vunpack.c.l.b16 %v2150
        %v2589 = vunpack.c.l.b16 %v2151
        %v2590 = vunpack.c.l.b16 %v2152
        %v2591 = vunpack.c.l.b16 %v2153
        %v2592 = vunpack.c.l.b16 %v2154
        %v2593 = vunpack.c.l.b16 %v2155
        %v2594 = vunpack.c.h.b16 %v2150
        %v2595 = vunpack.c.h.b16 %v2151
        %v2596 = vunpack.c.h.b16 %v2152
        %v2597 = vunpack.c.h.b16 %v2153
        %v2598 = vunpack.c.h.b16 %v2154
        %v2599 = vunpack.c.h.b16 %v2155
        %v2600 = vunpack.c.l.b16 %v2156
        %v2601 = vunpack.c.l.b16 %v2157
        %v2602 = vunpack.c.l.b16 %v2158
        %v2603 = vunpack.c.l.b16 %v2159
        %v2604 = vunpack.c.l.b16 %v2160
        %v2605 = vunpack.c.l.b16 %v2161
        %v2606 = vunpack.c.h.b16 %v2156
        %v2607 = vunpack.c.h.b16 %v2157
        %v2608 = vunpack.c.h.b16 %v2158
        %v2609 = vunpack.c.h.b16 %v2159
        %v2610 = vunpack.c.h.b16 %v2160
        %v2611 = vunpack.c.h.b16 %v2161
        %v2612 = vunpack.c.l.b16 %v2162
        %v2613 = vunpack.c.l.b16 %v2163
        %v2614 = vunpack.c.l.b16 %v2164
        %v2615 = vunpack.c.l.b16 %v2165
        %v2616 = vunpack.c.l.b16 %v2166
        %v2617 = vunpack.c.l.b16 %v2167
        %v2618 = vunpack.c.h.b16 %v2162
        %v2619 = vunpack.c.h.b16 %v2163
        %v2620 = vunpack.c.h.b16 %v2164
        %v2621 = vunpack.c.h.b16 %v2165
        %v2622 = vunpack.c.h.b16 %v2166
        %v2623 = vunpack.c.h.b16 %v2167
        %v2624 = vunpack.c.l.b16 %v2168
        %v2625 = vunpack.c.l.b16 %v2169
        %v2626 = vunpack.c.l.b16 %v2170
        %v2627 = vunpack.c.l.b16 %v2171
        %v2628 = vunpack.c.l.b16 %v2172
        %v2629 = vunpack.c.l.b16 %v2173
        %v2630 = vunpack.c.h.b16 %v2168
        %v2631 = vunpack.c.h.b16 %v2169
        %v2632 = vunpack.c.h.b16 %v2170
        %v2633 = vunpack.c.h.b16 %v2171
        %v2634 = vunpack.c.h.b16 %v2172
        %v2635 = vunpack.c.h.b16 %v2173
        %v2636 = vunpack.c.l.b16 %v2174
        %v2637 = vunpack.c.l.b16 %v2175
        %v2638 = vunpack.c.l.b16 %v2176
        %v2639 = vunpack.c.l.b16 %v2177
        %v2640 = vunpack.c.l.b16 %v2178
        %v2641 = vunpack.c.l.b16 %v2179
        %v2642 = vunpack.c.h.b16 %v2174
        %v2643 = vunpack.c.h.b16 %v2175
        %v2644 = vunpack.c.h.b16 %v2176
        %v2645 = vunpack.c.h.b16 %v2177
        %v2646 = vunpack.c.h.b16 %v2178
        %v2647 = vunpack.c.h.b16 %v2179
        %v2648 = vunpack.c.l.b16 %v2180
        %v2649 = vunpack.c.l.b16 %v2181
        %v2650 = vunpack.c.l.b16 %v2182
        %v2651 = vunpack.c.l.b16 %v2183
        %v2652 = vunpack.c.l.b16 %v2184
        %v2653 = vunpack.c.l.b16 %v2185
        %v2654 = vunpack.c.h.b16 %v2180
        %v2655 = vunpack.c.h.b16 %v2181
        %v2656 = vunpack.c.h.b16 %v2182
        %v2657 = vunpack.c.h.b16 %v2183
        %v2658 = vunpack.c.h.b16 %v2184
        %v2659 = vunpack.c.h.b16 %v2185
        %v2660 = vunpack.c.l.b16 %v2186
        %v2661 = vunpack.c.l.b16 %v2187
        %v2662 = vunpack.c.l.b16 %v2188
        %v2663 = vunpack.c.l.b16 %v2189
        %v2664 = vunpack.c.l.b16 %v2190
        %v2665 = vunpack.c.l.b16 %v2191
        %v2666 = vunpack.c.h.b16 %v2186
        %v2667 = vunpack.c.h.b16 %v2187
        %v2668 = vunpack.c.h.b16 %v2188
        %v2669 = vunpack.c.h.b16 %v2189
        %v2670 = vunpack.c.h.b16 %v2190
        %v2671 = vunpack.c.h.b16 %v2191
        %v2672 = vunpack.c.l.b16 %v2192
        %v2673 = vunpack.c.l.b16 %v2193
        %v2674 = vunpack.c.l.b16 %v2194
        %v2675 = vunpack.c.l.b16 %v2195
        %v2676 = vunpack.c.l.b16 %v2196
        %v2677 = vunpack.c.l.b16 %v2197
        %v2678 = vunpack.c.h.b16 %v2192
        %v2679 = vunpack.c.h.b16 %v2193
        %v2680 = vunpack.c.h.b16 %v2194
        %v2681 = vunpack.c.h.b16 %v2195
        %v2682 = vunpack.c.h.b16 %v2196
        %v2683 = vunpack.c.h.b16 %v2197
        %v2684 = vunpack.c.l.b16 %v2198
        %v2685 = vunpack.c.l.b16 %v2199
        %v2686 = vunpack.c.l.b16 %v2200
        %v2687 = vunpack.c.l.b16 %v2201
        %v2688 = vunpack.c.l.b16 %v2202
        %v2689 = vunpack.c.l.b16 %v2203
        %v2690 = vunpack.c.h.b16 %v2198
        %v2691 = vunpack.c.h.b16 %v2199
        %v2692 = vunpack.c.h.b16 %v2200
        %v2693 = vunpack.c.h.b16 %v2201
        %v2694 = vunpack.c.h.b16 %v2202
        %v2695 = vunpack.c.h.b16 %v2203
        %v2696 = vunpack.c.l.b16 %v2204
        %v2697 = vunpack.c.l.b16 %v2205
        %v2698 = vunpack.c.l.b16 %v2206
        %v2699 = vunpack.c.l.b16 %v2207
        %v2700 = vunpack.c.l.b16 %v2208
        %v2701 = vunpack.c.l.b16 %v2209
        %v2702 = vunpack.c.h.b16 %v2204
        %v2703 = vunpack.c.h.b16 %v2205
        %v2704 = vunpack.c.h.b16 %v2206
        %v2705 = vunpack.c.h.b16 %v2207
        %v2706 = vunpack.c.h.b16 %v2208
        %v2707 = vunpack.c.h.b16 %v2209
        %v2708 = vunpack.c.l.b16 %v2210
        %v2709 = vunpack.c.l.b16 %v2211
        %v2710 = vunpack.c.l.b16 %v2212
        %v2711 = vunpack.c.l.b16 %v2213
        %v2712 = vunpack.c.l.b16 %v2214
        %v2713 = vunpack.c.l.b16 %v2215
        %v2714 = vunpack.c.h.b16 %v2210
        %v2715 = vunpack.c.h.b16 %v2211
        %v2716 = vunpack.c.h.b16 %v2212
        %v2717 = vunpack.c.h.b16 %v2213
        %v2718 = vunpack.c.h.b16 %v2214
        %v2719 = vunpack.c.h.b16 %v2215
        %v2720 = vunpack.c.l.b16 %v2216
        %v2721 = vunpack.c.l.b16 %v2217
        %v2722 = vunpack.c.l.b16 %v2218
        %v2723 = vunpack.c.l.b16 %v2219
        %v2724 = vunpack.c.l.b16 %v2220
        %v2725 = vunpack.c.l.b16 %v2221
        %v2726 = vunpack.c.h.b16 %v2216
        %v2727 = vunpack.c.h.b16 %v2217
        %v2728 = vunpack.c.h.b16 %v2218
        %v2729 = vunpack.c.h.b16 %v2219
        %v2730 = vunpack.c.h.b16 %v2220
        %v2731 = vunpack.c.h.b16 %v2221
        %v2732 = vunpack.c.l.b16 %v2222
        %v2733 = vunpack.c.l.b16 %v2223
        %v2734 = vunpack.c.l.b16 %v2224
        %v2735 = vunpack.c.l.b16 %v2225
        %v2736 = vunpack.c.l.b16 %v2226
        %v2737 = vunpack.c.l.b16 %v2227
        %v2738 = vunpack.c.h.b16 %v2222
        %v2739 = vunpack.c.h.b16 %v2223
        %v2740 = vunpack.c.h.b16 %v2224
        %v2741 = vunpack.c.h.b16 %v2225
        %v2742 = vunpack.c.h.b16 %v2226
        %v2743 = vunpack.c.h.b16 %v2227
        %v2744 = vunpack.c.l.b16 %v2228
        %v2745 = vunpack.c.l.b16 %v2229
        %v2746 = vunpack.c.l.b16 %v2230
        %v2747 = vunpack.c.l.b16 %v2231
        %v2748 = vunpack.c.l.b16 %v2232
        %v2749 = vunpack.c.l.b16 %v2233
        %v2750 = vunpack.c.h.b16 %v2228
        %v2751 = vunpack.c.h.b16 %v2229
        %v2752 = vunpack.c.h.b16 %v2230
        %v2753 = vunpack.c.h.b16 %v2231
        %v2754 = vunpack.c.h.b16 %v2232
        %v2755 = vunpack.c.h.b16 %v2233
        %v2756 = vunpack.c.l.b16 %v2234
        %v2757 = vunpack.c.l.b16 %v2235
        %v2758 = vunpack.c.l.b16 %v2236
        %v2759 = vunpack.c.l.b16 %v2237
        %v2760 = vunpack.c.l.b16 %v2238
        %v2761 = vunpack.c.l.b16 %v2239
        %v2762 = vunpack.c.h.b16 %v2234
        %v2763 = vunpack.c.h.b16 %v2235
        %v2764 = vunpack.c.h.b16 %v2236
        %v2765 = vunpack.c.h.b16 %v2237
        %v2766 = vunpack.c.h.b16 %v2238
        %v2767 = vunpack.c.h.b16 %v2239
        %v2768 = vunpack.c.l.b16 %v2240
        %v2769 = vunpack.c.l.b16 %v2241
        %v2770 = vunpack.c.l.b16 %v2242
        %v2771 = vunpack.c.l.b16 %v2243
        %v2772 = vunpack.c.l.b16 %v2244
        %v2773 = vunpack.c.l.b16 %v2245
        %v2774 = vunpack.c.h.b16 %v2240
        %v2775 = vunpack.c.h.b16 %v2241
        %v2776 = vunpack.c.h.b16 %v2242
        %v2777 = vunpack.c.h.b16 %v2243
        %v2778 = vunpack.c.h.b16 %v2244
        %v2779 = vunpack.c.h.b16 %v2245
        %v2780 = vunpack.c.l.b16 %v2246
        %v2781 = vunpack.c.l.b16 %v2247
        %v2782 = vunpack.c.l.b16 %v2248
        %v2783 = vunpack.c.l.b16 %v2249
        %v2784 = vunpack.c.l.b16 %v2250
        %v2785 = vunpack.c.l.b16 %v2251
        %v2786 = vunpack.c.h.b16 %v2246
        %v2787 = vunpack.c.h.b16 %v2247
        %v2788 = vunpack.c.h.b16 %v2248
        %v2789 = vunpack.c.h.b16 %v2249
        %v2790 = vunpack.c.h.b16 %v2250
        %v2791 = vunpack.c.h.b16 %v2251
        %v2792 = vunpack.c.l.b16 %v2252
        %v2793 = vunpack.c.l.b16 %v2253
        %v2794 = vunpack.c.l.b16 %v2254
        %v2795 = vunpack.c.l.b16 %v2255
        %v2796 = vunpack.c.l.b16 %v2256
        %v2797 = vunpack.c.l.b16 %v2257
        %v2798 = vunpack.c.h.b16 %v2252
        %v2799 = vunpack.c.h.b16 %v2253
        %v2800 = vunpack.c.h.b16 %v2254
        %v2801 = vunpack.c.h.b16 %v2255
        %v2802 = vunpack.c.h.b16 %v2256
        %v2803 = vunpack.c.h.b16 %v2257
        %v2804 = vunpack.c.l.b16 %v2258
        %v2805 = vunpack.c.l.b16 %v2259
        %v2806 = vunpack.c.l.b16 %v2260
        %v2807 = vunpack.c.l.b16 %v2261
        %v2808 = vunpack.c.l.b16 %v2262
        %v2809 = vunpack.c.l.b16 %v2263
        %v2810 = vunpack.c.h.b16 %v2258
        %v2811 = vunpack.c.h.b16 %v2259
        %v2812 = vunpack.c.h.b16 %v2260
        %v2813 = vunpack.c.h.b16 %v2261
        %v2814 = vunpack.c.h.b16 %v2262
        %v2815 = vunpack.c.h.b16 %v2263
        %v2816 = vunpack.c.l.b16 %v2264
        %v2817 = vunpack.c.l.b16 %v2265
        %v2818 = vunpack.c.l.b16 %v2266
        %v2819 = vunpack.c.l.b16 %v2267
        %v2820 = vunpack.c.l.b16 %v2268
        %v2821 = vunpack.c.l.b16 %v2269
        %v2822 = vunpack.c.h.b16 %v2264
        %v2823 = vunpack.c.h.b16 %v2265
        %v2824 = vunpack.c.h.b16 %v2266
        %v2825 = vunpack.c.h.b16 %v2267
        %v2826 = vunpack.c.h.b16 %v2268
        %v2827 = vunpack.c.h.b16 %v2269
        %v2828 = vunpack.c.l.b16 %v2270
        %v2829 = vunpack.c.l.b16 %v2271
        %v2830 = vunpack.c.l.b16 %v2272
        %v2831 = vunpack.c.l.b16 %v2273
        %v2832 = vunpack.c.l.b16 %v2274
        %v2833 = vunpack.c.l.b16 %v2275
        %v2834 = vunpack.c.h.b16 %v2270
        %v2835 = vunpack.c.h.b16 %v2271
        %v2836 = vunpack.c.h.b16 %v2272
        %v2837 = vunpack.c.h.b16 %v2273
        %v2838 = vunpack.c.h.b16 %v2274
        %v2839 = vunpack.c.h.b16 %v2275
        %v2840 = vunpack.c.l.b16 %v2276
        %v2841 = vunpack.c.l.b16 %v2277
        %v2842 = vunpack.c.l.b16 %v2278
        %v2843 = vunpack.c.l.b16 %v2279
        %v2844 = vunpack.c.l.b16 %v2280
        %v2845 = vunpack.c.l.b16 %v2281
        %v2846 = vunpack.c.h.b16 %v2276
        %v2847 = vunpack.c.h.b16 %v2277
        %v2848 = vunpack.c.h.b16 %v2278
        %v2849 = vunpack.c.h.b16 %v2279
        %v2850 = vunpack.c.h.b16 %v2280
        %v2851 = vunpack.c.h.b16 %v2281
        %v2852 = vunpack.c.l.b16 %v2282
        %v2853 = vunpack.c.l.b16 %v2283
        %v2854 = vunpack.c.l.b16 %v2284
        %v2855 = vunpack.c.l.b16 %v2285
        %v2856 = vunpack.c.l.b16 %v2286
        %v2857 = vunpack.c.l.b16 %v2287
        %v2858 = vunpack.c.h.b16 %v2282
        %v2859 = vunpack.c.h.b16 %v2283
        %v2860 = vunpack.c.h.b16 %v2284
        %v2861 = vunpack.c.h.b16 %v2285
        %v2862 = vunpack.c.h.b16 %v2286
        %v2863 = vunpack.c.h.b16 %v2287
        %v2864 = vpack.c.b16 %v2481, %v2480
        %v2865 = vpack.c.b16 %v2483, %v2482
        %v2866 = vpack.c.b16 %v2485, %v2484
        %v2867 = vpack.c.b16 %v2487, %v2486
        %v2868 = vpack.c.b16 %v2489, %v2488
        %v2869 = vpack.c.b16 %v2491, %v2490
        %v2870 = vpack.c.b16 %v2493, %v2492
        %v2871 = vpack.c.b16 %v2495, %v2494
        %v2872 = vpack.c.b16 %v2497, %v2496
        %v2873 = vpack.c.b16 %v2499, %v2498
        %v2874 = vpack.c.b16 %v2501, %v2500
        %v2875 = vpack.c.b16 %v2503, %v2502
        %v2876 = vpack.c.b16 %v2505, %v2504
        %v2877 = vpack.c.b16 %v2507, %v2506
        %v2878 = vpack.c.b16 %v2509, %v2508
        %v2879 = vpack.c.b16 %v2511, %v2510
        %v2880 = vpack.c.b16 %v2513, %v2512
        %v2881 = vpack.c.b16 %v2515, %v2514
        %v2882 = vpack.c.b16 %v2517, %v2516
        %v2883 = vpack.c.b16 %v2519, %v2518
        %v2884 = vpack.c.b16 %v2521, %v2520
        %v2885 = vpack.c.b16 %v2523, %v2522
        %v2886 = vpack.c.b16 %v2525, %v2524
        %v2887 = vpack.c.b16 %v2527, %v2526
        %v2888 = vpack.c.b16 %v2529, %v2528
        %v2889 = vpack.c.b16 %v2531, %v2530
        %v2890 = vpack.c.b16 %v2533, %v2532
        %v2891 = vpack.c.b16 %v2535, %v2534
        %v2892 = vpack.c.b16 %v2537, %v2536
        %v2893 = vpack.c.b16 %v2539, %v2538
        %v2894 = vpack.c.b16 %v2541, %v2540
        %v2895 = vpack.c.b16 %v2543, %v2542
        %v2896 = vpack.c.b16 %v2545, %v2544
        %v2897 = vpack.c.b16 %v2547, %v2546
        %v2898 = vpack.c.b16 %v2549, %v2548
        %v2899 = vpack.c.b16 %v2551, %v2550
        %v2900 = vpack.c.b16 %v2553, %v2552
        %v2901 = vpack.c.b16 %v2555, %v2554
        %v2902 = vpack.c.b16 %v2557, %v2556
        %v2903 = vpack.c.b16 %v2559, %v2558
        %v2904 = vpack.c.b16 %v2561, %v2560
        %v2905 = vpack.c.b16 %v2563, %v2562
        %v2906 = vpack.c.b16 %v2565, %v2564
        %v2907 = vpack.c.b16 %v2567, %v2566
        %v2908 = vpack.c.b16 %v2569, %v2568
        %v2909 = vpack.c.b16 %v2571, %v2570
        %v2910 = vpack.c.b16 %v2573, %v2572
        %v2911 = vpack.c.b16 %v2575, %v2574
        %v2912 = vpack.c.b16 %v2577, %v2576
        %v2913 = vpack.c.b16 %v2579, %v2578
        %v2914 = vpack.c.b16 %v2581, %v2580
        %v2915 = vpack.c.b16 %v2583, %v2582
        %v2916 = vpack.c.b16 %v2585, %v2584
        %v2917 = vpack.c.b16 %v2587, %v2586
        %v2918 = vpack.c.b16 %v2589, %v2588
        %v2919 = vpack.c.b16 %v2591, %v2590
        %v2920 = vpack.c.b16 %v2593, %v2592
        %v2921 = vpack.c.b16 %v2595, %v2594
        %v2922 = vpack.c.b16 %v2597, %v2596
        %v2923 = vpack.c.b16 %v2599, %v2598
        %v2924 = vpack.c.b16 %v2601, %v2600
        %v2925 = vpack.c.b16 %v2603, %v2602
        %v2926 = vpack.c.b16 %v2605, %v2604
        %v2927 = vpack.c.b16 %v2607, %v2606
        %v2928 = vpack.c.b16 %v2609, %v2608
        %v2929 = vpack.c.b16 %v2611, %v2610
        %v2930 = vpack.c.b16 %v2613, %v2612
        %v2931 = vpack.c.b16 %v2615, %v2614
        %v2932 = vpack.c.b16 %v2617, %v2616
        %v2933 = vpack.c.b16 %v2619, %v2618
        %v2934 = vpack.c.b16 %v2621, %v2620
        %v2935 = vpack.c.b16 %v2623, %v2622
        %v2936 = vpack.c.b16 %v2625, %v2624
        %v2937 = vpack.c.b16 %v2627, %v2626
        %v2938 = vpack.c.b16 %v2629, %v2628
        %v2939 = vpack.c.b16 %v2631, %v2630
        %v2940 = vpack.c.b16 %v2633, %v2632
        %v2941 = vpack.c.b16 %v2635, %v2634
        %v2942 = vpack.c.b16 %v2637, %v2636
        %v2943 = vpack.c.b16 %v2639, %v2638
        %v2944 = vpack.c.b16 %v2641, %v2640
        %v2945 = vpack.c.b16 %v2643, %v2642
        %v2946 = vpack.c.b16 %v2645, %v2644
        %v2947 = vpack.c.b16 %v2647, %v2646
        %v2948 = vpack.c.b16 %v2649, %v2648
        %v2949 = vpack.c.b16 %v2651, %v2650
        %v2950 = vpack.c.b16 %v2653, %v2652
        %v2951 = vpack.c.b16 %v2655, %v2654
        %v2952 = vpack.c.b16 %v2657, %v2656
        %v2953 = vpack.c.b16 %v2659, %v2658
        %v2954 = vpack.c.b16 %v2661, %v2660
        %v2955 = vpack.c.b16 %v2663, %v2662
        %v2956 = vpack.c.b16 %v2665, %v2664
        %v2957 = vpack.c.b16 %v2667, %v2666
        %v2958 = vpack.c.b16 %v2669, %v2668
        %v2959 = vpack.c.b16 %v2671, %v2670
        %v2960 = vpack.c.b16 %v2673, %v2672
        %v2961 = vpack.c.b16 %v2675, %v2674
        %v2962 = vpack.c.b16 %v2677, %v2676
        %v2963 = vpack.c.b16 %v2679, %v2678
        %v2964 = vpack.c.b16 %v2681, %v2680
        %v2965 = vpack.c.b16 %v2683, %v2682
        %v2966 = vpack.c.b16 %v2685, %v2684
        %v2967 = vpack.c.b16 %v2687, %v2686
        %v2968 = vpack.c.b16 %v2689, %v2688
        %v2969 = vpack.c.b16 %v2691, %v2690
        %v2970 = vpack.c.b16 %v2693, %v2692
        %v2971 = vpack.c.b16 %v2695, %v2694
        %v2972 = vpack.c.b16 %v2697, %v2696
        %v2973 = vpack.c.b16 %v2699, %v2698
        %v2974 = vpack.c.b16 %v2701, %v2700
        %v2975 = vpack.c.b16 %v2703, %v2702
        %v2976 = vpack.c.b16 %v2705, %v2704
        %v2977 = vpack.c.b16 %v2707, %v2706
        %v2978 = vpack.c.b16 %v2709, %v2708
        %v2979 = vpack.c.b16 %v2711, %v2710
        %v2980 = vpack.c.b16 %v2713, %v2712
        %v2981 = vpack.c.b16 %v2715, %v2714
        %v2982 = vpack.c.b16 %v2717, %v2716
        %v2983 = vpack.c.b16 %v2719, %v2718
        %v2984 = vpack.c.b16 %v2721, %v2720
        %v2985 = vpack.c.b16 %v2723, %v2722
        %v2986 = vpack.c.b16 %v2725, %v2724
        %v2987 = vpack.c.b16 %v2727, %v2726
        %v2988 = vpack.c.b16 %v2729, %v2728
        %v2989 = vpack.c.b16 %v2731, %v2730
        %v2990 = vpack.c.b16 %v2733, %v2732
        %v2991 = vpack.c.b16 %v2735, %v2734
        %v2992 = vpack.c.b16 %v2737, %v2736
        %v2993 = vpack.c.b16 %v2739, %v2738
        %v2994 = vpack.c.b16 %v2741, %v2740
        %v2995 = vpack.c.b16 %v2743, %v2742
        %v2996 = vpack.c.b16 %v2745, %v2744
        %v2997 = vpack.c.b16 %v2747, %v2746
        %v2998 = vpack.c.b16 %v2749, %v2748
        %v2999 = vpack.c.b16 %v2751, %v2750
        %v3000 = vpack.c.b16 %v2753, %v2752
        %v3001 = vpack.c.b16 %v2755, %v2754
        %v3002 = vpack.c.b16 %v2757, %v2756
        %v3003 = vpack.c.b16 %v2759, %v2758
        %v3004 = vpack.c.b16 %v2761, %v2760
        %v3005 = vpack.c.b16 %v2763, %v2762
        %v3006 = vpack.c.b16 %v2765, %v2764
        %v3007 = vpack.c.b16 %v2767, %v2766
        %v3008 = vpack.c.b16 %v2769, %v2768
        %v3009 = vpack.c.b16 %v2771, %v2770
        %v3010 = vpack.c.b16 %v2773, %v2772
        %v3011 = vpack.c.b16 %v2775, %v2774
        %v3012 = vpack.c.b16 %v2777, %v2776
        %v3013 = vpack.c.b16 %v2779, %v2778
        %v3014 = vpack.c.b16 %v2781, %v2780
        %v3015 = vpack.c.b16 %v2783, %v2782
        %v3016 = vpack.c.b16 %v2785, %v2784
        %v3017 = vpack.c.b16 %v2787, %v2786
        %v3018 = vpack.c.b16 %v2789, %v2788
        %v3019 = vpack.c.b16 %v2791, %v2790
        %v3020 = vpack.c.b16 %v2793, %v2792
        %v3021 = vpack.c.b16 %v2795, %v2794
        %v3022 = vpack.c.b16 %v2797, %v2796
        %v3023 = vpack.c.b16 %v2799, %v2798
        %v3024 = vpack.c.b16 %v2801, %v2800
        %v3025 = vpack.c.b16 %v2803, %v2802
        %v3026 = vpack.c.b16 %v2805, %v2804
        %v3027 = vpack.c.b16 %v2807, %v2806
        %v3028 = vpack.c.b16 %v2809, %v2808
        %v3029 = vpack.c.b16 %v2811, %v2810
        %v3030 = vpack.c.b16 %v2813, %v2812
        %v3031 = vpack.c.b16 %v2815, %v2814
        %v3032 = vpack.c.b16 %v2817, %v2816
        %v3033 = vpack.c.b16 %v2819, %v2818
        %v3034 = vpack.c.b16 %v2821, %v2820
        %v3035 = vpack.c.b16 %v2823, %v2822
        %v3036 = vpack.c.b16 %v2825, %v2824
        %v3037 = vpack.c.b16 %v2827, %v2826
        %v3038 = vpack.c.b16 %v2829, %v2828
        %v3039 = vpack.c.b16 %v2831, %v2830
        %v3040 = vpack.c.b16 %v2833, %v2832
        %v3041 = vpack.c.b16 %v2835, %v2834
        %v3042 = vpack.c.b16 %v2837, %v2836
        %v3043 = vpack.c.b16 %v2839, %v2838
        %v3044 = vpack.c.b16 %v2841, %v2840
        %v3045 = vpack.c.b16 %v2843, %v2842
        %v3046 = vpack.c.b16 %v2845, %v2844
        %v3047 = vpack.c.b16 %v2847, %v2846
        %v3048 = vpack.c.b16 %v2849, %v2848
        %v3049 = vpack.c.b16 %v2851, %v2850
        %v3050 = vpack.c.b16 %v2853, %v2852
        %v3051 = vpack.c.b16 %v2855, %v2854
        %v3052 = vpack.c.b16 %v2857, %v2856
        %v3053 = vpack.c.b16 %v2859, %v2858
        %v3054 = vpack.c.b16 %v2861, %v2860
        %v3055 = vpack.c.b16 %v2863, %v2862
        %3248 = vst [vmem:[%s234] sm:$0xff] %v2864
        %3249 = vst [vmem:[%s234 + $0x8] sm:$0xff] %v2865
        %3250 = vst [vmem:[%s234 + $0x10] sm:$0xff] %v2866
        %3251 = vst [vmem:[%s234 + $0x18] sm:$0xff] %v2867
        %3252 = vst [vmem:[%s234 + $0x20] sm:$0xff] %v2868
        %3253 = vst [vmem:[%s234 + $0x28] sm:$0xff] %v2869
        %3254 = vst [vmem:[%s234 + $0x30] sm:$0xff] %v2870
        %3255 = vst [vmem:[%s234 + $0x38] sm:$0xff] %v2871
        %3256 = vst [vmem:[%s234 + $0x40] sm:$0xff] %v2872
        %3257 = vst [vmem:[%s234 + $0x48] sm:$0xff] %v2873
        %3258 = vst [vmem:[%s234 + $0x50] sm:$0xff] %v2874
        %3259 = vst [vmem:[%s234 + $0x58] sm:$0xff] %v2875
        %3260 = vst [vmem:[%s234 + $0x60] sm:$0xff] %v2876
        %3261 = vst [vmem:[%s234 + $0x68] sm:$0xff] %v2877
        %3262 = vst [vmem:[%s234 + $0x70] sm:$0xff] %v2878
        %3263 = vst [vmem:[%s234 + $0x78] sm:$0xff] %v2879
        %3264 = vst [vmem:[%s234 + $0x80] sm:$0xff] %v2880
        %3265 = vst [vmem:[%s234 + $0x88] sm:$0xff] %v2881
        %3266 = vst [vmem:[%s234 + $0x90] sm:$0xff] %v2882
        %3267 = vst [vmem:[%s234 + $0x98] sm:$0xff] %v2883
        %3268 = vst [vmem:[%s234 + $0xa0] sm:$0xff] %v2884
        %3269 = vst [vmem:[%s234 + $0xa8] sm:$0xff] %v2885
        %3270 = vst [vmem:[%s234 + $0xb0] sm:$0xff] %v2886
        %3271 = vst [vmem:[%s234 + $0xb8] sm:$0xff] %v2887
        %3272 = vst [vmem:[%s234 + $0xc0] sm:$0xff] %v2888
        %3273 = vst [vmem:[%s234 + $0xc8] sm:$0xff] %v2889
        %3274 = vst [vmem:[%s234 + $0xd0] sm:$0xff] %v2890
        %3275 = vst [vmem:[%s234 + $0xd8] sm:$0xff] %v2891
        %3276 = vst [vmem:[%s234 + $0xe0] sm:$0xff] %v2892
        %3277 = vst [vmem:[%s234 + $0xe8] sm:$0xff] %v2893
        %3278 = vst [vmem:[%s234 + $0xf0] sm:$0xff] %v2894
        %3279 = vst [vmem:[%s234 + $0xf8] sm:$0xff] %v2895
        %3280 = vst [vmem:[%s234 + $0x100] sm:$0xff] %v2896
        %3281 = vst [vmem:[%s234 + $0x108] sm:$0xff] %v2897
        %3282 = vst [vmem:[%s234 + $0x110] sm:$0xff] %v2898
        %3283 = vst [vmem:[%s234 + $0x118] sm:$0xff] %v2899
        %3284 = vst [vmem:[%s234 + $0x120] sm:$0xff] %v2900
        %3285 = vst [vmem:[%s234 + $0x128] sm:$0xff] %v2901
        %3286 = vst [vmem:[%s234 + $0x130] sm:$0xff] %v2902
        %3287 = vst [vmem:[%s234 + $0x138] sm:$0xff] %v2903
        %3288 = vst [vmem:[%s234 + $0x140] sm:$0xff] %v2904
        %3289 = vst [vmem:[%s234 + $0x148] sm:$0xff] %v2905
        %3290 = vst [vmem:[%s234 + $0x150] sm:$0xff] %v2906
        %3291 = vst [vmem:[%s234 + $0x158] sm:$0xff] %v2907
        %3292 = vst [vmem:[%s234 + $0x160] sm:$0xff] %v2908
        %3293 = vst [vmem:[%s234 + $0x168] sm:$0xff] %v2909
        %3294 = vst [vmem:[%s234 + $0x170] sm:$0xff] %v2910
        %3295 = vst [vmem:[%s234 + $0x178] sm:$0xff] %v2911
        %3296 = vst [vmem:[%s234 + $0x180] sm:$0xff] %v2912
        %3297 = vst [vmem:[%s234 + $0x188] sm:$0xff] %v2913
        %3298 = vst [vmem:[%s234 + $0x190] sm:$0xff] %v2914
        %3299 = vst [vmem:[%s234 + $0x198] sm:$0xff] %v2915
        %3300 = vst [vmem:[%s234 + $0x1a0] sm:$0xff] %v2916
        %3301 = vst [vmem:[%s234 + $0x1a8] sm:$0xff] %v2917
        %3302 = vst [vmem:[%s234 + $0x1b0] sm:$0xff] %v2918
        %3303 = vst [vmem:[%s234 + $0x1b8] sm:$0xff] %v2919
        %3304 = vst [vmem:[%s234 + $0x1c0] sm:$0xff] %v2920
        %3305 = vst [vmem:[%s234 + $0x1c8] sm:$0xff] %v2921
        %3306 = vst [vmem:[%s234 + $0x1d0] sm:$0xff] %v2922
        %3307 = vst [vmem:[%s234 + $0x1d8] sm:$0xff] %v2923
        %3308 = vst [vmem:[%s234 + $0x1e0] sm:$0xff] %v2924
        %3309 = vst [vmem:[%s234 + $0x1e8] sm:$0xff] %v2925
        %3310 = vst [vmem:[%s234 + $0x1f0] sm:$0xff] %v2926
        %3311 = vst [vmem:[%s234 + $0x1f8] sm:$0xff] %v2927
        %3312 = vst [vmem:[%s234 + $0x200] sm:$0xff] %v2928
        %3313 = vst [vmem:[%s234 + $0x208] sm:$0xff] %v2929
        %3314 = vst [vmem:[%s234 + $0x210] sm:$0xff] %v2930
        %3315 = vst [vmem:[%s234 + $0x218] sm:$0xff] %v2931
        %3316 = vst [vmem:[%s234 + $0x220] sm:$0xff] %v2932
        %3317 = vst [vmem:[%s234 + $0x228] sm:$0xff] %v2933
        %3318 = vst [vmem:[%s234 + $0x230] sm:$0xff] %v2934
        %3319 = vst [vmem:[%s234 + $0x238] sm:$0xff] %v2935
        %3320 = vst [vmem:[%s234 + $0x240] sm:$0xff] %v2936
        %3321 = vst [vmem:[%s234 + $0x248] sm:$0xff] %v2937
        %3322 = vst [vmem:[%s234 + $0x250] sm:$0xff] %v2938
        %3323 = vst [vmem:[%s234 + $0x258] sm:$0xff] %v2939
        %3324 = vst [vmem:[%s234 + $0x260] sm:$0xff] %v2940
        %3325 = vst [vmem:[%s234 + $0x268] sm:$0xff] %v2941
        %3326 = vst [vmem:[%s234 + $0x270] sm:$0xff] %v2942
        %3327 = vst [vmem:[%s234 + $0x278] sm:$0xff] %v2943
        %3328 = vst [vmem:[%s234 + $0x280] sm:$0xff] %v2944
        %3329 = vst [vmem:[%s234 + $0x288] sm:$0xff] %v2945
        %3330 = vst [vmem:[%s234 + $0x290] sm:$0xff] %v2946
        %3331 = vst [vmem:[%s234 + $0x298] sm:$0xff] %v2947
        %3332 = vst [vmem:[%s234 + $0x2a0] sm:$0xff] %v2948
        %3333 = vst [vmem:[%s234 + $0x2a8] sm:$0xff] %v2949
        %3334 = vst [vmem:[%s234 + $0x2b0] sm:$0xff] %v2950
        %3335 = vst [vmem:[%s234 + $0x2b8] sm:$0xff] %v2951
        %3336 = vst [vmem:[%s234 + $0x2c0] sm:$0xff] %v2952
        %3337 = vst [vmem:[%s234 + $0x2c8] sm:$0xff] %v2953
        %3338 = vst [vmem:[%s234 + $0x2d0] sm:$0xff] %v2954
        %3339 = vst [vmem:[%s234 + $0x2d8] sm:$0xff] %v2955
        %3340 = vst [vmem:[%s234 + $0x2e0] sm:$0xff] %v2956
        %3341 = vst [vmem:[%s234 + $0x2e8] sm:$0xff] %v2957
        %3342 = vst [vmem:[%s234 + $0x2f0] sm:$0xff] %v2958
        %3343 = vst [vmem:[%s234 + $0x2f8] sm:$0xff] %v2959
        %3344 = vst [vmem:[%s234 + $0x300] sm:$0xff] %v2960
        %3345 = vst [vmem:[%s234 + $0x308] sm:$0xff] %v2961
        %3346 = vst [vmem:[%s234 + $0x310] sm:$0xff] %v2962
        %3347 = vst [vmem:[%s234 + $0x318] sm:$0xff] %v2963
        %3348 = vst [vmem:[%s234 + $0x320] sm:$0xff] %v2964
        %3349 = vst [vmem:[%s234 + $0x328] sm:$0xff] %v2965
        %3350 = vst [vmem:[%s234 + $0x330] sm:$0xff] %v2966
        %3351 = vst [vmem:[%s234 + $0x338] sm:$0xff] %v2967
        %3352 = vst [vmem:[%s234 + $0x340] sm:$0xff] %v2968
        %3353 = vst [vmem:[%s234 + $0x348] sm:$0xff] %v2969
        %3354 = vst [vmem:[%s234 + $0x350] sm:$0xff] %v2970
        %3355 = vst [vmem:[%s234 + $0x358] sm:$0xff] %v2971
        %3356 = vst [vmem:[%s234 + $0x360] sm:$0xff] %v2972
        %3357 = vst [vmem:[%s234 + $0x368] sm:$0xff] %v2973
        %3358 = vst [vmem:[%s234 + $0x370] sm:$0xff] %v2974
        %3359 = vst [vmem:[%s234 + $0x378] sm:$0xff] %v2975
        %3360 = vst [vmem:[%s234 + $0x380] sm:$0xff] %v2976
        %3361 = vst [vmem:[%s234 + $0x388] sm:$0xff] %v2977
        %3362 = vst [vmem:[%s234 + $0x390] sm:$0xff] %v2978
        %3363 = vst [vmem:[%s234 + $0x398] sm:$0xff] %v2979
        %3364 = vst [vmem:[%s234 + $0x3a0] sm:$0xff] %v2980
        %3365 = vst [vmem:[%s234 + $0x3a8] sm:$0xff] %v2981
        %3366 = vst [vmem:[%s234 + $0x3b0] sm:$0xff] %v2982
        %3367 = vst [vmem:[%s234 + $0x3b8] sm:$0xff] %v2983
        %3368 = vst [vmem:[%s234 + $0x3c0] sm:$0xff] %v2984
        %3369 = vst [vmem:[%s234 + $0x3c8] sm:$0xff] %v2985
        %3370 = vst [vmem:[%s234 + $0x3d0] sm:$0xff] %v2986
        %3371 = vst [vmem:[%s234 + $0x3d8] sm:$0xff] %v2987
        %3372 = vst [vmem:[%s234 + $0x3e0] sm:$0xff] %v2988
        %3373 = vst [vmem:[%s234 + $0x3e8] sm:$0xff] %v2989
        %3374 = vst [vmem:[%s234 + $0x3f0] sm:$0xff] %v2990
        %3375 = vst [vmem:[%s234 + $0x3f8] sm:$0xff] %v2991
        %3376 = vst [vmem:[%s234 + $0x400] sm:$0xff] %v2992
        %3377 = vst [vmem:[%s234 + $0x408] sm:$0xff] %v2993
        %3378 = vst [vmem:[%s234 + $0x410] sm:$0xff] %v2994
        %3379 = vst [vmem:[%s234 + $0x418] sm:$0xff] %v2995
        %3380 = vst [vmem:[%s234 + $0x420] sm:$0xff] %v2996
        %3381 = vst [vmem:[%s234 + $0x428] sm:$0xff] %v2997
        %3382 = vst [vmem:[%s234 + $0x430] sm:$0xff] %v2998
        %3383 = vst [vmem:[%s234 + $0x438] sm:$0xff] %v2999
        %3384 = vst [vmem:[%s234 + $0x440] sm:$0xff] %v3000
        %3385 = vst [vmem:[%s234 + $0x448] sm:$0xff] %v3001
        %3386 = vst [vmem:[%s234 + $0x450] sm:$0xff] %v3002
        %3387 = vst [vmem:[%s234 + $0x458] sm:$0xff] %v3003
        %3388 = vst [vmem:[%s234 + $0x460] sm:$0xff] %v3004
        %3389 = vst [vmem:[%s234 + $0x468] sm:$0xff] %v3005
        %3390 = vst [vmem:[%s234 + $0x470] sm:$0xff] %v3006
        %3391 = vst [vmem:[%s234 + $0x478] sm:$0xff] %v3007
        %3392 = vst [vmem:[%s234 + $0x480] sm:$0xff] %v3008
        %3393 = vst [vmem:[%s234 + $0x488] sm:$0xff] %v3009
        %3394 = vst [vmem:[%s234 + $0x490] sm:$0xff] %v3010
        %3395 = vst [vmem:[%s234 + $0x498] sm:$0xff] %v3011
        %3396 = vst [vmem:[%s234 + $0x4a0] sm:$0xff] %v3012
        %3397 = vst [vmem:[%s234 + $0x4a8] sm:$0xff] %v3013
        %3398 = vst [vmem:[%s234 + $0x4b0] sm:$0xff] %v3014
        %3399 = vst [vmem:[%s234 + $0x4b8] sm:$0xff] %v3015
        %3400 = vst [vmem:[%s234 + $0x4c0] sm:$0xff] %v3016
        %3401 = vst [vmem:[%s234 + $0x4c8] sm:$0xff] %v3017
        %3402 = vst [vmem:[%s234 + $0x4d0] sm:$0xff] %v3018
        %3403 = vst [vmem:[%s234 + $0x4d8] sm:$0xff] %v3019
        %3404 = vst [vmem:[%s234 + $0x4e0] sm:$0xff] %v3020
        %3405 = vst [vmem:[%s234 + $0x4e8] sm:$0xff] %v3021
        %3406 = vst [vmem:[%s234 + $0x4f0] sm:$0xff] %v3022
        %3407 = vst [vmem:[%s234 + $0x4f8] sm:$0xff] %v3023
        %3408 = vst [vmem:[%s234 + $0x500] sm:$0xff] %v3024
        %3409 = vst [vmem:[%s234 + $0x508] sm:$0xff] %v3025
        %3410 = vst [vmem:[%s234 + $0x510] sm:$0xff] %v3026
        %3411 = vst [vmem:[%s234 + $0x518] sm:$0xff] %v3027
        %3412 = vst [vmem:[%s234 + $0x520] sm:$0xff] %v3028
        %3413 = vst [vmem:[%s234 + $0x528] sm:$0xff] %v3029
        %3414 = vst [vmem:[%s234 + $0x530] sm:$0xff] %v3030
        %3415 = vst [vmem:[%s234 + $0x538] sm:$0xff] %v3031
        %3416 = vst [vmem:[%s234 + $0x540] sm:$0xff] %v3032
        %3417 = vst [vmem:[%s234 + $0x548] sm:$0xff] %v3033
        %3418 = vst [vmem:[%s234 + $0x550] sm:$0xff] %v3034
        %3419 = vst [vmem:[%s234 + $0x558] sm:$0xff] %v3035
        %3420 = vst [vmem:[%s234 + $0x560] sm:$0xff] %v3036
        %3421 = vst [vmem:[%s234 + $0x568] sm:$0xff] %v3037
        %3422 = vst [vmem:[%s234 + $0x570] sm:$0xff] %v3038
        %3423 = vst [vmem:[%s234 + $0x578] sm:$0xff] %v3039
        %3424 = vst [vmem:[%s234 + $0x580] sm:$0xff] %v3040
        %3425 = vst [vmem:[%s234 + $0x588] sm:$0xff] %v3041
        %3426 = vst [vmem:[%s234 + $0x590] sm:$0xff] %v3042
        %3427 = vst [vmem:[%s234 + $0x598] sm:$0xff] %v3043
        %3428 = vst [vmem:[%s234 + $0x5a0] sm:$0xff] %v3044
        %3429 = vst [vmem:[%s234 + $0x5a8] sm:$0xff] %v3045
        %3430 = vst [vmem:[%s234 + $0x5b0] sm:$0xff] %v3046
        %3431 = vst [vmem:[%s234 + $0x5b8] sm:$0xff] %v3047
        %3432 = vst [vmem:[%s234 + $0x5c0] sm:$0xff] %v3048
        %3433 = vst [vmem:[%s234 + $0x5c8] sm:$0xff] %v3049
        %3434 = vst [vmem:[%s234 + $0x5d0] sm:$0xff] %v3050
        %3435 = vst [vmem:[%s234 + $0x5d8] sm:$0xff] %v3051
        %3436 = vst [vmem:[%s234 + $0x5e0] sm:$0xff] %v3052
        %3437 = vst [vmem:[%s234 + $0x5e8] sm:$0xff] %v3053
        %3438 = vst [vmem:[%s234 + $0x5f0] sm:$0xff] %v3054
        %3439 = vst [vmem:[%s234 + $0x5f8] sm:$0xff] %v3055
        %s3440 = sand.u32 %s113, 1
        %s3441 = scalar_lea.sflag [#allocation4], %s3440
        %s3442 = sand.u32 %s113, 1
        %s3443 = smul.addr %s3442, 1536
        %s3444 = scalar_lea.vmem [#allocation8], %s3443
        // Predicated region
        $region45: #{tpu_custom_call.1} parent=31 // pred_check
          %p3445 = pneg %p123
        $region46: #{tpu_custom_call.1} parent=31 // pred_check_branch
          %3447 = sbr.rel (%p3445) target = $region48
        $region47: #{tpu_custom_call.1} parent=31 // pred_region
          %s3448 = smul.u32 64, %s26
          %s3450 = ssub.s32 24576, 24576
          %3451 = vsyncadd %s3441, %s3450
          %s3452 = smul.addr %s3448, 6
          %s3453 = smul.addr %s25, 384
          %s3454 = sadd.s32 %s3452, %s3453
          %s3455 = smul.addr %s3454, 64
          %s3456 = scalar_lea.hbm %s3, %s3455
          %s3457 = sshll.u32 %s3444, 4
          %s3458 = int_to_ptr.vmem [resolvable:$true] %s3457
          %3463 = dma.vmem_to_hbm [thread:$0]  %s3458, 24576, %s3456, %s3441, 384, 384, 24
        $region48: #{tpu_custom_call.1} parent=31 // pred_fallthru
          _
      $region32: #{tpu_custom_call.1} parent=5 // pred_fallthru
        _
      %p3464 = scmp.le.s32.totalorder 2, %s16
      // Predicated region
      $region49: #{tpu_custom_call.1} parent=5 // pred_check
        %p3465 = pneg %p3464
      $region50: #{tpu_custom_call.1} parent=5 // pred_check_branch
        %3467 = sbr.rel (%p3465) target = $region52
      $region51: #{tpu_custom_call.1} parent=5 // pred_region
        %s3468 = ssub.s32 %s16, 2
        // Predicated region
        $region53: #{tpu_custom_call.1} parent=51 // pred_check
          %p3469 = pneg %p129
        $region54: #{tpu_custom_call.1} parent=51 // pred_check_branch
          %3471 = sbr.rel (%p3469) target = $region56
        $region55: #{tpu_custom_call.1} parent=51 // pred_region
          %s3472 = sand.u32 %s114, 1
          %s3473 = scalar_lea.sflag [#allocation4], %s3472
          %s3474 = sand.u32 %s114, 1
          %s3475 = smul.addr %s3474, 1536
          %s3476 = scalar_lea.vmem [#allocation8], %s3475
          %3477 = dma.done %s3473, 24576
        $region56: #{tpu_custom_call.1} parent=51 // pred_fallthru
          _
      $region52: #{tpu_custom_call.1} parent=5 // pred_fallthru
        _
    $region6: #{tpu_custom_call.1} parent=1 // loop_footer
      %s20 = sadd.s32 1, %s16
    $region7: #{tpu_custom_call.1} parent=1 // loop_footer_branch
      %15 = sbr.rel target = $region3
    $region8: #{tpu_custom_call.1} parent=1 // loop_exit
      _
    %3478 = vsyncpa [#allocation3], 1
    %s3479 = scalar_lea.sflag [#allocation3], 1
    %3480 = vsyncpa %s3479, 1
    %3481 = vsyncpa [#allocation6], 1
    %3482 = vsyncpa [#allocation4], 1
    %s3483 = scalar_lea.sflag [#allocation4], 1
    %3484 = vsyncpa %s3483, 1

</llo_original>
